<compile_context>
chip_gen: v5e
topology: v5e:2x2
jax: 0.10.0
libtpu: 0.0.40
codegen_flags: <defaults>
</compile_context>

<pallas_src>
import functools

import jax
import jax.numpy as jnp
from jax import lax
from jax.experimental import pallas as pl
from jax.experimental.pallas import tpu as pltpu

VGG16_CFG = [64, 64, "M", 128, 128, "M", 256, 256, 256, "M",
             512, 512, 512, "M", 512, 512, 512, "M"]


def _ceil_div(a, b):
    return -(-a // b)


def _vmem_limit_bytes():
    # Generation-aware VMEM budget: ~80% of the physical per-core VMEM.
    try:
        return int(pltpu.get_tpu_info().vmem_capacity_bytes * 0.8)
    except Exception:
        return 48 * 1024 * 1024     # conservative fallback, safe on v5e/v6e/v7x


VMEM_LIMIT = _vmem_limit_bytes()


# ----------------- conv 3x3 (pad=1) + bias + ReLU (+ optional fused 2x2 maxpool) -----------------
def _conv3x3_kernel(xm_ref, xh_ref, w_ref, b_ref, o_ref, col_ref, *, pool):
    # xm_ref : (1, th, W+2, Cin)  body rows [i*th, i*th+th) of the zero-padded image
    # xh_ref : (1, 2,  W+2, Cin)  2-row bottom halo [i*th+th, i*th+th+2)
    # w_ref  : (9*Cin, Cout)      bf16 im2col weights, row order (dh, dw, cin)
    # b_ref  : (1, Cout)          f32
    # o_ref  : (1, th, W, Cout)   or (1, th//2, W//2, Cout) when pool=True
    # col_ref: VMEM scratch (th*W, 9*Cin) — im2col buffer (built once, one deep matmul)
    th = xm_ref.shape[1]
    W = xm_ref.shape[2] - 2
    Cin = xm_ref.shape[3]
    Cout = o_ref.shape[3]

    for dh in range(3):
        for dw in range(3):
            c0 = (dh * 3 + dw) * Cin
            if th - dh > 0:                      # output rows 0 .. th-1-dh (from body rows)
                col_ref[0:(th - dh) * W, c0:c0 + Cin] = (
                    xm_ref[0, dh:th, dw:dw + W, :].reshape((th - dh) * W, Cin))
            if dh > 0:                           # output rows th-dh .. th-1 (from halo rows)
                col_ref[(th - dh) * W:th * W, c0:c0 + Cin] = (
                    xh_ref[0, 0:dh, dw:dw + W, :].reshape(dh * W, Cin))

    acc = jnp.dot(col_ref[...], w_ref[...], preferred_element_type=jnp.float32)
    acc = jnp.maximum(acc + b_ref[...], 0.0)     # (th*W, Cout) f32

    if pool:
        y = acc.reshape(th, W // 2, 2, Cout)
        y = jnp.max(y, axis=2)                   # (th, W//2, Cout)
        y = y.reshape(th // 2, 2, W // 2, Cout)
        y = jnp.max(y, axis=1)                   # (th//2, W//2, Cout)
        o_ref[0] = y.astype(o_ref.dtype)
    else:
        o_ref[0] = acc.reshape(th, W, Cout).astype(o_ref.dtype)


def conv3x3_relu(x, w2d, b, cout, *, pool, th_target=16):
    # x: (N, H, W, Cin) bf16 ; w2d: (9*Cin, Cout) bf16 ; b: (Cout,) f32
    N, H, W, Cin = x.shape
    th = min(th_target, H)
    assert H % th == 0 and th % 2 == 0
    if pool:
        assert W % 2 == 0
    # TODO(synk): move the 1-px halo zero-padding fully in-kernel (masked boundary taps)
    #             to drop this per-layer HBM round trip.
    xp = jnp.pad(x, ((0, 0), (1, 1), (1, 1), (0, 0)))
    tho, Wout, Hout = (th // 2, W // 2, H // 2) if pool else (th, W, H)

    return pl.pallas_call(
        functools.partial(_conv3x3_kernel, pool=pool),
        out_shape=jax.ShapeDtypeStruct((N, Hout, Wout, cout), x.dtype),
        grid_spec=pltpu.PrefetchScalarGridSpec(
            num_scalar_prefetch=0,
            grid=(N, H // th),
            in_specs=[
                # body rows of the padded image (rows [i*th, i*th+th))
                pl.BlockSpec((1, th, W + 2, Cin), lambda n, i: (n, i, 0, 0)),
                # 2-row bottom halo (rows [i*th+th, i*th+th+2))
                pl.BlockSpec((1, 2, W + 2, Cin),
                             lambda n, i: (n, (i + 1) * (th // 2), 0, 0)),
                pl.BlockSpec((9 * Cin, cout), lambda n, i: (0, 0)),
                pl.BlockSpec((1, cout), lambda n, i: (0, 0)),
            ],
            out_specs=pl.BlockSpec((1, tho, Wout, cout), lambda n, i: (n, i, 0, 0)),
            scratch_shapes=[pltpu.VMEM((th * W, 9 * Cin), x.dtype)],
        ),
        compiler_params=pltpu.CompilerParams(
            dimension_semantics=("parallel", "parallel"),   # megacore-shardable on v7x
            vmem_limit_bytes=VMEM_LIMIT),
    )(xp, xp, w2d, b.reshape(1, cout))


# --------------------------------- AdaptiveAvgPool2d((7, 7)) ---------------------------------
def _avgpool7_kernel(x_ref, o_ref, acc_ref):
    H, W, C = x_ref.shape[1], x_ref.shape[2], x_ref.shape[3]
    for i in range(7):
        h0, h1 = (i * H) // 7, _ceil_div((i + 1) * H, 7)
        for j in range(7):
            w0, w1 = (j * W) // 7, _ceil_div((j + 1) * W, 7)
            patch = x_ref[0, h0:h1, w0:w1, :].astype(jnp.float32)
            k = i * 7 + j
            acc_ref[k:k + 1, :] = jnp.mean(patch.reshape(-1, C), axis=0, keepdims=True)
    # single lane-dense output store
    o_ref[0] = acc_ref[...].reshape(7, 7, C).astype(o_ref.dtype)


def adaptive_avgpool7(x):
    N, H, W, C = x.shape
    return pl.pallas_call(
        _avgpool7_kernel,
        out_shape=jax.ShapeDtypeStruct((N, 7, 7, C), x.dtype),
        grid_spec=pltpu.PrefetchScalarGridSpec(
            num_scalar_prefetch=0,
            grid=(N,),
            in_specs=[pl.BlockSpec((1, H, W, C), lambda n: (n, 0, 0, 0))],
            out_specs=pl.BlockSpec((1, 7, 7, C), lambda n: (n, 0, 0, 0)),
            scratch_shapes=[pltpu.VMEM((49, C), jnp.float32)],
        ),
        compiler_params=pltpu.CompilerParams(
            dimension_semantics=("parallel",),
            vmem_limit_bytes=VMEM_LIMIT),
    )(x)


# ------------------------------------- Linear (+ optional ReLU) -------------------------------------
def _linear_kernel(x_ref, w_ref, b_ref, o_ref, acc_ref, *, relu):
    k = pl.program_id(1)

    @pl.when(k == 0)
    def _():
        acc_ref[...] = jnp.zeros_like(acc_ref)

    acc_ref[...] += jnp.dot(x_ref[...], w_ref[...], preferred_element_type=jnp.float32)

    @pl.when(k == pl.num_programs(1) - 1)
    def _():
        y = acc_ref[...] + b_ref[...]
        if relu:
            y = jnp.maximum(y, 0.0)
        o_ref[...] = y.astype(o_ref.dtype)


def _pick_tile(dim, target):
    t = min(dim, target)
    while dim % t:
        t -= 1
    return t


def linear(x, w, b, *, relu, out_dtype, tn_target=1024, tk_target=4096):
    # x: (N, K) bf16 ; w: (K, M) bf16 ; b: (M,) f32
    N, K = x.shape
    M = w.shape[1]
    tk = _pick_tile(K, tk_target)
    tn = _pick_tile(M, tn_target)
    return pl.pallas_call(
        functools.partial(_linear_kernel, relu=relu),
        out_shape=jax.ShapeDtypeStruct((N, M), out_dtype),
        grid_spec=pltpu.PrefetchScalarGridSpec(
            num_scalar_prefetch=0,
            grid=(M // tn, K // tk),
            in_specs=[
                pl.BlockSpec((N, tk), lambda j, k: (0, k)),
                pl.BlockSpec((tk, tn), lambda j, k: (k, j)),
                pl.BlockSpec((1, tn), lambda j, k: (0, j)),
            ],
            out_specs=pl.BlockSpec((N, tn), lambda j, k: (0, j)),
            scratch_shapes=[pltpu.VMEM((N, tn), jnp.float32)],
        ),
        compiler_params=pltpu.CompilerParams(
            dimension_semantics=("parallel", "arbitrary"),
            vmem_limit_bytes=VMEM_LIMIT),
    )(x, w, b.reshape(1, M))


# ----------------------------------- parameters (torch layout) -----------------------------------
def init_params(key, num_classes):
    # "PyTorch layout": conv w (Cout, Cin, 3, 3); fc w (out, in).  Deterministic He init
    # stands in for the torchvision pretrained weights.
    convs, fcs = [], []
    cin = 3
    k = key
    for v in VGG16_CFG:
        if v == "M":
            continue
        k, kw, kb = jax.random.split(k, 3)
        w = jax.random.normal(kw, (v, cin, 3, 3), jnp.float32) * jnp.sqrt(2.0 / (9 * cin))
        b = jax.random.normal(kb, (v,), jnp.float32) * 0.01
        convs.append((w, b))
        cin = v
    dims = [512 * 7 * 7, 4096, 512, num_classes]   # classifier: 25088 -> 4096 -> 512 -> classes
    for i in range(3):
        k, kw, kb = jax.random.split(k, 3)
        w = jax.random.normal(kw, (dims[i + 1], dims[i]), jnp.float32) * jnp.sqrt(2.0 / dims[i])
        b = jax.random.normal(kb, (dims[i + 1],), jnp.float32) * 0.01
        fcs.append((w, b))
    return {"convs": convs, "fcs": fcs}


def prepare_params(tparams, num_classes):
    """Torch-layout params -> bf16 kernel layout (im2col conv weights, padded channels,
    NHWC-permuted fc1, lane-padded fc3)."""
    cfg_convs = [v for v in VGG16_CFG if v != "M"]
    pools = []
    for idx, v in enumerate(VGG16_CFG):
        if v != "M":
            pools.append(idx + 1 < len(VGG16_CFG) and VGG16_CFG[idx + 1] == "M")

    kconvs = []
    cin_p = 8                                   # input image channels padded 3 -> 8
    for (w, b), cout, pool in zip(tparams["convs"], cfg_convs, pools):
        cout_p = max(cout, 128)                 # lane-dense outputs for the 64-ch layers
        cin = w.shape[1]
        wh = jnp.transpose(w, (2, 3, 1, 0))     # (3, 3, Cin, Cout) HWIO
        wh = jnp.pad(wh, ((0, 0), (0, 0), (0, cin_p - cin), (0, cout_p - cout)))
        w2d = wh.reshape(9 * cin_p, cout_p).astype(jnp.bfloat16)   # row order (dh, dw, cin)
        bp = jnp.pad(b, (0, cout_p - cout)).astype(jnp.float32)
        kconvs.append((w2d, bp, cout_p, pool))
        cin_p = cout_p

    (w1, b1), (w2, b2), (w3, b3) = tparams["fcs"]
    # fc1: permute rows from NCHW-flatten (c,h,w) order to NHWC-flatten (h,w,c) order so the
    # classifier consumes the avgpool output with a plain reshape (no transpose).
    w1k = jnp.transpose(w1, (1, 0)).reshape(512, 7, 7, 4096)
    w1k = jnp.transpose(w1k, (1, 2, 0, 3)).reshape(512 * 7 * 7, 4096).astype(jnp.bfloat16)
    w2k = jnp.transpose(w2, (1, 0)).astype(jnp.bfloat16)
    m_pad = _ceil_div(num_classes, 128) * 128   # lane-dense final FC, sliced afterwards
    w3k = jnp.pad(jnp.transpose(w3, (1, 0)),
                  ((0, 0), (0, m_pad - num_classes))).astype(jnp.bfloat16)
    b3k = jnp.pad(b3, (0, m_pad - num_classes)).astype(jnp.float32)
    return {"convs": kconvs,
            "fcs": [(w1k, b1.astype(jnp.float32)), (w2k, b2.astype(jnp.float32)), (w3k, b3k)],
            "num_classes": num_classes}


# --------------------------------------------- forward ---------------------------------------------
def vgg_fe_forward(x_nchw, kparams):
    # x_nchw: (N, 3, H, W) float32 — PyTorch NCHW input.
    N = x_nchw.shape[0]
    x = jnp.transpose(x_nchw, (0, 2, 3, 1)).astype(jnp.bfloat16)       # -> NHWC, bf16
    x = jnp.pad(x, ((0, 0), (0, 0), (0, 0), (0, 8 - x.shape[-1])))     # Cin 3 -> 8 (zeros)
    for w2d, b, cout_p, pool in kparams["convs"]:
        x = conv3x3_relu(x, w2d, b, cout_p, pool=pool)                 # pool fused where cfg has "M"
    x = adaptive_avgpool7(x)                                           # (N, 7, 7, 512) bf16
    feat = x.reshape(N, -1)                                            # NHWC flatten (fc1 pre-permuted)
    (w1, b1), (w2, b2), (w3, b3) = kparams["fcs"]
    h = linear(feat, w1, b1, relu=True, out_dtype=jnp.bfloat16)        # Dropout: identity (eval)
    h = linear(h, w2, b2, relu=True, out_dtype=jnp.bfloat16)           # Dropout: identity (eval)
    out = linear(h, w3, b3, relu=False, out_dtype=jnp.float32)
    return out[:, :kparams["num_classes"]]
    # TODO(synk): training-mode Dropout (stochastic masking) intentionally not implemented.


# ---------------------------------------- pure-JAX reference ----------------------------------------
def ref_forward(x_nchw, tparams, num_classes):
    x = jnp.transpose(x_nchw, (0, 2, 3, 1)).astype(jnp.bfloat16)
    N = x.shape[0]
    ci = 0
    for idx, v in enumerate(VGG16_CFG):
        if v == "M":
            continue
        w, b = tparams["convs"][ci]
        wh = jnp.transpose(w, (2, 3, 1, 0)).astype(jnp.bfloat16)       # HWIO
        y = lax.conv_general_dilated(
            x, wh, (1, 1), "SAME",
            dimension_numbers=("NHWC", "HWIO", "NHWC"),
            preferred_element_type=jnp.float32)
        y = jnp.maximum(y + b, 0.0)
        if idx + 1 < len(VGG16_CFG) and VGG16_CFG[idx + 1] == "M":
            y = lax.reduce_window(y, -jnp.inf, lax.max,
                                  (1, 2, 2, 1), (1, 2, 2, 1), "VALID")
        x = y.astype(jnp.bfloat16)
        ci += 1
    xf = x.astype(jnp.float32)
    h, w_ = xf.shape[1], xf.shape[2]
    rows = []
    for i in range(7):
        h0, h1 = (i * h) // 7, _ceil_div((i + 1) * h, 7)
        cols = []
        for j in range(7):
            w0, w1 = (j * w_) // 7, _ceil_div((j + 1) * w_, 7)
            cols.append(jnp.mean(xf[:, h0:h1, w0:w1, :], axis=(1, 2)))
        rows.append(jnp.stack(cols, axis=1))
    pooled = jnp.stack(rows, axis=1).astype(jnp.bfloat16)              # (N, 7, 7, 512)
    feat = jnp.transpose(pooled, (0, 3, 1, 2)).reshape(N, -1)          # PyTorch NCHW flatten
    (w1, b1), (w2, b2), (w3, b3) = tparams["fcs"]

    def fc(h_, wt, bb, relu):
        y_ = jnp.dot(h_.astype(jnp.bfloat16), jnp.transpose(wt).astype(jnp.bfloat16),
                     preferred_element_type=jnp.float32) + bb
        return jnp.maximum(y_, 0.0) if relu else y_

    h1 = fc(feat, w1, b1, True).astype(jnp.bfloat16)
    h2 = fc(h1, w2, b2, True).astype(jnp.bfloat16)
    return fc(h2, w3, b3, False)


if __name__ == "__main__":
    num_classes = 8
    key = jax.random.PRNGKey(0)
    kx, kp = jax.random.split(key)
    # Smallest spatial size compatible with VGG16 features (5 pools) + AdaptiveAvgPool2d((7,7)).
    x = jax.random.normal(kx, (2, 3, 32, 32), jnp.float32)
    tparams = init_params(kp, num_classes)
    kparams = prepare_params(tparams, num_classes)

    out = jax.block_until_ready(vgg_fe_forward(x, kparams))
    assert out.shape == (2, num_classes) and out.dtype == jnp.float32

    ref = jax.block_until_ready(ref_forward(x, tparams, num_classes))
    assert bool(jnp.all(jnp.isfinite(out)))
    assert bool(jnp.allclose(out, ref, rtol=3e-2, atol=3e-2)), (out, ref)

    print("KERNEL_OK")
</pallas_src>

<mosaic_0001>
module attributes {stable_mosaic.version = 11 : i64} {
  func.func @_conv3x3_kernel(%arg0: i32, %arg1: i32, %arg2: memref<1x16x34x8xbf16, #tpu.memory_space<vmem>>, %arg3: memref<1x2x34x8xbf16, #tpu.memory_space<vmem>>, %arg4: memref<72x128xbf16, #tpu.memory_space<vmem>>, %arg5: memref<1x128xf32, #tpu.memory_space<vmem>>, %arg6: memref<1x16x32x128xbf16, #tpu.memory_space<vmem>>, %arg7: memref<512x72xbf16, #tpu.memory_space<vmem>>) attributes {dimension_semantics = [#tpu.dimension_semantics<parallel>, #tpu.dimension_semantics<parallel>], iteration_bounds = array<i64: 2, 2>, scalar_prefetch = 0 : i64, scratch_operands = 1 : i64, tpu.core_type = #tpu.core_type<tc>, window_params = [{transform_indices = @transform_0, window_bounds = array<i64: 1, 16, 34, 8>}, {transform_indices = @transform_1, window_bounds = array<i64: 1, 2, 34, 8>}, {pipeline_mode = #tpu.pipeline_mode<synchronous>, transform_indices = @transform_2, window_bounds = array<i64: 72, 128>}, {pipeline_mode = #tpu.pipeline_mode<synchronous>, transform_indices = @transform_3, window_bounds = array<i64: 1, 128>}, {transform_indices = @transform_4, window_bounds = array<i64: 1, 16, 32, 128>}]} {
    %c0 = arith.constant 0 : index
    %c0_0 = arith.constant 0 : index
    %c0_1 = arith.constant 0 : index
    %c0_2 = arith.constant 0 : index
    %0 = vector.load %arg2[%c0, %c0_0, %c0_1, %c0_2] : memref<1x16x34x8xbf16, #tpu.memory_space<vmem>>, vector<1x16x32x8xbf16>
    %1 = vector.shape_cast %0 : vector<1x16x32x8xbf16> to vector<16x32x8xbf16>
    %2 = vector.shape_cast %1 : vector<16x32x8xbf16> to vector<512x8xbf16>
    %c0_3 = arith.constant 0 : index
    %c0_4 = arith.constant 0 : index
    %3 = vector.load %arg7[%c0_3, %c0_4] : memref<512x72xbf16, #tpu.memory_space<vmem>>, vector<512x8xbf16>
    tpu.vector_store %arg7[%c0_3, %c0_4], %2 {strides = array<i32>} : memref<512x72xbf16, #tpu.memory_space<vmem>>, vector<512x8xbf16>,
    %c0_5 = arith.constant 0 : index
    %c0_6 = arith.constant 0 : index
    %c1 = arith.constant 1 : index
    %c0_7 = arith.constant 0 : index
    %4 = vector.load %arg2[%c0_5, %c0_6, %c1, %c0_7] : memref<1x16x34x8xbf16, #tpu.memory_space<vmem>>, vector<1x16x32x8xbf16>
    %5 = vector.shape_cast %4 : vector<1x16x32x8xbf16> to vector<16x32x8xbf16>
    %6 = vector.shape_cast %5 : vector<16x32x8xbf16> to vector<512x8xbf16>
    %c0_8 = arith.constant 0 : index
    %c8 = arith.constant 8 : index
    %7 = vector.load %arg7[%c0_8, %c8] : memref<512x72xbf16, #tpu.memory_space<vmem>>, vector<512x8xbf16>
    tpu.vector_store %arg7[%c0_8, %c8], %6 {strides = array<i32>} : memref<512x72xbf16, #tpu.memory_space<vmem>>, vector<512x8xbf16>,
    %c0_9 = arith.constant 0 : index
    %c0_10 = arith.constant 0 : index
    %c2 = arith.constant 2 : index
    %c0_11 = arith.constant 0 : index
    %8 = vector.load %arg2[%c0_9, %c0_10, %c2, %c0_11] : memref<1x16x34x8xbf16, #tpu.memory_space<vmem>>, vector<1x16x32x8xbf16>
    %9 = vector.shape_cast %8 : vector<1x16x32x8xbf16> to vector<16x32x8xbf16>
    %10 = vector.shape_cast %9 : vector<16x32x8xbf16> to vector<512x8xbf16>
    %c0_12 = arith.constant 0 : index
    %c16 = arith.constant 16 : index
    %11 = vector.load %arg7[%c0_12, %c16] : memref<512x72xbf16, #tpu.memory_space<vmem>>, vector<512x8xbf16>
    tpu.vector_store %arg7[%c0_12, %c16], %10 {strides = array<i32>} : memref<512x72xbf16, #tpu.memory_space<vmem>>, vector<512x8xbf16>,
    %c0_13 = arith.constant 0 : index
    %c1_14 = arith.constant 1 : index
    %c0_15 = arith.constant 0 : index
    %c0_16 = arith.constant 0 : index
    %12 = vector.load %arg2[%c0_13, %c1_14, %c0_15, %c0_16] : memref<1x16x34x8xbf16, #tpu.memory_space<vmem>>, vector<1x15x32x8xbf16>
    %13 = vector.shape_cast %12 : vector<1x15x32x8xbf16> to vector<15x32x8xbf16>
    %14 = vector.shape_cast %13 : vector<15x32x8xbf16> to vector<480x8xbf16>
    %c0_17 = arith.constant 0 : index
    %c24 = arith.constant 24 : index
    %15 = vector.load %arg7[%c0_17, %c24] : memref<512x72xbf16, #tpu.memory_space<vmem>>, vector<480x8xbf16>
    tpu.vector_store %arg7[%c0_17, %c24], %14 {strides = array<i32>} : memref<512x72xbf16, #tpu.memory_space<vmem>>, vector<480x8xbf16>,
    %c0_18 = arith.constant 0 : index
    %c0_19 = arith.constant 0 : index
    %c0_20 = arith.constant 0 : index
    %c0_21 = arith.constant 0 : index
    %16 = vector.load %arg3[%c0_18, %c0_19, %c0_20, %c0_21] : memref<1x2x34x8xbf16, #tpu.memory_space<vmem>>, vector<1x1x32x8xbf16>
    %17 = vector.shape_cast %16 : vector<1x1x32x8xbf16> to vector<1x32x8xbf16>
    %18 = vector.shape_cast %17 : vector<1x32x8xbf16> to vector<32x8xbf16>
    %c480 = arith.constant 480 : index
    %c24_22 = arith.constant 24 : index
    %19 = vector.load %arg7[%c480, %c24_22] : memref<512x72xbf16, #tpu.memory_space<vmem>>, vector<32x8xbf16>
    tpu.vector_store %arg7[%c480, %c24_22], %18 {strides = array<i32>} : memref<512x72xbf16, #tpu.memory_space<vmem>>, vector<32x8xbf16>,
    %c0_23 = arith.constant 0 : index
    %c1_24 = arith.constant 1 : index
    %c1_25 = arith.constant 1 : index
    %c0_26 = arith.constant 0 : index
    %20 = vector.load %arg2[%c0_23, %c1_24, %c1_25, %c0_26] : memref<1x16x34x8xbf16, #tpu.memory_space<vmem>>, vector<1x15x32x8xbf16>
    %21 = vector.shape_cast %20 : vector<1x15x32x8xbf16> to vector<15x32x8xbf16>
    %22 = vector.shape_cast %21 : vector<15x32x8xbf16> to vector<480x8xbf16>
    %c0_27 = arith.constant 0 : index
    %c32 = arith.constant 32 : index
    %23 = vector.load %arg7[%c0_27, %c32] : memref<512x72xbf16, #tpu.memory_space<vmem>>, vector<480x8xbf16>
    tpu.vector_store %arg7[%c0_27, %c32], %22 {strides = array<i32>} : memref<512x72xbf16, #tpu.memory_space<vmem>>, vector<480x8xbf16>,
    %c0_28 = arith.constant 0 : index
    %c0_29 = arith.constant 0 : index
    %c1_30 = arith.constant 1 : index
    %c0_31 = arith.constant 0 : index
    %24 = vector.load %arg3[%c0_28, %c0_29, %c1_30, %c0_31] : memref<1x2x34x8xbf16, #tpu.memory_space<vmem>>, vector<1x1x32x8xbf16>
    %25 = vector.shape_cast %24 : vector<1x1x32x8xbf16> to vector<1x32x8xbf16>
    %26 = vector.shape_cast %25 : vector<1x32x8xbf16> to vector<32x8xbf16>
    %c480_32 = arith.constant 480 : index
    %c32_33 = arith.constant 32 : index
    %27 = vector.load %arg7[%c480_32, %c32_33] : memref<512x72xbf16, #tpu.memory_space<vmem>>, vector<32x8xbf16>
    tpu.vector_store %arg7[%c480_32, %c32_33], %26 {strides = array<i32>} : memref<512x72xbf16, #tpu.memory_space<vmem>>, vector<32x8xbf16>,
    %c0_34 = arith.constant 0 : index
    %c1_35 = arith.constant 1 : index
    %c2_36 = arith.constant 2 : index
    %c0_37 = arith.constant 0 : index
    %28 = vector.load %arg2[%c0_34, %c1_35, %c2_36, %c0_37] : memref<1x16x34x8xbf16, #tpu.memory_space<vmem>>, vector<1x15x32x8xbf16>
    %29 = vector.shape_cast %28 : vector<1x15x32x8xbf16> to vector<15x32x8xbf16>
    %30 = vector.shape_cast %29 : vector<15x32x8xbf16> to vector<480x8xbf16>
    %c0_38 = arith.constant 0 : index
    %c40 = arith.constant 40 : index
    %31 = vector.load %arg7[%c0_38, %c40] : memref<512x72xbf16, #tpu.memory_space<vmem>>, vector<480x8xbf16>
    tpu.vector_store %arg7[%c0_38, %c40], %30 {strides = array<i32>} : memref<512x72xbf16, #tpu.memory_space<vmem>>, vector<480x8xbf16>,
    %c0_39 = arith.constant 0 : index
    %c0_40 = arith.constant 0 : index
    %c2_41 = arith.constant 2 : index
    %c0_42 = arith.constant 0 : index
    %32 = vector.load %arg3[%c0_39, %c0_40, %c2_41, %c0_42] : memref<1x2x34x8xbf16, #tpu.memory_space<vmem>>, vector<1x1x32x8xbf16>
    %33 = vector.shape_cast %32 : vector<1x1x32x8xbf16> to vector<1x32x8xbf16>
    %34 = vector.shape_cast %33 : vector<1x32x8xbf16> to vector<32x8xbf16>
    %c480_43 = arith.constant 480 : index
    %c40_44 = arith.constant 40 : index
    %35 = vector.load %arg7[%c480_43, %c40_44] : memref<512x72xbf16, #tpu.memory_space<vmem>>, vector<32x8xbf16>
    tpu.vector_store %arg7[%c480_43, %c40_44], %34 {strides = array<i32>} : memref<512x72xbf16, #tpu.memory_space<vmem>>, vector<32x8xbf16>,
    %c0_45 = arith.constant 0 : index
    %c2_46 = arith.constant 2 : index
    %c0_47 = arith.constant 0 : index
    %c0_48 = arith.constant 0 : index
    %36 = vector.load %arg2[%c0_45, %c2_46, %c0_47, %c0_48] : memref<1x16x34x8xbf16, #tpu.memory_space<vmem>>, vector<1x14x32x8xbf16>
    %37 = vector.shape_cast %36 : vector<1x14x32x8xbf16> to vector<14x32x8xbf16>
    %38 = vector.shape_cast %37 : vector<14x32x8xbf16> to vector<448x8xbf16>
    %c0_49 = arith.constant 0 : index
    %c48 = arith.constant 48 : index
    %39 = vector.load %arg7[%c0_49, %c48] : memref<512x72xbf16, #tpu.memory_space<vmem>>, vector<448x8xbf16>
    tpu.vector_store %arg7[%c0_49, %c48], %38 {strides = array<i32>} : memref<512x72xbf16, #tpu.memory_space<vmem>>, vector<448x8xbf16>,
    %c0_50 = arith.constant 0 : index
    %c0_51 = arith.constant 0 : index
    %c0_52 = arith.constant 0 : index
    %c0_53 = arith.constant 0 : index
    %40 = vector.load %arg3[%c0_50, %c0_51, %c0_52, %c0_53] : memref<1x2x34x8xbf16, #tpu.memory_space<vmem>>, vector<1x2x32x8xbf16>
    %41 = vector.shape_cast %40 : vector<1x2x32x8xbf16> to vector<2x32x8xbf16>
    %42 = vector.shape_cast %41 : vector<2x32x8xbf16> to vector<64x8xbf16>
    %c448 = arith.constant 448 : index
    %c48_54 = arith.constant 48 : index
    %43 = vector.load %arg7[%c448, %c48_54] : memref<512x72xbf16, #tpu.memory_space<vmem>>, vector<64x8xbf16>
    tpu.vector_store %arg7[%c448, %c48_54], %42 {strides = array<i32>} : memref<512x72xbf16, #tpu.memory_space<vmem>>, vector<64x8xbf16>,
    %c0_55 = arith.constant 0 : index
    %c2_56 = arith.constant 2 : index
    %c1_57 = arith.constant 1 : index
    %c0_58 = arith.constant 0 : index
    %44 = vector.load %arg2[%c0_55, %c2_56, %c1_57, %c0_58] : memref<1x16x34x8xbf16, #tpu.memory_space<vmem>>, vector<1x14x32x8xbf16>
    %45 = vector.shape_cast %44 : vector<1x14x32x8xbf16> to vector<14x32x8xbf16>
    %46 = vector.shape_cast %45 : vector<14x32x8xbf16> to vector<448x8xbf16>
    %c0_59 = arith.constant 0 : index
    %c56 = arith.constant 56 : index
    %47 = vector.load %arg7[%c0_59, %c56] : memref<512x72xbf16, #tpu.memory_space<vmem>>, vector<448x8xbf16>
    tpu.vector_store %arg7[%c0_59, %c56], %46 {strides = array<i32>} : memref<512x72xbf16, #tpu.memory_space<vmem>>, vector<448x8xbf16>,
    %c0_60 = arith.constant 0 : index
    %c0_61 = arith.constant 0 : index
    %c1_62 = arith.constant 1 : index
    %c0_63 = arith.constant 0 : index
    %48 = vector.load %arg3[%c0_60, %c0_61, %c1_62, %c0_63] : memref<1x2x34x8xbf16, #tpu.memory_space<vmem>>, vector<1x2x32x8xbf16>
    %49 = vector.shape_cast %48 : vector<1x2x32x8xbf16> to vector<2x32x8xbf16>
    %50 = vector.shape_cast %49 : vector<2x32x8xbf16> to vector<64x8xbf16>
    %c448_64 = arith.constant 448 : index
    %c56_65 = arith.constant 56 : index
    %51 = vector.load %arg7[%c448_64, %c56_65] : memref<512x72xbf16, #tpu.memory_space<vmem>>, vector<64x8xbf16>
    tpu.vector_store %arg7[%c448_64, %c56_65], %50 {strides = array<i32>} : memref<512x72xbf16, #tpu.memory_space<vmem>>, vector<64x8xbf16>,
    %c0_66 = arith.constant 0 : index
    %c2_67 = arith.constant 2 : index
    %c2_68 = arith.constant 2 : index
    %c0_69 = arith.constant 0 : index
    %52 = vector.load %arg2[%c0_66, %c2_67, %c2_68, %c0_69] : memref<1x16x34x8xbf16, #tpu.memory_space<vmem>>, vector<1x14x32x8xbf16>
    %53 = vector.shape_cast %52 : vector<1x14x32x8xbf16> to vector<14x32x8xbf16>
    %54 = vector.shape_cast %53 : vector<14x32x8xbf16> to vector<448x8xbf16>
    %c0_70 = arith.constant 0 : index
    %c64 = arith.constant 64 : index
    %55 = vector.load %arg7[%c0_70, %c64] : memref<512x72xbf16, #tpu.memory_space<vmem>>, vector<448x8xbf16>
    tpu.vector_store %arg7[%c0_70, %c64], %54 {strides = array<i32>} : memref<512x72xbf16, #tpu.memory_space<vmem>>, vector<448x8xbf16>,
    %c0_71 = arith.constant 0 : index
    %c0_72 = arith.constant 0 : index
    %c2_73 = arith.constant 2 : index
    %c0_74 = arith.constant 0 : index
    %56 = vector.load %arg3[%c0_71, %c0_72, %c2_73, %c0_74] : memref<1x2x34x8xbf16, #tpu.memory_space<vmem>>, vector<1x2x32x8xbf16>
    %57 = vector.shape_cast %56 : vector<1x2x32x8xbf16> to vector<2x32x8xbf16>
    %58 = vector.shape_cast %57 : vector<2x32x8xbf16> to vector<64x8xbf16>
    %c448_75 = arith.constant 448 : index
    %c64_76 = arith.constant 64 : index
    %59 = vector.load %arg7[%c448_75, %c64_76] : memref<512x72xbf16, #tpu.memory_space<vmem>>, vector<64x8xbf16>
    tpu.vector_store %arg7[%c448_75, %c64_76], %58 {strides = array<i32>} : memref<512x72xbf16, #tpu.memory_space<vmem>>, vector<64x8xbf16>,
    %c0_77 = arith.constant 0 : index
    %c0_78 = arith.constant 0 : index
    %60 = vector.load %arg7[%c0_77, %c0_78] : memref<512x72xbf16, #tpu.memory_space<vmem>>, vector<512x72xbf16>
    %c0_79 = arith.constant 0 : index
    %c0_80 = arith.constant 0 : index
    %61 = vector.load %arg4[%c0_79, %c0_80] : memref<72x128xbf16, #tpu.memory_space<vmem>>, vector<72x128xbf16>
    %cst = arith.constant dense<0.000000e+00> : vector<512x128xf32>
    %62 = tpu.matmul %60, %61, %cst {dimension_numbers = #tpu.dot_dimension_numbers<[1], [0], [0], [1], [0, 0, 1, 1], [], []>} : vector<512x72xbf16>, vector<72x128xbf16>, vector<512x128xf32> -> vector<512x128xf32>
    %c0_81 = arith.constant 0 : index
    %c0_82 = arith.constant 0 : index
    %63 = vector.load %arg5[%c0_81, %c0_82] : memref<1x128xf32, #tpu.memory_space<vmem>>, vector<1x128xf32>
    %64 = vector.broadcast %63 : vector<1x128xf32> to vector<512x128xf32>
    %65 = arith.addf %62, %64 : vector<512x128xf32>
    %cst_83 = arith.constant 0.000000e+00 : f32
    %66 = vector.broadcast %cst_83 : f32 to vector<512x128xf32>
    %67 = arith.maximumf %65, %66 : vector<512x128xf32>
    %68 = vector.shape_cast %67 : vector<512x128xf32> to vector<16x32x128xf32>
    %69 = arith.truncf %68 : vector<16x32x128xf32> to vector<16x32x128xbf16>
    %c0_84 = arith.constant 0 : index
    %c0_85 = arith.constant 0 : index
    %c0_86 = arith.constant 0 : index
    %c0_87 = arith.constant 0 : index
    %70 = vector.load %arg6[%c0_84, %c0_85, %c0_86, %c0_87] : memref<1x16x32x128xbf16, #tpu.memory_space<vmem>>, vector<1x16x32x128xbf16>
    %71 = vector.shape_cast %70 : vector<1x16x32x128xbf16> to vector<16x32x128xbf16>
    %72 = vector.shape_cast %69 : vector<16x32x128xbf16> to vector<1x16x32x128xbf16>
    tpu.vector_store %arg6[%c0_84, %c0_85, %c0_86, %c0_87], %72 {strides = array<i32>} : memref<1x16x32x128xbf16, #tpu.memory_space<vmem>>, vector<1x16x32x128xbf16>,
    return
  }
  func.func @transform_0(%arg0: i32, %arg1: i32) -> (i32, i32, i32, i32) {
    %c0_i32 = arith.constant 0 : i32
    %c0_i32_0 = arith.constant 0 : i32
    %c0_i32_1 = arith.constant 0 : i32
    return %arg0, %arg1, %c0_i32, %c0_i32_0 : i32, i32, i32, i32
  }
  func.func @transform_1(%arg0: i32, %arg1: i32) -> (i32, i32, i32, i32) {
    %c1_i32 = arith.constant 1 : i32
    %0 = arith.addi %arg1, %c1_i32 : i32
    %c8_i32 = arith.constant 8 : i32
    %1 = arith.muli %0, %c8_i32 : i32
    %c0_i32 = arith.constant 0 : i32
    %c0_i32_0 = arith.constant 0 : i32
    %c0_i32_1 = arith.constant 0 : i32
    return %arg0, %1, %c0_i32, %c0_i32_0 : i32, i32, i32, i32
  }
  func.func @transform_2(%arg0: i32, %arg1: i32) -> (i32, i32) {
    %c0_i32 = arith.constant 0 : i32
    %c0_i32_0 = arith.constant 0 : i32
    %c0_i32_1 = arith.constant 0 : i32
    return %c0_i32, %c0_i32_0 : i32, i32
  }
  func.func @transform_3(%arg0: i32, %arg1: i32) -> (i32, i32) {
    %c0_i32 = arith.constant 0 : i32
    %c0_i32_0 = arith.constant 0 : i32
    %c0_i32_1 = arith.constant 0 : i32
    return %c0_i32, %c0_i32_0 : i32, i32
  }
  func.func @transform_4(%arg0: i32, %arg1: i32) -> (i32, i32, i32, i32) {
    %c0_i32 = arith.constant 0 : i32
    %c0_i32_0 = arith.constant 0 : i32
    %c0_i32_1 = arith.constant 0 : i32
    return %arg0, %arg1, %c0_i32, %c0_i32_0 : i32, i32, i32, i32
  }
}

</mosaic_0001>

<llo_original>
// kernel: tpu_custom_call.1
$region0: #{tpu_custom_call.1}
  #allocation0 [shape = 'u32[]', space=smem, size = 0x4, offset = 0x4, fixed_abs, tag = 'smem constant byte address 0x4 - core index']
  #allocation1 [shape = 'u32[72,128]{1,0:T(1,128)}', space=vmem, size = 0x9000, scoped, tag = 'internal scratch']
  #allocation2 [shape = 'bf16[512,72]{1,0:T(8,128)(2,1)}', space=vmem, size = 0x20000, scoped, tag = 'scratch operand']
  %s0 = inlined_call_operand.vmem [shape: bf16[2,34,34,8], index: 0, kind: input, shape index: {}]
  %s1 = inlined_call_operand.vmem [shape: bf16[2,34,34,8], index: 1, kind: input, shape index: {}]
  %s2 = inlined_call_operand.vmem [shape: bf16[72,128], index: 2, kind: input, shape index: {}]
  %s3 = inlined_call_operand.vmem [shape: f32[1,128], index: 3, kind: input, shape index: {}]
  %s4 = inlined_call_operand.hbm [shape: bf16[2,32,32,128], index: 4, kind: output, shape index: {}]
  %s5 = sld [smem:[#allocation0]]
  $region49: #{tpu_custom_call.1} parent=0
    _
  %s7 = ssub.s32 1, %s5
  %s8 = scalar_select 0, %s7, %s5
  $region1: #{tpu_custom_call.1} parent=0
    #allocation3 [shape = 'u8[262144]{0}', space=vmem, size = 0x40000, scoped, tag = 'output window, operand 0']
    #allocation4 [shape = 's32[2]{0}', space=sflag, size = 0x8, scoped, tag = 'scoped memory for tpu_custom_call.1']
    %9 = vsyncpa [#allocation4], 0
    %s10 = scalar_lea.sflag [#allocation4], 1
    %11 = vsyncpa %s10, 0
    loop: start=0, step=1, limit=6
    $region2: #{tpu_custom_call.1} parent=1 // loop_pre_header
      _
    $region3: #{tpu_custom_call.1} parent=1 // loop_header
      %s13 = sphi 0, %s17
      %p14 = scmp.ge.s32.totalorder %s13, 6
      %s20 = sphi 0, %s32
      %s21 = sphi 0, %s28
      %s22 = sphi 0, %s20
      %s23 = sphi 0, %s21
      %s24 = sphi 0, %s22
      %s25 = sphi 0, %s23
      %s37 = sphi 0, %s39
      %s40 = sphi 0, %s37
      %s41 = sphi 0, %s40
      %s57 = sphi 0, %s41
      %s69 = sphi 0, %s71
      %s72 = sphi 0, %s69
      %s73 = sphi 0, %s72
      %s89 = sphi 0, %s73
      %s93 = sphi 0, %s93
      %s95 = sphi 0, %s93
      %s96 = sphi 0, %s95
      %s110 = sphi 0, %s96
      %s114 = sphi 0, %s114
      %s116 = sphi 0, %s114
      %s117 = sphi 0, %s116
      %s131 = sphi 0, %s117
      %s139 = sphi 0, %s141
      %s142 = sphi 0, %s139
      %s143 = sphi 0, %s142
      %s159 = sphi 0, %s143
    $region4: #{tpu_custom_call.1} parent=1 // loop_header_branch
      %16 = sbr.rel (%p14) target = $region8
    $region5: #{tpu_custom_call.1} parent=1 // loop_body
      %s18 = ssub.s32 %s13, 1
      %s19 = ssub.s32 %s13, 2
      %s26 = sadd.s32 1, %s21
      %p27 = scmp.ge.s32.totalorder %s26, 2
      %s28 = scalar_select %p27, 0, %s26
      %s29 = sadd.s32 1, %s20
      %s30 = scalar_select %p27, %s29, %s20
      %p31 = scmp.ge.s32.totalorder %s30, 2
      %s32 = scalar_select %p31, 0, %s30
      %s33 = ssub.s32 %s20, %s32
      %s34 = ssub.s32 %s21, %s28
      %s35 = sor.u32 %s33, %s34
      %p36 = scmp.eq.s32.totalorder %s35, 0
      %s38 = sadd.s32 %s37, 1
      %s39 = scalar_select %p36, %s37, %s38
      %p42 = pneg %p36
      %p43 = scmp.eq.s32.totalorder %s13, 3
      %p44 = por %p42, %p43
      %p45 = scmp.ne.s32.totalorder %s37, %s40
      %p46 = scmp.eq.s32.totalorder %s13, 0
      %p47 = por %p45, %p46
      %p48 = scmp.ne.s32.totalorder %s37, %s40
      %p49 = scmp.eq.s32.totalorder %s18, 3
      %p50 = por %p48, %p49
      %p51 = scmp.ne.s32.totalorder %s40, %s41
      %p52 = scmp.eq.s32.totalorder %s18, 0
      %p53 = por %p51, %p52
      %p54 = scmp.ne.s32.totalorder %s40, %s41
      %p55 = scmp.eq.s32.totalorder %s19, 3
      %p56 = por %p54, %p55
      %p58 = scmp.ne.s32.totalorder %s41, %s57
      %p59 = scmp.eq.s32.totalorder %s19, 0
      %p60 = por %p58, %p59
      %s61 = sadd.s32 %s21, 1
      %s62 = smul.u32 %s61, 8
      %s63 = sadd.s32 %s28, 1
      %s64 = smul.u32 %s63, 8
      %s65 = ssub.s32 %s20, %s32
      %s66 = ssub.s32 %s62, %s64
      %s67 = sor.u32 %s65, %s66
      %p68 = scmp.eq.s32.totalorder %s67, 0
      %s70 = sadd.s32 %s69, 1
      %s71 = scalar_select %p68, %s69, %s70
      %p74 = pneg %p68
      %p75 = scmp.eq.s32.totalorder %s13, 3
      %p76 = por %p74, %p75
      %p77 = scmp.ne.s32.totalorder %s69, %s72
      %p78 = scmp.eq.s32.totalorder %s13, 0
      %p79 = por %p77, %p78
      %p80 = scmp.ne.s32.totalorder %s69, %s72
      %p81 = scmp.eq.s32.totalorder %s18, 3
      %p82 = por %p80, %p81
      %p83 = scmp.ne.s32.totalorder %s72, %s73
      %p84 = scmp.eq.s32.totalorder %s18, 0
      %p85 = por %p83, %p84
      %p86 = scmp.ne.s32.totalorder %s72, %s73
      %p87 = scmp.eq.s32.totalorder %s19, 3
      %p88 = por %p86, %p87
      %p90 = scmp.ne.s32.totalorder %s73, %s89
      %p91 = scmp.eq.s32.totalorder %s19, 0
      %p92 = por %p90, %p91
      %s94 = sadd.s32 %s93, 1
      %p97 = scmp.eq.s32.totalorder %s13, 3
      %p98 = scmp.ne.s32.totalorder %s93, %s95
      %p99 = scmp.eq.s32.totalorder %s13, 0
      %p100 = por %p98, %p99
      %p101 = scmp.ne.s32.totalorder %s93, %s95
      %p102 = scmp.eq.s32.totalorder %s18, 3
      %p103 = por %p101, %p102
      %p104 = scmp.ne.s32.totalorder %s95, %s96
      %p105 = scmp.eq.s32.totalorder %s18, 0
      %p106 = por %p104, %p105
      %p107 = scmp.ne.s32.totalorder %s95, %s96
      %p108 = scmp.eq.s32.totalorder %s19, 3
      %p109 = por %p107, %p108
      %p111 = scmp.ne.s32.totalorder %s96, %s110
      %p112 = scmp.eq.s32.totalorder %s19, 0
      %p113 = por %p111, %p112
      %s115 = sadd.s32 %s114, 1
      %p118 = scmp.eq.s32.totalorder %s13, 3
      %p119 = scmp.ne.s32.totalorder %s114, %s116
      %p120 = scmp.eq.s32.totalorder %s13, 0
      %p121 = por %p119, %p120
      %p122 = scmp.ne.s32.totalorder %s114, %s116
      %p123 = scmp.eq.s32.totalorder %s18, 3
      %p124 = por %p122, %p123
      %p125 = scmp.ne.s32.totalorder %s116, %s117
      %p126 = scmp.eq.s32.totalorder %s18, 0
      %p127 = por %p125, %p126
      %p128 = scmp.ne.s32.totalorder %s116, %s117
      %p129 = scmp.eq.s32.totalorder %s19, 3
      %p130 = por %p128, %p129
      %p132 = scmp.ne.s32.totalorder %s117, %s131
      %p133 = scmp.eq.s32.totalorder %s19, 0
      %p134 = por %p132, %p133
      %s135 = ssub.s32 %s20, %s32
      %s136 = ssub.s32 %s21, %s28
      %s137 = sor.u32 %s135, %s136
      %p138 = scmp.eq.s32.totalorder %s137, 0
      %s140 = sadd.s32 %s139, 1
      %s141 = scalar_select %p138, %s139, %s140
      %p144 = pneg %p138
      %p145 = scmp.eq.s32.totalorder %s13, 3
      %p146 = por %p144, %p145
      %p147 = scmp.ne.s32.totalorder %s139, %s142
      %p148 = scmp.eq.s32.totalorder %s13, 0
      %p149 = por %p147, %p148
      %p150 = scmp.ne.s32.totalorder %s139, %s142
      %p151 = scmp.eq.s32.totalorder %s18, 3
      %p152 = por %p150, %p151
      %p153 = scmp.ne.s32.totalorder %s142, %s143
      %p154 = scmp.eq.s32.totalorder %s18, 0
      %p155 = por %p153, %p154
      %p156 = scmp.ne.s32.totalorder %s142, %s143
      %p157 = scmp.eq.s32.totalorder %s19, 3
      %p158 = por %p156, %p157
      %p160 = scmp.ne.s32.totalorder %s143, %s159
      %p161 = scmp.eq.s32.totalorder %s19, 0
      %p162 = por %p160, %p161
      %p163 = scmp.le.s32.totalorder 1, %s13
      %p164 = scmp.lt.s32.totalorder %s13, 5
      %p165 = pnand %p163, %p164
      %p166 = pneg %p165
      // Predicated region
      $region9: #{tpu_custom_call.1} parent=5 // pred_check
        _
      $region10: #{tpu_custom_call.1} parent=5 // pred_check_branch
        %168 = sbr.rel (%p165) target = $region12
      $region11: #{tpu_custom_call.1} parent=5 // pred_region
        %s169 = ssub.s32 %s13, 1
        // Predicated region
        $region13: #{tpu_custom_call.1} parent=11 // pred_check
          %p170 = pneg %p106
        $region14: #{tpu_custom_call.1} parent=11 // pred_check_branch
          %172 = sbr.rel (%p170) target = $region16
        $region15: #{tpu_custom_call.1} parent=11 // pred_region
          _
        $region16: #{tpu_custom_call.1} parent=11 // pred_fallthru
          _
        // Predicated region
        $region17: #{tpu_custom_call.1} parent=11 // pred_check
          %p173 = pneg %p127
        $region18: #{tpu_custom_call.1} parent=11 // pred_check_branch
          %175 = sbr.rel (%p173) target = $region20
        $region19: #{tpu_custom_call.1} parent=11 // pred_region
          _
        $region20: #{tpu_custom_call.1} parent=11 // pred_fallthru
          _
      $region12: #{tpu_custom_call.1} parent=5 // pred_fallthru
        _
      %p176 = scmp.lt.s32.totalorder %s13, 4
      // Predicated region
      $region21: #{tpu_custom_call.1} parent=5 // pred_check
        %p177 = pneg %p176
      $region22: #{tpu_custom_call.1} parent=5 // pred_check_branch
        %179 = sbr.rel (%p177) target = $region24
      $region23: #{tpu_custom_call.1} parent=5 // pred_region
        // Predicated region
        $region25: #{tpu_custom_call.1} parent=23 // pred_check
          %p180 = pneg %p47
        $region26: #{tpu_custom_call.1} parent=23 // pred_check_branch
          %182 = sbr.rel (%p180) target = $region28
        $region27: #{tpu_custom_call.1} parent=23 // pred_region
          %s183 = smul.u32 16, %s21
          %s184 = ssub.s32 34, %s183
          %p185 = scmp.lt.s32.totalorder %s184, 16
          %s186 = scalar_select %p185, %s184, 16
          %s187 = smul.u32 4, %s186
          %s188 = smul.u32 %s187, 5
          %p189 = scmp.lt.s32.totalorder %s20, 1
          %s190 = scalar_select %p189, %s20, 1
          %p191 = scmp.lt.s32.totalorder %s183, 33
          %s192 = scalar_select %p191, %s183, 33
          %s193 = smul.addr %s192, 5
          %s194 = smul.addr %s190, 170
          %s195 = sadd.s32 %s193, %s194
          %s196 = smul.addr %s195, 4
          %s197 = scalar_lea.vmem %s0, %s196
          %s198 = smul.u32 16, %s21
          %s199 = ssub.s32 34, %s198
          %p200 = scmp.lt.s32.totalorder %s199, 16
          %s201 = scalar_select %p200, %s199, 16
          %s202 = smul.u32 4, %s201
          %s203 = smul.u32 %s202, 5
        $region28: #{tpu_custom_call.1} parent=23 // pred_fallthru
          _
        // Predicated region
        $region29: #{tpu_custom_call.1} parent=23 // pred_check
          %p204 = pneg %p79
        $region30: #{tpu_custom_call.1} parent=23 // pred_check_branch
          %206 = sbr.rel (%p204) target = $region32
        $region31: #{tpu_custom_call.1} parent=23 // pred_region
          %s207 = sadd.s32 %s21, 1
          %s208 = smul.u32 %s207, 8
          %s209 = smul.u32 2, %s208
          %p210 = scmp.lt.s32.totalorder %s20, 1
          %s211 = scalar_select %p210, %s20, 1
          %p212 = scmp.lt.s32.totalorder %s209, 33
          %s213 = scalar_select %p212, %s209, 33
          %s214 = smul.addr %s213, 5
          %s215 = smul.addr %s211, 170
          %s216 = sadd.s32 %s214, %s215
          %s217 = smul.addr %s216, 4
          %s218 = scalar_lea.vmem %s1, %s217
          %s219 = sadd.s32 %s21, 1
          %s220 = smul.u32 %s219, 8
          %s221 = smul.u32 2, %s220
        $region32: #{tpu_custom_call.1} parent=23 // pred_fallthru
          _
      $region24: #{tpu_custom_call.1} parent=5 // pred_fallthru
        _
      %p222 = scmp.le.s32.totalorder 1, %s13
      %p223 = scmp.lt.s32.totalorder %s13, 5
      %p224 = pnand %p222, %p223
      %p225 = pneg %p224
      // Predicated region
      $region33: #{tpu_custom_call.1} parent=5 // pred_check
        _
      $region34: #{tpu_custom_call.1} parent=5 // pred_check_branch
        %227 = sbr.rel (%p224) target = $region36
      $region35: #{tpu_custom_call.1} parent=5 // pred_region
        %s228 = ssub.s32 %s13, 1
        %s229 = smul.u32 16, %s23
        %s230 = ssub.s32 34, %s229
        %p231 = scmp.lt.s32.totalorder %s230, 16
        %s232 = scalar_select %p231, %s230, 16
        %s233 = smul.u32 4, %s232
        %s234 = smul.u32 %s233, 5
        %p235 = scmp.lt.s32.totalorder %s22, 1
        %s236 = scalar_select %p235, %s22, 1
        %p237 = scmp.lt.s32.totalorder %s229, 33
        %s238 = scalar_select %p237, %s229, 33
        %s239 = smul.addr %s238, 5
        %s240 = smul.addr %s236, 170
        %s241 = sadd.s32 %s239, %s240
        %s242 = smul.addr %s241, 4
        %s243 = scalar_lea.vmem %s0, %s242
        %p244 = pneg %p53
        %p245 = pneg %p50
        %s246 = sadd.s32 %s23, 1
        %s247 = smul.u32 %s246, 8
        %s248 = smul.u32 2, %s247
        %p249 = scmp.lt.s32.totalorder %s22, 1
        %s250 = scalar_select %p249, %s22, 1
        %p251 = scmp.lt.s32.totalorder %s248, 33
        %s252 = scalar_select %p251, %s248, 33
        %s253 = smul.addr %s252, 5
        %s254 = smul.addr %s250, 170
        %s255 = sadd.s32 %s253, %s254
        %s256 = smul.addr %s255, 4
        %s257 = scalar_lea.vmem %s1, %s256
        %p258 = pneg %p85
        %p259 = pneg %p82
        %p260 = pneg %p106
        %p261 = pneg %p103
        %p262 = pneg %p127
        %p263 = pneg %p124
        %p264 = pneg %p155
        %p265 = pneg %p152
        %s266 = sand.u32 %s142, 1
        %s267 = scalar_lea.sflag [#allocation4], %s266
        %s268 = sand.u32 %s142, 1
        %s269 = smul.addr %s268, 256
        %s270 = scalar_lea.vmem [#allocation3], %s269
        %s271 = smul.u32 16, %s23
        %s272 = ssub.s32 34, %s271
        %p273 = scmp.lt.s32.totalorder %s272, 16
        %s274 = scalar_select %p273, %s272, 16
        %s275 = smul.u32 4, %s274
        %s276 = smul.u32 %s275, 5
        %p277 = scmp.lt.s32.totalorder %s22, 1
        %s278 = scalar_select %p277, %s22, 1
        %p279 = scmp.lt.s32.totalorder %s271, 33
        %s280 = scalar_select %p279, %s271, 33
        %s281 = smul.addr %s280, 5
        %s282 = smul.addr %s278, 170
        %s283 = sadd.s32 %s281, %s282
        %s284 = smul.addr %s283, 4
        %s285 = scalar_lea.vmem %s0, %s284
        %s286 = smul.u32 16, %s23
        %s287 = ssub.s32 34, %s286
        %p288 = scmp.lt.s32.totalorder %s287, 16
        %s289 = scalar_select %p288, %s287, 16
        %s290 = smul.u32 4, %s289
        %s291 = smul.u32 %s290, 5
        %s292 = sadd.s32 %s23, 1
        %s293 = smul.u32 %s292, 8
        %s294 = smul.u32 2, %s293
        %p295 = scmp.lt.s32.totalorder %s22, 1
        %s296 = scalar_select %p295, %s22, 1
        %p297 = scmp.lt.s32.totalorder %s294, 33
        %s298 = scalar_select %p297, %s294, 33
        %s299 = smul.addr %s298, 5
        %s300 = smul.addr %s296, 170
        %s301 = sadd.s32 %s299, %s300
        %s302 = smul.addr %s301, 4
        %s303 = scalar_lea.vmem %s1, %s302
        %s304 = sadd.s32 %s23, 1
        %s305 = smul.u32 %s304, 8
        %s306 = smul.u32 2, %s305
        %s307 = smul.u32 16, %s23
        %v309 = vld [vmem:[%s285] sm:$0xf]
        %v310 = vld [vmem:[%s285 + $0x4] sm:$0xf]
        %v311 = vld [vmem:[%s285 + $0x8] sm:$0xf]
        %v312 = vld [vmem:[%s285 + $0xc] sm:$0xf]
        %v313 = vld [vmem:[%s285 + $0x14] sm:$0xf]
        %v314 = vld [vmem:[%s285 + $0x18] sm:$0xf]
        %v315 = vld [vmem:[%s285 + $0x1c] sm:$0xf]
        %v316 = vld [vmem:[%s285 + $0x20] sm:$0xf]
        %v317 = vld [vmem:[%s285 + $0x28] sm:$0xf]
        %v318 = vld [vmem:[%s285 + $0x2c] sm:$0xf]
        %v319 = vld [vmem:[%s285 + $0x30] sm:$0xf]
        %v320 = vld [vmem:[%s285 + $0x34] sm:$0xf]
        %v321 = vld [vmem:[%s285 + $0x3c] sm:$0xf]
        %v322 = vld [vmem:[%s285 + $0x40] sm:$0xf]
        %v323 = vld [vmem:[%s285 + $0x44] sm:$0xf]
        %v324 = vld [vmem:[%s285 + $0x48] sm:$0xf]
        %v325 = vld [vmem:[%s285 + $0x50] sm:$0xf]
        %v326 = vld [vmem:[%s285 + $0x54] sm:$0xf]
        %v327 = vld [vmem:[%s285 + $0x58] sm:$0xf]
        %v328 = vld [vmem:[%s285 + $0x5c] sm:$0xf]
        %v329 = vld [vmem:[%s285 + $0x64] sm:$0xf]
        %v330 = vld [vmem:[%s285 + $0x68] sm:$0xf]
        %v331 = vld [vmem:[%s285 + $0x6c] sm:$0xf]
        %v332 = vld [vmem:[%s285 + $0x70] sm:$0xf]
        %v333 = vld [vmem:[%s285 + $0x78] sm:$0xf]
        %v334 = vld [vmem:[%s285 + $0x7c] sm:$0xf]
        %v335 = vld [vmem:[%s285 + $0x80] sm:$0xf]
        %v336 = vld [vmem:[%s285 + $0x84] sm:$0xf]
        %v337 = vld [vmem:[%s285 + $0x8c] sm:$0xf]
        %v338 = vld [vmem:[%s285 + $0x90] sm:$0xf]
        %v339 = vld [vmem:[%s285 + $0x94] sm:$0xf]
        %v340 = vld [vmem:[%s285 + $0x98] sm:$0xf]
        %v341 = vld [vmem:[%s285 + $0xa0] sm:$0xf]
        %v342 = vld [vmem:[%s285 + $0xa4] sm:$0xf]
        %v343 = vld [vmem:[%s285 + $0xa8] sm:$0xf]
        %v344 = vld [vmem:[%s285 + $0xac] sm:$0xf]
        %v345 = vld [vmem:[%s285 + $0xb4] sm:$0xf]
        %v346 = vld [vmem:[%s285 + $0xb8] sm:$0xf]
        %v347 = vld [vmem:[%s285 + $0xbc] sm:$0xf]
        %v348 = vld [vmem:[%s285 + $0xc0] sm:$0xf]
        %v349 = vld [vmem:[%s285 + $0xc8] sm:$0xf]
        %v350 = vld [vmem:[%s285 + $0xcc] sm:$0xf]
        %v351 = vld [vmem:[%s285 + $0xd0] sm:$0xf]
        %v352 = vld [vmem:[%s285 + $0xd4] sm:$0xf]
        %v353 = vld [vmem:[%s285 + $0xdc] sm:$0xf]
        %v354 = vld [vmem:[%s285 + $0xe0] sm:$0xf]
        %v355 = vld [vmem:[%s285 + $0xe4] sm:$0xf]
        %v356 = vld [vmem:[%s285 + $0xe8] sm:$0xf]
        %v357 = vld [vmem:[%s285 + $0xf0] sm:$0xf]
        %v358 = vld [vmem:[%s285 + $0xf4] sm:$0xf]
        %v359 = vld [vmem:[%s285 + $0xf8] sm:$0xf]
        %v360 = vld [vmem:[%s285 + $0xfc] sm:$0xf]
        %v361 = vld [vmem:[%s285 + $0x104] sm:$0xf]
        %v362 = vld [vmem:[%s285 + $0x108] sm:$0xf]
        %v363 = vld [vmem:[%s285 + $0x10c] sm:$0xf]
        %v364 = vld [vmem:[%s285 + $0x110] sm:$0xf]
        %v365 = vld [vmem:[%s285 + $0x118] sm:$0xf]
        %v366 = vld [vmem:[%s285 + $0x11c] sm:$0xf]
        %v367 = vld [vmem:[%s285 + $0x120] sm:$0xf]
        %v368 = vld [vmem:[%s285 + $0x124] sm:$0xf]
        %v369 = vld [vmem:[%s285 + $0x12c] sm:$0xf]
        %v370 = vld [vmem:[%s285 + $0x130] sm:$0xf]
        %v371 = vld [vmem:[%s285 + $0x134] sm:$0xf]
        %v372 = vld [vmem:[%s285 + $0x138] sm:$0xf]
        %vm373 = vcmask 60416
        %374 = vst.msk [vmem:[#allocation2] sm:$0xf] %vm373, %v309
        %375 = vst.msk [vmem:[#allocation2 + $0x4] sm:$0xf] %vm373, %v310
        %376 = vst.msk [vmem:[#allocation2 + $0x8] sm:$0xf] %vm373, %v311
        %377 = vst.msk [vmem:[#allocation2 + $0xc] sm:$0xf] %vm373, %v312
        %378 = vst.msk [vmem:[#allocation2 + $0x10] sm:$0xf] %vm373, %v313
        %379 = vst.msk [vmem:[#allocation2 + $0x14] sm:$0xf] %vm373, %v314
        %380 = vst.msk [vmem:[#allocation2 + $0x18] sm:$0xf] %vm373, %v315
        %381 = vst.msk [vmem:[#allocation2 + $0x1c] sm:$0xf] %vm373, %v316
        %382 = vst.msk [vmem:[#allocation2 + $0x20] sm:$0xf] %vm373, %v317
        %383 = vst.msk [vmem:[#allocation2 + $0x24] sm:$0xf] %vm373, %v318
        %384 = vst.msk [vmem:[#allocation2 + $0x28] sm:$0xf] %vm373, %v319
        %385 = vst.msk [vmem:[#allocation2 + $0x2c] sm:$0xf] %vm373, %v320
        %386 = vst.msk [vmem:[#allocation2 + $0x30] sm:$0xf] %vm373, %v321
        %387 = vst.msk [vmem:[#allocation2 + $0x34] sm:$0xf] %vm373, %v322
        %388 = vst.msk [vmem:[#allocation2 + $0x38] sm:$0xf] %vm373, %v323
        %389 = vst.msk [vmem:[#allocation2 + $0x3c] sm:$0xf] %vm373, %v324
        %390 = vst.msk [vmem:[#allocation2 + $0x40] sm:$0xf] %vm373, %v325
        %391 = vst.msk [vmem:[#allocation2 + $0x44] sm:$0xf] %vm373, %v326
        %392 = vst.msk [vmem:[#allocation2 + $0x48] sm:$0xf] %vm373, %v327
        %393 = vst.msk [vmem:[#allocation2 + $0x4c] sm:$0xf] %vm373, %v328
        %394 = vst.msk [vmem:[#allocation2 + $0x50] sm:$0xf] %vm373, %v329
        %395 = vst.msk [vmem:[#allocation2 + $0x54] sm:$0xf] %vm373, %v330
        %396 = vst.msk [vmem:[#allocation2 + $0x58] sm:$0xf] %vm373, %v331
        %397 = vst.msk [vmem:[#allocation2 + $0x5c] sm:$0xf] %vm373, %v332
        %398 = vst.msk [vmem:[#allocation2 + $0x60] sm:$0xf] %vm373, %v333
        %399 = vst.msk [vmem:[#allocation2 + $0x64] sm:$0xf] %vm373, %v334
        %400 = vst.msk [vmem:[#allocation2 + $0x68] sm:$0xf] %vm373, %v335
        %401 = vst.msk [vmem:[#allocation2 + $0x6c] sm:$0xf] %vm373, %v336
        %402 = vst.msk [vmem:[#allocation2 + $0x70] sm:$0xf] %vm373, %v337
        %403 = vst.msk [vmem:[#allocation2 + $0x74] sm:$0xf] %vm373, %v338
        %404 = vst.msk [vmem:[#allocation2 + $0x78] sm:$0xf] %vm373, %v339
        %405 = vst.msk [vmem:[#allocation2 + $0x7c] sm:$0xf] %vm373, %v340
        %406 = vst.msk [vmem:[#allocation2 + $0x80] sm:$0xf] %vm373, %v341
        %407 = vst.msk [vmem:[#allocation2 + $0x84] sm:$0xf] %vm373, %v342
        %408 = vst.msk [vmem:[#allocation2 + $0x88] sm:$0xf] %vm373, %v343
        %409 = vst.msk [vmem:[#allocation2 + $0x8c] sm:$0xf] %vm373, %v344
        %410 = vst.msk [vmem:[#allocation2 + $0x90] sm:$0xf] %vm373, %v345
        %411 = vst.msk [vmem:[#allocation2 + $0x94] sm:$0xf] %vm373, %v346
        %412 = vst.msk [vmem:[#allocation2 + $0x98] sm:$0xf] %vm373, %v347
        %413 = vst.msk [vmem:[#allocation2 + $0x9c] sm:$0xf] %vm373, %v348
        %414 = vst.msk [vmem:[#allocation2 + $0xa0] sm:$0xf] %vm373, %v349
        %415 = vst.msk [vmem:[#allocation2 + $0xa4] sm:$0xf] %vm373, %v350
        %416 = vst.msk [vmem:[#allocation2 + $0xa8] sm:$0xf] %vm373, %v351
        %417 = vst.msk [vmem:[#allocation2 + $0xac] sm:$0xf] %vm373, %v352
        %418 = vst.msk [vmem:[#allocation2 + $0xb0] sm:$0xf] %vm373, %v353
        %419 = vst.msk [vmem:[#allocation2 + $0xb4] sm:$0xf] %vm373, %v354
        %420 = vst.msk [vmem:[#allocation2 + $0xb8] sm:$0xf] %vm373, %v355
        %421 = vst.msk [vmem:[#allocation2 + $0xbc] sm:$0xf] %vm373, %v356
        %422 = vst.msk [vmem:[#allocation2 + $0xc0] sm:$0xf] %vm373, %v357
        %423 = vst.msk [vmem:[#allocation2 + $0xc4] sm:$0xf] %vm373, %v358
        %424 = vst.msk [vmem:[#allocation2 + $0xc8] sm:$0xf] %vm373, %v359
        %425 = vst.msk [vmem:[#allocation2 + $0xcc] sm:$0xf] %vm373, %v360
        %426 = vst.msk [vmem:[#allocation2 + $0xd0] sm:$0xf] %vm373, %v361
        %427 = vst.msk [vmem:[#allocation2 + $0xd4] sm:$0xf] %vm373, %v362
        %428 = vst.msk [vmem:[#allocation2 + $0xd8] sm:$0xf] %vm373, %v363
        %429 = vst.msk [vmem:[#allocation2 + $0xdc] sm:$0xf] %vm373, %v364
        %430 = vst.msk [vmem:[#allocation2 + $0xe0] sm:$0xf] %vm373, %v365
        %431 = vst.msk [vmem:[#allocation2 + $0xe4] sm:$0xf] %vm373, %v366
        %432 = vst.msk [vmem:[#allocation2 + $0xe8] sm:$0xf] %vm373, %v367
        %433 = vst.msk [vmem:[#allocation2 + $0xec] sm:$0xf] %vm373, %v368
        %434 = vst.msk [vmem:[#allocation2 + $0xf0] sm:$0xf] %vm373, %v369
        %435 = vst.msk [vmem:[#allocation2 + $0xf4] sm:$0xf] %vm373, %v370
        %436 = vst.msk [vmem:[#allocation2 + $0xf8] sm:$0xf] %vm373, %v371
        %437 = vst.msk [vmem:[#allocation2 + $0xfc] sm:$0xf] %vm373, %v372
        %v438 = vld [vmem:[%s285] sm:$0xf]
        %v439 = vld [vmem:[%s285 + $0x4] sm:$0xf]
        %v440 = vld [vmem:[%s285 + $0x8] sm:$0xf]
        %v441 = vld [vmem:[%s285 + $0xc] sm:$0xf]
        %v442 = vld [vmem:[%s285 + $0x10] sm:$0x1]
        %v443 = vld [vmem:[%s285 + $0x14] sm:$0xf]
        %v444 = vld [vmem:[%s285 + $0x18] sm:$0xf]
        %v445 = vld [vmem:[%s285 + $0x1c] sm:$0xf]
        %v446 = vld [vmem:[%s285 + $0x20] sm:$0xf]
        %v447 = vld [vmem:[%s285 + $0x24] sm:$0x1]
        %v448 = vld [vmem:[%s285 + $0x28] sm:$0xf]
        %v449 = vld [vmem:[%s285 + $0x2c] sm:$0xf]
        %v450 = vld [vmem:[%s285 + $0x30] sm:$0xf]
        %v451 = vld [vmem:[%s285 + $0x34] sm:$0xf]
        %v452 = vld [vmem:[%s285 + $0x38] sm:$0x1]
        %v453 = vld [vmem:[%s285 + $0x3c] sm:$0xf]
        %v454 = vld [vmem:[%s285 + $0x40] sm:$0xf]
        %v455 = vld [vmem:[%s285 + $0x44] sm:$0xf]
        %v456 = vld [vmem:[%s285 + $0x48] sm:$0xf]
        %v457 = vld [vmem:[%s285 + $0x4c] sm:$0x1]
        %v458 = vld [vmem:[%s285 + $0x50] sm:$0xf]
        %v459 = vld [vmem:[%s285 + $0x54] sm:$0xf]
        %v460 = vld [vmem:[%s285 + $0x58] sm:$0xf]
        %v461 = vld [vmem:[%s285 + $0x5c] sm:$0xf]
        %v462 = vld [vmem:[%s285 + $0x60] sm:$0x1]
        %v463 = vld [vmem:[%s285 + $0x64] sm:$0xf]
        %v464 = vld [vmem:[%s285 + $0x68] sm:$0xf]
        %v465 = vld [vmem:[%s285 + $0x6c] sm:$0xf]
        %v466 = vld [vmem:[%s285 + $0x70] sm:$0xf]
        %v467 = vld [vmem:[%s285 + $0x74] sm:$0x1]
        %v468 = vld [vmem:[%s285 + $0x78] sm:$0xf]
        %v469 = vld [vmem:[%s285 + $0x7c] sm:$0xf]
        %v470 = vld [vmem:[%s285 + $0x80] sm:$0xf]
        %v471 = vld [vmem:[%s285 + $0x84] sm:$0xf]
        %v472 = vld [vmem:[%s285 + $0x88] sm:$0x1]
        %v473 = vld [vmem:[%s285 + $0x8c] sm:$0xf]
        %v474 = vld [vmem:[%s285 + $0x90] sm:$0xf]
        %v475 = vld [vmem:[%s285 + $0x94] sm:$0xf]
        %v476 = vld [vmem:[%s285 + $0x98] sm:$0xf]
        %v477 = vld [vmem:[%s285 + $0x9c] sm:$0x1]
        %v478 = vld [vmem:[%s285 + $0xa0] sm:$0xf]
        %v479 = vld [vmem:[%s285 + $0xa4] sm:$0xf]
        %v480 = vld [vmem:[%s285 + $0xa8] sm:$0xf]
        %v481 = vld [vmem:[%s285 + $0xac] sm:$0xf]
        %v482 = vld [vmem:[%s285 + $0xb0] sm:$0x1]
        %v483 = vld [vmem:[%s285 + $0xb4] sm:$0xf]
        %v484 = vld [vmem:[%s285 + $0xb8] sm:$0xf]
        %v485 = vld [vmem:[%s285 + $0xbc] sm:$0xf]
        %v486 = vld [vmem:[%s285 + $0xc0] sm:$0xf]
        %v487 = vld [vmem:[%s285 + $0xc4] sm:$0x1]
        %v488 = vld [vmem:[%s285 + $0xc8] sm:$0xf]
        %v489 = vld [vmem:[%s285 + $0xcc] sm:$0xf]
        %v490 = vld [vmem:[%s285 + $0xd0] sm:$0xf]
        %v491 = vld [vmem:[%s285 + $0xd4] sm:$0xf]
        %v492 = vld [vmem:[%s285 + $0xd8] sm:$0x1]
        %v493 = vld [vmem:[%s285 + $0xdc] sm:$0xf]
        %v494 = vld [vmem:[%s285 + $0xe0] sm:$0xf]
        %v495 = vld [vmem:[%s285 + $0xe4] sm:$0xf]
        %v496 = vld [vmem:[%s285 + $0xe8] sm:$0xf]
        %v497 = vld [vmem:[%s285 + $0xec] sm:$0x1]
        %v498 = vld [vmem:[%s285 + $0xf0] sm:$0xf]
        %v499 = vld [vmem:[%s285 + $0xf4] sm:$0xf]
        %v500 = vld [vmem:[%s285 + $0xf8] sm:$0xf]
        %v501 = vld [vmem:[%s285 + $0xfc] sm:$0xf]
        %v502 = vld [vmem:[%s285 + $0x100] sm:$0x1]
        %v503 = vld [vmem:[%s285 + $0x104] sm:$0xf]
        %v504 = vld [vmem:[%s285 + $0x108] sm:$0xf]
        %v505 = vld [vmem:[%s285 + $0x10c] sm:$0xf]
        %v506 = vld [vmem:[%s285 + $0x110] sm:$0xf]
        %v507 = vld [vmem:[%s285 + $0x114] sm:$0x1]
        %v508 = vld [vmem:[%s285 + $0x118] sm:$0xf]
        %v509 = vld [vmem:[%s285 + $0x11c] sm:$0xf]
        %v510 = vld [vmem:[%s285 + $0x120] sm:$0xf]
        %v511 = vld [vmem:[%s285 + $0x124] sm:$0xf]
        %v512 = vld [vmem:[%s285 + $0x128] sm:$0x1]
        %v513 = vld [vmem:[%s285 + $0x12c] sm:$0xf]
        %v514 = vld [vmem:[%s285 + $0x130] sm:$0xf]
        %v515 = vld [vmem:[%s285 + $0x134] sm:$0xf]
        %v516 = vld [vmem:[%s285 + $0x138] sm:$0xf]
        %v517 = vld [vmem:[%s285 + $0x13c] sm:$0x1]
        %vm518 = vsmask.f32 3328
        %vm519 = vsmask.f32 7440
        %vm520 = vmor %vm518, %vm519
        %v522 = vshrl.u32 %v438, 16
        %v524 = vrot.slane %v522, 4
        %v525 = vshll.u32 %v438, 16
        %v527 = vrot.slane %v525, 5
        %v528 = vor.u32 %v524, %v527
        %v529 = vrot.slane %v528, 4
        %v531 = vshll.u32 %v439, 16
        %v533 = vrot.slane %v531, 5
        %v534 = vsel %vm520, %v529, %v533
        %v535 = vshrl.u32 %v439, 16
        %v537 = vrot.slane %v535, 4
        %v538 = vor.u32 %v537, %v533
        %v539 = vrot.slane %v538, 4
        %v541 = vshll.u32 %v440, 16
        %v543 = vrot.slane %v541, 5
        %v544 = vsel %vm520, %v539, %v543
        %v545 = vshrl.u32 %v440, 16
        %v547 = vrot.slane %v545, 4
        %v548 = vor.u32 %v547, %v543
        %v549 = vrot.slane %v548, 4
        %v551 = vshll.u32 %v441, 16
        %v553 = vrot.slane %v551, 5
        %v554 = vsel %vm520, %v549, %v553
        %v555 = vshrl.u32 %v441, 16
        %v557 = vrot.slane %v555, 4
        %v558 = vor.u32 %v557, %v553
        %v559 = vrot.slane %v558, 4
        %v561 = vshll.u32 %v442, 16
        %v563 = vrot.slane %v561, 5
        %v564 = vsel %vm520, %v559, %v563
        %v566 = vshrl.u32 %v443, 16
        %v568 = vrot.slane %v566, 4
        %v569 = vshll.u32 %v443, 16
        %v571 = vrot.slane %v569, 5
        %v572 = vor.u32 %v568, %v571
        %v573 = vrot.slane %v572, 4
        %v575 = vshll.u32 %v444, 16
        %v577 = vrot.slane %v575, 5
        %v578 = vsel %vm520, %v573, %v577
        %v579 = vshrl.u32 %v444, 16
        %v581 = vrot.slane %v579, 4
        %v582 = vor.u32 %v581, %v577
        %v583 = vrot.slane %v582, 4
        %v585 = vshll.u32 %v445, 16
        %v587 = vrot.slane %v585, 5
        %v588 = vsel %vm520, %v583, %v587
        %v589 = vshrl.u32 %v445, 16
        %v591 = vrot.slane %v589, 4
        %v592 = vor.u32 %v591, %v587
        %v593 = vrot.slane %v592, 4
        %v595 = vshll.u32 %v446, 16
        %v597 = vrot.slane %v595, 5
        %v598 = vsel %vm520, %v593, %v597
        %v599 = vshrl.u32 %v446, 16
        %v601 = vrot.slane %v599, 4
        %v602 = vor.u32 %v601, %v597
        %v603 = vrot.slane %v602, 4
        %v605 = vshll.u32 %v447, 16
        %v607 = vrot.slane %v605, 5
        %v608 = vsel %vm520, %v603, %v607
        %v610 = vshrl.u32 %v448, 16
        %v612 = vrot.slane %v610, 4
        %v613 = vshll.u32 %v448, 16
        %v615 = vrot.slane %v613, 5
        %v616 = vor.u32 %v612, %v615
        %v617 = vrot.slane %v616, 4
        %v619 = vshll.u32 %v449, 16
        %v621 = vrot.slane %v619, 5
        %v622 = vsel %vm520, %v617, %v621
        %v623 = vshrl.u32 %v449, 16
        %v625 = vrot.slane %v623, 4
        %v626 = vor.u32 %v625, %v621
        %v627 = vrot.slane %v626, 4
        %v629 = vshll.u32 %v450, 16
        %v631 = vrot.slane %v629, 5
        %v632 = vsel %vm520, %v627, %v631
        %v633 = vshrl.u32 %v450, 16
        %v635 = vrot.slane %v633, 4
        %v636 = vor.u32 %v635, %v631
        %v637 = vrot.slane %v636, 4
        %v639 = vshll.u32 %v451, 16
        %v641 = vrot.slane %v639, 5
        %v642 = vsel %vm520, %v637, %v641
        %v643 = vshrl.u32 %v451, 16
        %v645 = vrot.slane %v643, 4
        %v646 = vor.u32 %v645, %v641
        %v647 = vrot.slane %v646, 4
        %v649 = vshll.u32 %v452, 16
        %v651 = vrot.slane %v649, 5
        %v652 = vsel %vm520, %v647, %v651
        %v654 = vshrl.u32 %v453, 16
        %v656 = vrot.slane %v654, 4
        %v657 = vshll.u32 %v453, 16
        %v659 = vrot.slane %v657, 5
        %v660 = vor.u32 %v656, %v659
        %v661 = vrot.slane %v660, 4
        %v663 = vshll.u32 %v454, 16
        %v665 = vrot.slane %v663, 5
        %v666 = vsel %vm520, %v661, %v665
        %v667 = vshrl.u32 %v454, 16
        %v669 = vrot.slane %v667, 4
        %v670 = vor.u32 %v669, %v665
        %v671 = vrot.slane %v670, 4
        %v673 = vshll.u32 %v455, 16
        %v675 = vrot.slane %v673, 5
        %v676 = vsel %vm520, %v671, %v675
        %v677 = vshrl.u32 %v455, 16
        %v679 = vrot.slane %v677, 4
        %v680 = vor.u32 %v679, %v675
        %v681 = vrot.slane %v680, 4
        %v683 = vshll.u32 %v456, 16
        %v685 = vrot.slane %v683, 5
        %v686 = vsel %vm520, %v681, %v685
        %v687 = vshrl.u32 %v456, 16
        %v689 = vrot.slane %v687, 4
        %v690 = vor.u32 %v689, %v685
        %v691 = vrot.slane %v690, 4
        %v693 = vshll.u32 %v457, 16
        %v695 = vrot.slane %v693, 5
        %v696 = vsel %vm520, %v691, %v695
        %v698 = vshrl.u32 %v458, 16
        %v700 = vrot.slane %v698, 4
        %v701 = vshll.u32 %v458, 16
        %v703 = vrot.slane %v701, 5
        %v704 = vor.u32 %v700, %v703
        %v705 = vrot.slane %v704, 4
        %v707 = vshll.u32 %v459, 16
        %v709 = vrot.slane %v707, 5
        %v710 = vsel %vm520, %v705, %v709
        %v711 = vshrl.u32 %v459, 16
        %v713 = vrot.slane %v711, 4
        %v714 = vor.u32 %v713, %v709
        %v715 = vrot.slane %v714, 4
        %v717 = vshll.u32 %v460, 16
        %v719 = vrot.slane %v717, 5
        %v720 = vsel %vm520, %v715, %v719
        %v721 = vshrl.u32 %v460, 16
        %v723 = vrot.slane %v721, 4
        %v724 = vor.u32 %v723, %v719
        %v725 = vrot.slane %v724, 4
        %v727 = vshll.u32 %v461, 16
        %v729 = vrot.slane %v727, 5
        %v730 = vsel %vm520, %v725, %v729
        %v731 = vshrl.u32 %v461, 16
        %v733 = vrot.slane %v731, 4
        %v734 = vor.u32 %v733, %v729
        %v735 = vrot.slane %v734, 4
        %v737 = vshll.u32 %v462, 16
        %v739 = vrot.slane %v737, 5
        %v740 = vsel %vm520, %v735, %v739
        %v742 = vshrl.u32 %v463, 16
        %v744 = vrot.slane %v742, 4
        %v745 = vshll.u32 %v463, 16
        %v747 = vrot.slane %v745, 5
        %v748 = vor.u32 %v744, %v747
        %v749 = vrot.slane %v748, 4
        %v751 = vshll.u32 %v464, 16
        %v753 = vrot.slane %v751, 5
        %v754 = vsel %vm520, %v749, %v753
        %v755 = vshrl.u32 %v464, 16
        %v757 = vrot.slane %v755, 4
        %v758 = vor.u32 %v757, %v753
        %v759 = vrot.slane %v758, 4
        %v761 = vshll.u32 %v465, 16
        %v763 = vrot.slane %v761, 5
        %v764 = vsel %vm520, %v759, %v763
        %v765 = vshrl.u32 %v465, 16
        %v767 = vrot.slane %v765, 4
        %v768 = vor.u32 %v767, %v763
        %v769 = vrot.slane %v768, 4
        %v771 = vshll.u32 %v466, 16
        %v773 = vrot.slane %v771, 5
        %v774 = vsel %vm520, %v769, %v773
        %v775 = vshrl.u32 %v466, 16
        %v777 = vrot.slane %v775, 4
        %v778 = vor.u32 %v777, %v773
        %v779 = vrot.slane %v778, 4
        %v781 = vshll.u32 %v467, 16
        %v783 = vrot.slane %v781, 5
        %v784 = vsel %vm520, %v779, %v783
        %v786 = vshrl.u32 %v468, 16
        %v788 = vrot.slane %v786, 4
        %v789 = vshll.u32 %v468, 16
        %v791 = vrot.slane %v789, 5
        %v792 = vor.u32 %v788, %v791
        %v793 = vrot.slane %v792, 4
        %v795 = vshll.u32 %v469, 16
        %v797 = vrot.slane %v795, 5
        %v798 = vsel %vm520, %v793, %v797
        %v799 = vshrl.u32 %v469, 16
        %v801 = vrot.slane %v799, 4
        %v802 = vor.u32 %v801, %v797
        %v803 = vrot.slane %v802, 4
        %v805 = vshll.u32 %v470, 16
        %v807 = vrot.slane %v805, 5
        %v808 = vsel %vm520, %v803, %v807
        %v809 = vshrl.u32 %v470, 16
        %v811 = vrot.slane %v809, 4
        %v812 = vor.u32 %v811, %v807
        %v813 = vrot.slane %v812, 4
        %v815 = vshll.u32 %v471, 16
        %v817 = vrot.slane %v815, 5
        %v818 = vsel %vm520, %v813, %v817
        %v819 = vshrl.u32 %v471, 16
        %v821 = vrot.slane %v819, 4
        %v822 = vor.u32 %v821, %v817
        %v823 = vrot.slane %v822, 4
        %v825 = vshll.u32 %v472, 16
        %v827 = vrot.slane %v825, 5
        %v828 = vsel %vm520, %v823, %v827
        %v830 = vshrl.u32 %v473, 16
        %v832 = vrot.slane %v830, 4
        %v833 = vshll.u32 %v473, 16
        %v835 = vrot.slane %v833, 5
        %v836 = vor.u32 %v832, %v835
        %v837 = vrot.slane %v836, 4
        %v839 = vshll.u32 %v474, 16
        %v841 = vrot.slane %v839, 5
        %v842 = vsel %vm520, %v837, %v841
        %v843 = vshrl.u32 %v474, 16
        %v845 = vrot.slane %v843, 4
        %v846 = vor.u32 %v845, %v841
        %v847 = vrot.slane %v846, 4
        %v849 = vshll.u32 %v475, 16
        %v851 = vrot.slane %v849, 5
        %v852 = vsel %vm520, %v847, %v851
        %v853 = vshrl.u32 %v475, 16
        %v855 = vrot.slane %v853, 4
        %v856 = vor.u32 %v855, %v851
        %v857 = vrot.slane %v856, 4
        %v859 = vshll.u32 %v476, 16
        %v861 = vrot.slane %v859, 5
        %v862 = vsel %vm520, %v857, %v861
        %v863 = vshrl.u32 %v476, 16
        %v865 = vrot.slane %v863, 4
        %v866 = vor.u32 %v865, %v861
        %v867 = vrot.slane %v866, 4
        %v869 = vshll.u32 %v477, 16
        %v871 = vrot.slane %v869, 5
        %v872 = vsel %vm520, %v867, %v871
        %v874 = vshrl.u32 %v478, 16
        %v876 = vrot.slane %v874, 4
        %v877 = vshll.u32 %v478, 16
        %v879 = vrot.slane %v877, 5
        %v880 = vor.u32 %v876, %v879
        %v881 = vrot.slane %v880, 4
        %v883 = vshll.u32 %v479, 16
        %v885 = vrot.slane %v883, 5
        %v886 = vsel %vm520, %v881, %v885
        %v887 = vshrl.u32 %v479, 16
        %v889 = vrot.slane %v887, 4
        %v890 = vor.u32 %v889, %v885
        %v891 = vrot.slane %v890, 4
        %v893 = vshll.u32 %v480, 16
        %v895 = vrot.slane %v893, 5
        %v896 = vsel %vm520, %v891, %v895
        %v897 = vshrl.u32 %v480, 16
        %v899 = vrot.slane %v897, 4
        %v900 = vor.u32 %v899, %v895
        %v901 = vrot.slane %v900, 4
        %v903 = vshll.u32 %v481, 16
        %v905 = vrot.slane %v903, 5
        %v906 = vsel %vm520, %v901, %v905
        %v907 = vshrl.u32 %v481, 16
        %v909 = vrot.slane %v907, 4
        %v910 = vor.u32 %v909, %v905
        %v911 = vrot.slane %v910, 4
        %v913 = vshll.u32 %v482, 16
        %v915 = vrot.slane %v913, 5
        %v916 = vsel %vm520, %v911, %v915
        %v918 = vshrl.u32 %v483, 16
        %v920 = vrot.slane %v918, 4
        %v921 = vshll.u32 %v483, 16
        %v923 = vrot.slane %v921, 5
        %v924 = vor.u32 %v920, %v923
        %v925 = vrot.slane %v924, 4
        %v927 = vshll.u32 %v484, 16
        %v929 = vrot.slane %v927, 5
        %v930 = vsel %vm520, %v925, %v929
        %v931 = vshrl.u32 %v484, 16
        %v933 = vrot.slane %v931, 4
        %v934 = vor.u32 %v933, %v929
        %v935 = vrot.slane %v934, 4
        %v937 = vshll.u32 %v485, 16
        %v939 = vrot.slane %v937, 5
        %v940 = vsel %vm520, %v935, %v939
        %v941 = vshrl.u32 %v485, 16
        %v943 = vrot.slane %v941, 4
        %v944 = vor.u32 %v943, %v939
        %v945 = vrot.slane %v944, 4
        %v947 = vshll.u32 %v486, 16
        %v949 = vrot.slane %v947, 5
        %v950 = vsel %vm520, %v945, %v949
        %v951 = vshrl.u32 %v486, 16
        %v953 = vrot.slane %v951, 4
        %v954 = vor.u32 %v953, %v949
        %v955 = vrot.slane %v954, 4
        %v957 = vshll.u32 %v487, 16
        %v959 = vrot.slane %v957, 5
        %v960 = vsel %vm520, %v955, %v959
        %v962 = vshrl.u32 %v488, 16
        %v964 = vrot.slane %v962, 4
        %v965 = vshll.u32 %v488, 16
        %v967 = vrot.slane %v965, 5
        %v968 = vor.u32 %v964, %v967
        %v969 = vrot.slane %v968, 4
        %v971 = vshll.u32 %v489, 16
        %v973 = vrot.slane %v971, 5
        %v974 = vsel %vm520, %v969, %v973
        %v975 = vshrl.u32 %v489, 16
        %v977 = vrot.slane %v975, 4
        %v978 = vor.u32 %v977, %v973
        %v979 = vrot.slane %v978, 4
        %v981 = vshll.u32 %v490, 16
        %v983 = vrot.slane %v981, 5
        %v984 = vsel %vm520, %v979, %v983
        %v985 = vshrl.u32 %v490, 16
        %v987 = vrot.slane %v985, 4
        %v988 = vor.u32 %v987, %v983
        %v989 = vrot.slane %v988, 4
        %v991 = vshll.u32 %v491, 16
        %v993 = vrot.slane %v991, 5
        %v994 = vsel %vm520, %v989, %v993
        %v995 = vshrl.u32 %v491, 16
        %v997 = vrot.slane %v995, 4
        %v998 = vor.u32 %v997, %v993
        %v999 = vrot.slane %v998, 4
        %v1001 = vshll.u32 %v492, 16
        %v1003 = vrot.slane %v1001, 5
        %v1004 = vsel %vm520, %v999, %v1003
        %v1006 = vshrl.u32 %v493, 16
        %v1008 = vrot.slane %v1006, 4
        %v1009 = vshll.u32 %v493, 16
        %v1011 = vrot.slane %v1009, 5
        %v1012 = vor.u32 %v1008, %v1011
        %v1013 = vrot.slane %v1012, 4
        %v1015 = vshll.u32 %v494, 16
        %v1017 = vrot.slane %v1015, 5
        %v1018 = vsel %vm520, %v1013, %v1017
        %v1019 = vshrl.u32 %v494, 16
        %v1021 = vrot.slane %v1019, 4
        %v1022 = vor.u32 %v1021, %v1017
        %v1023 = vrot.slane %v1022, 4
        %v1025 = vshll.u32 %v495, 16
        %v1027 = vrot.slane %v1025, 5
        %v1028 = vsel %vm520, %v1023, %v1027
        %v1029 = vshrl.u32 %v495, 16
        %v1031 = vrot.slane %v1029, 4
        %v1032 = vor.u32 %v1031, %v1027
        %v1033 = vrot.slane %v1032, 4
        %v1035 = vshll.u32 %v496, 16
        %v1037 = vrot.slane %v1035, 5
        %v1038 = vsel %vm520, %v1033, %v1037
        %v1039 = vshrl.u32 %v496, 16
        %v1041 = vrot.slane %v1039, 4
        %v1042 = vor.u32 %v1041, %v1037
        %v1043 = vrot.slane %v1042, 4
        %v1045 = vshll.u32 %v497, 16
        %v1047 = vrot.slane %v1045, 5
        %v1048 = vsel %vm520, %v1043, %v1047
        %v1050 = vshrl.u32 %v498, 16
        %v1052 = vrot.slane %v1050, 4
        %v1053 = vshll.u32 %v498, 16
        %v1055 = vrot.slane %v1053, 5
        %v1056 = vor.u32 %v1052, %v1055
        %v1057 = vrot.slane %v1056, 4
        %v1059 = vshll.u32 %v499, 16
        %v1061 = vrot.slane %v1059, 5
        %v1062 = vsel %vm520, %v1057, %v1061
        %v1063 = vshrl.u32 %v499, 16
        %v1065 = vrot.slane %v1063, 4
        %v1066 = vor.u32 %v1065, %v1061
        %v1067 = vrot.slane %v1066, 4
        %v1069 = vshll.u32 %v500, 16
        %v1071 = vrot.slane %v1069, 5
        %v1072 = vsel %vm520, %v1067, %v1071
        %v1073 = vshrl.u32 %v500, 16
        %v1075 = vrot.slane %v1073, 4
        %v1076 = vor.u32 %v1075, %v1071
        %v1077 = vrot.slane %v1076, 4
        %v1079 = vshll.u32 %v501, 16
        %v1081 = vrot.slane %v1079, 5
        %v1082 = vsel %vm520, %v1077, %v1081
        %v1083 = vshrl.u32 %v501, 16
        %v1085 = vrot.slane %v1083, 4
        %v1086 = vor.u32 %v1085, %v1081
        %v1087 = vrot.slane %v1086, 4
        %v1089 = vshll.u32 %v502, 16
        %v1091 = vrot.slane %v1089, 5
        %v1092 = vsel %vm520, %v1087, %v1091
        %v1094 = vshrl.u32 %v503, 16
        %v1096 = vrot.slane %v1094, 4
        %v1097 = vshll.u32 %v503, 16
        %v1099 = vrot.slane %v1097, 5
        %v1100 = vor.u32 %v1096, %v1099
        %v1101 = vrot.slane %v1100, 4
        %v1103 = vshll.u32 %v504, 16
        %v1105 = vrot.slane %v1103, 5
        %v1106 = vsel %vm520, %v1101, %v1105
        %v1107 = vshrl.u32 %v504, 16
        %v1109 = vrot.slane %v1107, 4
        %v1110 = vor.u32 %v1109, %v1105
        %v1111 = vrot.slane %v1110, 4
        %v1113 = vshll.u32 %v505, 16
        %v1115 = vrot.slane %v1113, 5
        %v1116 = vsel %vm520, %v1111, %v1115
        %v1117 = vshrl.u32 %v505, 16
        %v1119 = vrot.slane %v1117, 4
        %v1120 = vor.u32 %v1119, %v1115
        %v1121 = vrot.slane %v1120, 4
        %v1123 = vshll.u32 %v506, 16
        %v1125 = vrot.slane %v1123, 5
        %v1126 = vsel %vm520, %v1121, %v1125
        %v1127 = vshrl.u32 %v506, 16
        %v1129 = vrot.slane %v1127, 4
        %v1130 = vor.u32 %v1129, %v1125
        %v1131 = vrot.slane %v1130, 4
        %v1133 = vshll.u32 %v507, 16
        %v1135 = vrot.slane %v1133, 5
        %v1136 = vsel %vm520, %v1131, %v1135
        %v1138 = vshrl.u32 %v508, 16
        %v1140 = vrot.slane %v1138, 4
        %v1141 = vshll.u32 %v508, 16
        %v1143 = vrot.slane %v1141, 5
        %v1144 = vor.u32 %v1140, %v1143
        %v1145 = vrot.slane %v1144, 4
        %v1147 = vshll.u32 %v509, 16
        %v1149 = vrot.slane %v1147, 5
        %v1150 = vsel %vm520, %v1145, %v1149
        %v1151 = vshrl.u32 %v509, 16
        %v1153 = vrot.slane %v1151, 4
        %v1154 = vor.u32 %v1153, %v1149
        %v1155 = vrot.slane %v1154, 4
        %v1157 = vshll.u32 %v510, 16
        %v1159 = vrot.slane %v1157, 5
        %v1160 = vsel %vm520, %v1155, %v1159
        %v1161 = vshrl.u32 %v510, 16
        %v1163 = vrot.slane %v1161, 4
        %v1164 = vor.u32 %v1163, %v1159
        %v1165 = vrot.slane %v1164, 4
        %v1167 = vshll.u32 %v511, 16
        %v1169 = vrot.slane %v1167, 5
        %v1170 = vsel %vm520, %v1165, %v1169
        %v1171 = vshrl.u32 %v511, 16
        %v1173 = vrot.slane %v1171, 4
        %v1174 = vor.u32 %v1173, %v1169
        %v1175 = vrot.slane %v1174, 4
        %v1177 = vshll.u32 %v512, 16
        %v1179 = vrot.slane %v1177, 5
        %v1180 = vsel %vm520, %v1175, %v1179
        %v1182 = vshrl.u32 %v513, 16
        %v1184 = vrot.slane %v1182, 4
        %v1185 = vshll.u32 %v513, 16
        %v1187 = vrot.slane %v1185, 5
        %v1188 = vor.u32 %v1184, %v1187
        %v1189 = vrot.slane %v1188, 4
        %v1191 = vshll.u32 %v514, 16
        %v1193 = vrot.slane %v1191, 5
        %v1194 = vsel %vm520, %v1189, %v1193
        %v1195 = vshrl.u32 %v514, 16
        %v1197 = vrot.slane %v1195, 4
        %v1198 = vor.u32 %v1197, %v1193
        %v1199 = vrot.slane %v1198, 4
        %v1201 = vshll.u32 %v515, 16
        %v1203 = vrot.slane %v1201, 5
        %v1204 = vsel %vm520, %v1199, %v1203
        %v1205 = vshrl.u32 %v515, 16
        %v1207 = vrot.slane %v1205, 4
        %v1208 = vor.u32 %v1207, %v1203
        %v1209 = vrot.slane %v1208, 4
        %v1211 = vshll.u32 %v516, 16
        %v1213 = vrot.slane %v1211, 5
        %v1214 = vsel %vm520, %v1209, %v1213
        %v1215 = vshrl.u32 %v516, 16
        %v1217 = vrot.slane %v1215, 4
        %v1218 = vor.u32 %v1217, %v1213
        %v1219 = vrot.slane %v1218, 4
        %v1221 = vshll.u32 %v517, 16
        %v1223 = vrot.slane %v1221, 5
        %v1224 = vsel %vm520, %v1219, %v1223
        %1225 = vrot.lane.b32.xlu0 %v534, 8
        %v1226 = vpop.permute.xlu0 %1225
        %1227 = vrot.lane.b32.xlu0 %v544, 8
        %v1228 = vpop.permute.xlu0 %1227
        %1229 = vrot.lane.b32.xlu0 %v554, 8
        %v1230 = vpop.permute.xlu0 %1229
        %1231 = vrot.lane.b32.xlu0 %v564, 8
        %v1232 = vpop.permute.xlu0 %1231
        %1233 = vrot.lane.b32.xlu0 %v578, 8
        %v1234 = vpop.permute.xlu0 %1233
        %1235 = vrot.lane.b32.xlu0 %v588, 8
        %v1236 = vpop.permute.xlu0 %1235
        %1237 = vrot.lane.b32.xlu0 %v598, 8
        %v1238 = vpop.permute.xlu0 %1237
        %1239 = vrot.lane.b32.xlu0 %v608, 8
        %v1240 = vpop.permute.xlu0 %1239
        %1241 = vrot.lane.b32.xlu0 %v622, 8
        %v1242 = vpop.permute.xlu0 %1241
        %1243 = vrot.lane.b32.xlu0 %v632, 8
        %v1244 = vpop.permute.xlu0 %1243
        %1245 = vrot.lane.b32.xlu0 %v642, 8
        %v1246 = vpop.permute.xlu0 %1245
        %1247 = vrot.lane.b32.xlu0 %v652, 8
        %v1248 = vpop.permute.xlu0 %1247
        %1249 = vrot.lane.b32.xlu0 %v666, 8
        %v1250 = vpop.permute.xlu0 %1249
        %1251 = vrot.lane.b32.xlu0 %v676, 8
        %v1252 = vpop.permute.xlu0 %1251
        %1253 = vrot.lane.b32.xlu0 %v686, 8
        %v1254 = vpop.permute.xlu0 %1253
        %1255 = vrot.lane.b32.xlu0 %v696, 8
        %v1256 = vpop.permute.xlu0 %1255
        %1257 = vrot.lane.b32.xlu0 %v710, 8
        %v1258 = vpop.permute.xlu0 %1257
        %1259 = vrot.lane.b32.xlu0 %v720, 8
        %v1260 = vpop.permute.xlu0 %1259
        %1261 = vrot.lane.b32.xlu0 %v730, 8
        %v1262 = vpop.permute.xlu0 %1261
        %1263 = vrot.lane.b32.xlu0 %v740, 8
        %v1264 = vpop.permute.xlu0 %1263
        %1265 = vrot.lane.b32.xlu0 %v754, 8
        %v1266 = vpop.permute.xlu0 %1265
        %1267 = vrot.lane.b32.xlu0 %v764, 8
        %v1268 = vpop.permute.xlu0 %1267
        %1269 = vrot.lane.b32.xlu0 %v774, 8
        %v1270 = vpop.permute.xlu0 %1269
        %1271 = vrot.lane.b32.xlu0 %v784, 8
        %v1272 = vpop.permute.xlu0 %1271
        %1273 = vrot.lane.b32.xlu0 %v798, 8
        %v1274 = vpop.permute.xlu0 %1273
        %1275 = vrot.lane.b32.xlu0 %v808, 8
        %v1276 = vpop.permute.xlu0 %1275
        %1277 = vrot.lane.b32.xlu0 %v818, 8
        %v1278 = vpop.permute.xlu0 %1277
        %1279 = vrot.lane.b32.xlu0 %v828, 8
        %v1280 = vpop.permute.xlu0 %1279
        %1281 = vrot.lane.b32.xlu0 %v842, 8
        %v1282 = vpop.permute.xlu0 %1281
        %1283 = vrot.lane.b32.xlu0 %v852, 8
        %v1284 = vpop.permute.xlu0 %1283
        %1285 = vrot.lane.b32.xlu0 %v862, 8
        %v1286 = vpop.permute.xlu0 %1285
        %1287 = vrot.lane.b32.xlu0 %v872, 8
        %v1288 = vpop.permute.xlu0 %1287
        %1289 = vrot.lane.b32.xlu0 %v886, 8
        %v1290 = vpop.permute.xlu0 %1289
        %1291 = vrot.lane.b32.xlu0 %v896, 8
        %v1292 = vpop.permute.xlu0 %1291
        %1293 = vrot.lane.b32.xlu0 %v906, 8
        %v1294 = vpop.permute.xlu0 %1293
        %1295 = vrot.lane.b32.xlu0 %v916, 8
        %v1296 = vpop.permute.xlu0 %1295
        %1297 = vrot.lane.b32.xlu0 %v930, 8
        %v1298 = vpop.permute.xlu0 %1297
        %1299 = vrot.lane.b32.xlu0 %v940, 8
        %v1300 = vpop.permute.xlu0 %1299
        %1301 = vrot.lane.b32.xlu0 %v950, 8
        %v1302 = vpop.permute.xlu0 %1301
        %1303 = vrot.lane.b32.xlu0 %v960, 8
        %v1304 = vpop.permute.xlu0 %1303
        %1305 = vrot.lane.b32.xlu0 %v974, 8
        %v1306 = vpop.permute.xlu0 %1305
        %1307 = vrot.lane.b32.xlu0 %v984, 8
        %v1308 = vpop.permute.xlu0 %1307
        %1309 = vrot.lane.b32.xlu0 %v994, 8
        %v1310 = vpop.permute.xlu0 %1309
        %1311 = vrot.lane.b32.xlu0 %v1004, 8
        %v1312 = vpop.permute.xlu0 %1311
        %1313 = vrot.lane.b32.xlu0 %v1018, 8
        %v1314 = vpop.permute.xlu0 %1313
        %1315 = vrot.lane.b32.xlu0 %v1028, 8
        %v1316 = vpop.permute.xlu0 %1315
        %1317 = vrot.lane.b32.xlu0 %v1038, 8
        %v1318 = vpop.permute.xlu0 %1317
        %1319 = vrot.lane.b32.xlu0 %v1048, 8
        %v1320 = vpop.permute.xlu0 %1319
        %1321 = vrot.lane.b32.xlu0 %v1062, 8
        %v1322 = vpop.permute.xlu0 %1321
        %1323 = vrot.lane.b32.xlu0 %v1072, 8
        %v1324 = vpop.permute.xlu0 %1323
        %1325 = vrot.lane.b32.xlu0 %v1082, 8
        %v1326 = vpop.permute.xlu0 %1325
        %1327 = vrot.lane.b32.xlu0 %v1092, 8
        %v1328 = vpop.permute.xlu0 %1327
        %1329 = vrot.lane.b32.xlu0 %v1106, 8
        %v1330 = vpop.permute.xlu0 %1329
        %1331 = vrot.lane.b32.xlu0 %v1116, 8
        %v1332 = vpop.permute.xlu0 %1331
        %1333 = vrot.lane.b32.xlu0 %v1126, 8
        %v1334 = vpop.permute.xlu0 %1333
        %1335 = vrot.lane.b32.xlu0 %v1136, 8
        %v1336 = vpop.permute.xlu0 %1335
        %1337 = vrot.lane.b32.xlu0 %v1150, 8
        %v1338 = vpop.permute.xlu0 %1337
        %1339 = vrot.lane.b32.xlu0 %v1160, 8
        %v1340 = vpop.permute.xlu0 %1339
        %1341 = vrot.lane.b32.xlu0 %v1170, 8
        %v1342 = vpop.permute.xlu0 %1341
        %1343 = vrot.lane.b32.xlu0 %v1180, 8
        %v1344 = vpop.permute.xlu0 %1343
        %1345 = vrot.lane.b32.xlu0 %v1194, 8
        %v1346 = vpop.permute.xlu0 %1345
        %1347 = vrot.lane.b32.xlu0 %v1204, 8
        %v1348 = vpop.permute.xlu0 %1347
        %1349 = vrot.lane.b32.xlu0 %v1214, 8
        %v1350 = vpop.permute.xlu0 %1349
        %1351 = vrot.lane.b32.xlu0 %v1224, 8
        %v1352 = vpop.permute.xlu0 %1351
        %vm1417 = vcmask 126016
        %1418 = vst.msk [vmem:[#allocation2] sm:$0xf] %vm1417, %v1226
        %1419 = vst.msk [vmem:[#allocation2 + $0x4] sm:$0xf] %vm1417, %v1228
        %1420 = vst.msk [vmem:[#allocation2 + $0x8] sm:$0xf] %vm1417, %v1230
        %1421 = vst.msk [vmem:[#allocation2 + $0xc] sm:$0xf] %vm1417, %v1232
        %1422 = vst.msk [vmem:[#allocation2 + $0x10] sm:$0xf] %vm1417, %v1234
        %1423 = vst.msk [vmem:[#allocation2 + $0x14] sm:$0xf] %vm1417, %v1236
        %1424 = vst.msk [vmem:[#allocation2 + $0x18] sm:$0xf] %vm1417, %v1238
        %1425 = vst.msk [vmem:[#allocation2 + $0x1c] sm:$0xf] %vm1417, %v1240
        %1426 = vst.msk [vmem:[#allocation2 + $0x20] sm:$0xf] %vm1417, %v1242
        %1427 = vst.msk [vmem:[#allocation2 + $0x24] sm:$0xf] %vm1417, %v1244
        %1428 = vst.msk [vmem:[#allocation2 + $0x28] sm:$0xf] %vm1417, %v1246
        %1429 = vst.msk [vmem:[#allocation2 + $0x2c] sm:$0xf] %vm1417, %v1248
        %1430 = vst.msk [vmem:[#allocation2 + $0x30] sm:$0xf] %vm1417, %v1250
        %1431 = vst.msk [vmem:[#allocation2 + $0x34] sm:$0xf] %vm1417, %v1252
        %1432 = vst.msk [vmem:[#allocation2 + $0x38] sm:$0xf] %vm1417, %v1254
        %1433 = vst.msk [vmem:[#allocation2 + $0x3c] sm:$0xf] %vm1417, %v1256
        %1434 = vst.msk [vmem:[#allocation2 + $0x40] sm:$0xf] %vm1417, %v1258
        %1435 = vst.msk [vmem:[#allocation2 + $0x44] sm:$0xf] %vm1417, %v1260
        %1436 = vst.msk [vmem:[#allocation2 + $0x48] sm:$0xf] %vm1417, %v1262
        %1437 = vst.msk [vmem:[#allocation2 + $0x4c] sm:$0xf] %vm1417, %v1264
        %1438 = vst.msk [vmem:[#allocation2 + $0x50] sm:$0xf] %vm1417, %v1266
        %1439 = vst.msk [vmem:[#allocation2 + $0x54] sm:$0xf] %vm1417, %v1268
        %1440 = vst.msk [vmem:[#allocation2 + $0x58] sm:$0xf] %vm1417, %v1270
        %1441 = vst.msk [vmem:[#allocation2 + $0x5c] sm:$0xf] %vm1417, %v1272
        %1442 = vst.msk [vmem:[#allocation2 + $0x60] sm:$0xf] %vm1417, %v1274
        %1443 = vst.msk [vmem:[#allocation2 + $0x64] sm:$0xf] %vm1417, %v1276
        %1444 = vst.msk [vmem:[#allocation2 + $0x68] sm:$0xf] %vm1417, %v1278
        %1445 = vst.msk [vmem:[#allocation2 + $0x6c] sm:$0xf] %vm1417, %v1280
        %1446 = vst.msk [vmem:[#allocation2 + $0x70] sm:$0xf] %vm1417, %v1282
        %1447 = vst.msk [vmem:[#allocation2 + $0x74] sm:$0xf] %vm1417, %v1284
        %1448 = vst.msk [vmem:[#allocation2 + $0x78] sm:$0xf] %vm1417, %v1286
        %1449 = vst.msk [vmem:[#allocation2 + $0x7c] sm:$0xf] %vm1417, %v1288
        %1450 = vst.msk [vmem:[#allocation2 + $0x80] sm:$0xf] %vm1417, %v1290
        %1451 = vst.msk [vmem:[#allocation2 + $0x84] sm:$0xf] %vm1417, %v1292
        %1452 = vst.msk [vmem:[#allocation2 + $0x88] sm:$0xf] %vm1417, %v1294
        %1453 = vst.msk [vmem:[#allocation2 + $0x8c] sm:$0xf] %vm1417, %v1296
        %1454 = vst.msk [vmem:[#allocation2 + $0x90] sm:$0xf] %vm1417, %v1298
        %1455 = vst.msk [vmem:[#allocation2 + $0x94] sm:$0xf] %vm1417, %v1300
        %1456 = vst.msk [vmem:[#allocation2 + $0x98] sm:$0xf] %vm1417, %v1302
        %1457 = vst.msk [vmem:[#allocation2 + $0x9c] sm:$0xf] %vm1417, %v1304
        %1458 = vst.msk [vmem:[#allocation2 + $0xa0] sm:$0xf] %vm1417, %v1306
        %1459 = vst.msk [vmem:[#allocation2 + $0xa4] sm:$0xf] %vm1417, %v1308
        %1460 = vst.msk [vmem:[#allocation2 + $0xa8] sm:$0xf] %vm1417, %v1310
        %1461 = vst.msk [vmem:[#allocation2 + $0xac] sm:$0xf] %vm1417, %v1312
        %1462 = vst.msk [vmem:[#allocation2 + $0xb0] sm:$0xf] %vm1417, %v1314
        %1463 = vst.msk [vmem:[#allocation2 + $0xb4] sm:$0xf] %vm1417, %v1316
        %1464 = vst.msk [vmem:[#allocation2 + $0xb8] sm:$0xf] %vm1417, %v1318
        %1465 = vst.msk [vmem:[#allocation2 + $0xbc] sm:$0xf] %vm1417, %v1320
        %1466 = vst.msk [vmem:[#allocation2 + $0xc0] sm:$0xf] %vm1417, %v1322
        %1467 = vst.msk [vmem:[#allocation2 + $0xc4] sm:$0xf] %vm1417, %v1324
        %1468 = vst.msk [vmem:[#allocation2 + $0xc8] sm:$0xf] %vm1417, %v1326
        %1469 = vst.msk [vmem:[#allocation2 + $0xcc] sm:$0xf] %vm1417, %v1328
        %1470 = vst.msk [vmem:[#allocation2 + $0xd0] sm:$0xf] %vm1417, %v1330
        %1471 = vst.msk [vmem:[#allocation2 + $0xd4] sm:$0xf] %vm1417, %v1332
        %1472 = vst.msk [vmem:[#allocation2 + $0xd8] sm:$0xf] %vm1417, %v1334
        %1473 = vst.msk [vmem:[#allocation2 + $0xdc] sm:$0xf] %vm1417, %v1336
        %1474 = vst.msk [vmem:[#allocation2 + $0xe0] sm:$0xf] %vm1417, %v1338
        %1475 = vst.msk [vmem:[#allocation2 + $0xe4] sm:$0xf] %vm1417, %v1340
        %1476 = vst.msk [vmem:[#allocation2 + $0xe8] sm:$0xf] %vm1417, %v1342
        %1477 = vst.msk [vmem:[#allocation2 + $0xec] sm:$0xf] %vm1417, %v1344
        %1478 = vst.msk [vmem:[#allocation2 + $0xf0] sm:$0xf] %vm1417, %v1346
        %1479 = vst.msk [vmem:[#allocation2 + $0xf4] sm:$0xf] %vm1417, %v1348
        %1480 = vst.msk [vmem:[#allocation2 + $0xf8] sm:$0xf] %vm1417, %v1350
        %1481 = vst.msk [vmem:[#allocation2 + $0xfc] sm:$0xf] %vm1417, %v1352
        %v1482 = vld [vmem:[%s285] sm:$0xe]
        %v1483 = vld [vmem:[%s285 + $0x4] sm:$0xf]
        %v1484 = vld [vmem:[%s285 + $0x8] sm:$0xf]
        %v1485 = vld [vmem:[%s285 + $0xc] sm:$0xf]
        %v1486 = vld [vmem:[%s285 + $0x10] sm:$0x1]
        %v1487 = vld [vmem:[%s285 + $0x14] sm:$0xe]
        %v1488 = vld [vmem:[%s285 + $0x18] sm:$0xf]
        %v1489 = vld [vmem:[%s285 + $0x1c] sm:$0xf]
        %v1490 = vld [vmem:[%s285 + $0x20] sm:$0xf]
        %v1491 = vld [vmem:[%s285 + $0x24] sm:$0x1]
        %v1492 = vld [vmem:[%s285 + $0x28] sm:$0xe]
        %v1493 = vld [vmem:[%s285 + $0x2c] sm:$0xf]
        %v1494 = vld [vmem:[%s285 + $0x30] sm:$0xf]
        %v1495 = vld [vmem:[%s285 + $0x34] sm:$0xf]
        %v1496 = vld [vmem:[%s285 + $0x38] sm:$0x1]
        %v1497 = vld [vmem:[%s285 + $0x3c] sm:$0xe]
        %v1498 = vld [vmem:[%s285 + $0x40] sm:$0xf]
        %v1499 = vld [vmem:[%s285 + $0x44] sm:$0xf]
        %v1500 = vld [vmem:[%s285 + $0x48] sm:$0xf]
        %v1501 = vld [vmem:[%s285 + $0x4c] sm:$0x1]
        %v1502 = vld [vmem:[%s285 + $0x50] sm:$0xe]
        %v1503 = vld [vmem:[%s285 + $0x54] sm:$0xf]
        %v1504 = vld [vmem:[%s285 + $0x58] sm:$0xf]
        %v1505 = vld [vmem:[%s285 + $0x5c] sm:$0xf]
        %v1506 = vld [vmem:[%s285 + $0x60] sm:$0x1]
        %v1507 = vld [vmem:[%s285 + $0x64] sm:$0xe]
        %v1508 = vld [vmem:[%s285 + $0x68] sm:$0xf]
        %v1509 = vld [vmem:[%s285 + $0x6c] sm:$0xf]
        %v1510 = vld [vmem:[%s285 + $0x70] sm:$0xf]
        %v1511 = vld [vmem:[%s285 + $0x74] sm:$0x1]
        %v1512 = vld [vmem:[%s285 + $0x78] sm:$0xe]
        %v1513 = vld [vmem:[%s285 + $0x7c] sm:$0xf]
        %v1514 = vld [vmem:[%s285 + $0x80] sm:$0xf]
        %v1515 = vld [vmem:[%s285 + $0x84] sm:$0xf]
        %v1516 = vld [vmem:[%s285 + $0x88] sm:$0x1]
        %v1517 = vld [vmem:[%s285 + $0x8c] sm:$0xe]
        %v1518 = vld [vmem:[%s285 + $0x90] sm:$0xf]
        %v1519 = vld [vmem:[%s285 + $0x94] sm:$0xf]
        %v1520 = vld [vmem:[%s285 + $0x98] sm:$0xf]
        %v1521 = vld [vmem:[%s285 + $0x9c] sm:$0x1]
        %v1522 = vld [vmem:[%s285 + $0xa0] sm:$0xe]
        %v1523 = vld [vmem:[%s285 + $0xa4] sm:$0xf]
        %v1524 = vld [vmem:[%s285 + $0xa8] sm:$0xf]
        %v1525 = vld [vmem:[%s285 + $0xac] sm:$0xf]
        %v1526 = vld [vmem:[%s285 + $0xb0] sm:$0x1]
        %v1527 = vld [vmem:[%s285 + $0xb4] sm:$0xe]
        %v1528 = vld [vmem:[%s285 + $0xb8] sm:$0xf]
        %v1529 = vld [vmem:[%s285 + $0xbc] sm:$0xf]
        %v1530 = vld [vmem:[%s285 + $0xc0] sm:$0xf]
        %v1531 = vld [vmem:[%s285 + $0xc4] sm:$0x1]
        %v1532 = vld [vmem:[%s285 + $0xc8] sm:$0xe]
        %v1533 = vld [vmem:[%s285 + $0xcc] sm:$0xf]
        %v1534 = vld [vmem:[%s285 + $0xd0] sm:$0xf]
        %v1535 = vld [vmem:[%s285 + $0xd4] sm:$0xf]
        %v1536 = vld [vmem:[%s285 + $0xd8] sm:$0x1]
        %v1537 = vld [vmem:[%s285 + $0xdc] sm:$0xe]
        %v1538 = vld [vmem:[%s285 + $0xe0] sm:$0xf]
        %v1539 = vld [vmem:[%s285 + $0xe4] sm:$0xf]
        %v1540 = vld [vmem:[%s285 + $0xe8] sm:$0xf]
        %v1541 = vld [vmem:[%s285 + $0xec] sm:$0x1]
        %v1542 = vld [vmem:[%s285 + $0xf0] sm:$0xe]
        %v1543 = vld [vmem:[%s285 + $0xf4] sm:$0xf]
        %v1544 = vld [vmem:[%s285 + $0xf8] sm:$0xf]
        %v1545 = vld [vmem:[%s285 + $0xfc] sm:$0xf]
        %v1546 = vld [vmem:[%s285 + $0x100] sm:$0x1]
        %v1547 = vld [vmem:[%s285 + $0x104] sm:$0xe]
        %v1548 = vld [vmem:[%s285 + $0x108] sm:$0xf]
        %v1549 = vld [vmem:[%s285 + $0x10c] sm:$0xf]
        %v1550 = vld [vmem:[%s285 + $0x110] sm:$0xf]
        %v1551 = vld [vmem:[%s285 + $0x114] sm:$0x1]
        %v1552 = vld [vmem:[%s285 + $0x118] sm:$0xe]
        %v1553 = vld [vmem:[%s285 + $0x11c] sm:$0xf]
        %v1554 = vld [vmem:[%s285 + $0x120] sm:$0xf]
        %v1555 = vld [vmem:[%s285 + $0x124] sm:$0xf]
        %v1556 = vld [vmem:[%s285 + $0x128] sm:$0x1]
        %v1557 = vld [vmem:[%s285 + $0x12c] sm:$0xe]
        %v1558 = vld [vmem:[%s285 + $0x130] sm:$0xf]
        %v1559 = vld [vmem:[%s285 + $0x134] sm:$0xf]
        %v1560 = vld [vmem:[%s285 + $0x138] sm:$0xf]
        %v1561 = vld [vmem:[%s285 + $0x13c] sm:$0x1]
        %vm1642 = vcmask 1042432
        %vm1643 = vcmask 1046532
        %vm1644 = vmor %vm1642, %vm1643
        %v1645 = vrot.slane %v1482, 5
        %v1646 = vrot.slane %v1645, 4
        %v1647 = vrot.slane %v1483, 5
        %v1648 = vsel %vm1644, %v1646, %v1647
        %v1649 = vrot.slane %v1647, 4
        %v1650 = vrot.slane %v1484, 5
        %v1651 = vsel %vm1644, %v1649, %v1650
        %v1652 = vrot.slane %v1650, 4
        %v1653 = vrot.slane %v1485, 5
        %v1654 = vsel %vm1644, %v1652, %v1653
        %v1655 = vrot.slane %v1653, 4
        %v1656 = vrot.slane %v1486, 5
        %v1657 = vsel %vm1644, %v1655, %v1656
        %v1658 = vrot.slane %v1487, 5
        %v1659 = vrot.slane %v1658, 4
        %v1660 = vrot.slane %v1488, 5
        %v1661 = vsel %vm1644, %v1659, %v1660
        %v1662 = vrot.slane %v1660, 4
        %v1663 = vrot.slane %v1489, 5
        %v1664 = vsel %vm1644, %v1662, %v1663
        %v1665 = vrot.slane %v1663, 4
        %v1666 = vrot.slane %v1490, 5
        %v1667 = vsel %vm1644, %v1665, %v1666
        %v1668 = vrot.slane %v1666, 4
        %v1669 = vrot.slane %v1491, 5
        %v1670 = vsel %vm1644, %v1668, %v1669
        %v1671 = vrot.slane %v1492, 5
        %v1672 = vrot.slane %v1671, 4
        %v1673 = vrot.slane %v1493, 5
        %v1674 = vsel %vm1644, %v1672, %v1673
        %v1675 = vrot.slane %v1673, 4
        %v1676 = vrot.slane %v1494, 5
        %v1677 = vsel %vm1644, %v1675, %v1676
        %v1678 = vrot.slane %v1676, 4
        %v1679 = vrot.slane %v1495, 5
        %v1680 = vsel %vm1644, %v1678, %v1679
        %v1681 = vrot.slane %v1679, 4
        %v1682 = vrot.slane %v1496, 5
        %v1683 = vsel %vm1644, %v1681, %v1682
        %v1684 = vrot.slane %v1497, 5
        %v1685 = vrot.slane %v1684, 4
        %v1686 = vrot.slane %v1498, 5
        %v1687 = vsel %vm1644, %v1685, %v1686
        %v1688 = vrot.slane %v1686, 4
        %v1689 = vrot.slane %v1499, 5
        %v1690 = vsel %vm1644, %v1688, %v1689
        %v1691 = vrot.slane %v1689, 4
        %v1692 = vrot.slane %v1500, 5
        %v1693 = vsel %vm1644, %v1691, %v1692
        %v1694 = vrot.slane %v1692, 4
        %v1695 = vrot.slane %v1501, 5
        %v1696 = vsel %vm1644, %v1694, %v1695
        %v1697 = vrot.slane %v1502, 5
        %v1698 = vrot.slane %v1697, 4
        %v1699 = vrot.slane %v1503, 5
        %v1700 = vsel %vm1644, %v1698, %v1699
        %v1701 = vrot.slane %v1699, 4
        %v1702 = vrot.slane %v1504, 5
        %v1703 = vsel %vm1644, %v1701, %v1702
        %v1704 = vrot.slane %v1702, 4
        %v1705 = vrot.slane %v1505, 5
        %v1706 = vsel %vm1644, %v1704, %v1705
        %v1707 = vrot.slane %v1705, 4
        %v1708 = vrot.slane %v1506, 5
        %v1709 = vsel %vm1644, %v1707, %v1708
        %v1710 = vrot.slane %v1507, 5
        %v1711 = vrot.slane %v1710, 4
        %v1712 = vrot.slane %v1508, 5
        %v1713 = vsel %vm1644, %v1711, %v1712
        %v1714 = vrot.slane %v1712, 4
        %v1715 = vrot.slane %v1509, 5
        %v1716 = vsel %vm1644, %v1714, %v1715
        %v1717 = vrot.slane %v1715, 4
        %v1718 = vrot.slane %v1510, 5
        %v1719 = vsel %vm1644, %v1717, %v1718
        %v1720 = vrot.slane %v1718, 4
        %v1721 = vrot.slane %v1511, 5
        %v1722 = vsel %vm1644, %v1720, %v1721
        %v1723 = vrot.slane %v1512, 5
        %v1724 = vrot.slane %v1723, 4
        %v1725 = vrot.slane %v1513, 5
        %v1726 = vsel %vm1644, %v1724, %v1725
        %v1727 = vrot.slane %v1725, 4
        %v1728 = vrot.slane %v1514, 5
        %v1729 = vsel %vm1644, %v1727, %v1728
        %v1730 = vrot.slane %v1728, 4
        %v1731 = vrot.slane %v1515, 5
        %v1732 = vsel %vm1644, %v1730, %v1731
        %v1733 = vrot.slane %v1731, 4
        %v1734 = vrot.slane %v1516, 5
        %v1735 = vsel %vm1644, %v1733, %v1734
        %v1736 = vrot.slane %v1517, 5
        %v1737 = vrot.slane %v1736, 4
        %v1738 = vrot.slane %v1518, 5
        %v1739 = vsel %vm1644, %v1737, %v1738
        %v1740 = vrot.slane %v1738, 4
        %v1741 = vrot.slane %v1519, 5
        %v1742 = vsel %vm1644, %v1740, %v1741
        %v1743 = vrot.slane %v1741, 4
        %v1744 = vrot.slane %v1520, 5
        %v1745 = vsel %vm1644, %v1743, %v1744
        %v1746 = vrot.slane %v1744, 4
        %v1747 = vrot.slane %v1521, 5
        %v1748 = vsel %vm1644, %v1746, %v1747
        %v1749 = vrot.slane %v1522, 5
        %v1750 = vrot.slane %v1749, 4
        %v1751 = vrot.slane %v1523, 5
        %v1752 = vsel %vm1644, %v1750, %v1751
        %v1753 = vrot.slane %v1751, 4
        %v1754 = vrot.slane %v1524, 5
        %v1755 = vsel %vm1644, %v1753, %v1754
        %v1756 = vrot.slane %v1754, 4
        %v1757 = vrot.slane %v1525, 5
        %v1758 = vsel %vm1644, %v1756, %v1757
        %v1759 = vrot.slane %v1757, 4
        %v1760 = vrot.slane %v1526, 5
        %v1761 = vsel %vm1644, %v1759, %v1760
        %v1762 = vrot.slane %v1527, 5
        %v1763 = vrot.slane %v1762, 4
        %v1764 = vrot.slane %v1528, 5
        %v1765 = vsel %vm1644, %v1763, %v1764
        %v1766 = vrot.slane %v1764, 4
        %v1767 = vrot.slane %v1529, 5
        %v1768 = vsel %vm1644, %v1766, %v1767
        %v1769 = vrot.slane %v1767, 4
        %v1770 = vrot.slane %v1530, 5
        %v1771 = vsel %vm1644, %v1769, %v1770
        %v1772 = vrot.slane %v1770, 4
        %v1773 = vrot.slane %v1531, 5
        %v1774 = vsel %vm1644, %v1772, %v1773
        %v1775 = vrot.slane %v1532, 5
        %v1776 = vrot.slane %v1775, 4
        %v1777 = vrot.slane %v1533, 5
        %v1778 = vsel %vm1644, %v1776, %v1777
        %v1779 = vrot.slane %v1777, 4
        %v1780 = vrot.slane %v1534, 5
        %v1781 = vsel %vm1644, %v1779, %v1780
        %v1782 = vrot.slane %v1780, 4
        %v1783 = vrot.slane %v1535, 5
        %v1784 = vsel %vm1644, %v1782, %v1783
        %v1785 = vrot.slane %v1783, 4
        %v1786 = vrot.slane %v1536, 5
        %v1787 = vsel %vm1644, %v1785, %v1786
        %v1788 = vrot.slane %v1537, 5
        %v1789 = vrot.slane %v1788, 4
        %v1790 = vrot.slane %v1538, 5
        %v1791 = vsel %vm1644, %v1789, %v1790
        %v1792 = vrot.slane %v1790, 4
        %v1793 = vrot.slane %v1539, 5
        %v1794 = vsel %vm1644, %v1792, %v1793
        %v1795 = vrot.slane %v1793, 4
        %v1796 = vrot.slane %v1540, 5
        %v1797 = vsel %vm1644, %v1795, %v1796
        %v1798 = vrot.slane %v1796, 4
        %v1799 = vrot.slane %v1541, 5
        %v1800 = vsel %vm1644, %v1798, %v1799
        %v1801 = vrot.slane %v1542, 5
        %v1802 = vrot.slane %v1801, 4
        %v1803 = vrot.slane %v1543, 5
        %v1804 = vsel %vm1644, %v1802, %v1803
        %v1805 = vrot.slane %v1803, 4
        %v1806 = vrot.slane %v1544, 5
        %v1807 = vsel %vm1644, %v1805, %v1806
        %v1808 = vrot.slane %v1806, 4
        %v1809 = vrot.slane %v1545, 5
        %v1810 = vsel %vm1644, %v1808, %v1809
        %v1811 = vrot.slane %v1809, 4
        %v1812 = vrot.slane %v1546, 5
        %v1813 = vsel %vm1644, %v1811, %v1812
        %v1814 = vrot.slane %v1547, 5
        %v1815 = vrot.slane %v1814, 4
        %v1816 = vrot.slane %v1548, 5
        %v1817 = vsel %vm1644, %v1815, %v1816
        %v1818 = vrot.slane %v1816, 4
        %v1819 = vrot.slane %v1549, 5
        %v1820 = vsel %vm1644, %v1818, %v1819
        %v1821 = vrot.slane %v1819, 4
        %v1822 = vrot.slane %v1550, 5
        %v1823 = vsel %vm1644, %v1821, %v1822
        %v1824 = vrot.slane %v1822, 4
        %v1825 = vrot.slane %v1551, 5
        %v1826 = vsel %vm1644, %v1824, %v1825
        %v1827 = vrot.slane %v1552, 5
        %v1828 = vrot.slane %v1827, 4
        %v1829 = vrot.slane %v1553, 5
        %v1830 = vsel %vm1644, %v1828, %v1829
        %v1831 = vrot.slane %v1829, 4
        %v1832 = vrot.slane %v1554, 5
        %v1833 = vsel %vm1644, %v1831, %v1832
        %v1834 = vrot.slane %v1832, 4
        %v1835 = vrot.slane %v1555, 5
        %v1836 = vsel %vm1644, %v1834, %v1835
        %v1837 = vrot.slane %v1835, 4
        %v1838 = vrot.slane %v1556, 5
        %v1839 = vsel %vm1644, %v1837, %v1838
        %v1840 = vrot.slane %v1557, 5
        %v1841 = vrot.slane %v1840, 4
        %v1842 = vrot.slane %v1558, 5
        %v1843 = vsel %vm1644, %v1841, %v1842
        %v1844 = vrot.slane %v1842, 4
        %v1845 = vrot.slane %v1559, 5
        %v1846 = vsel %vm1644, %v1844, %v1845
        %v1847 = vrot.slane %v1845, 4
        %v1848 = vrot.slane %v1560, 5
        %v1849 = vsel %vm1644, %v1847, %v1848
        %v1850 = vrot.slane %v1848, 4
        %v1851 = vrot.slane %v1561, 5
        %v1852 = vsel %vm1644, %v1850, %v1851
        %1853 = vrot.lane.b32.xlu0 %v1648, 16
        %v1854 = vpop.permute.xlu0 %1853
        %1855 = vrot.lane.b32.xlu0 %v1651, 16
        %v1856 = vpop.permute.xlu0 %1855
        %1857 = vrot.lane.b32.xlu0 %v1654, 16
        %v1858 = vpop.permute.xlu0 %1857
        %1859 = vrot.lane.b32.xlu0 %v1657, 16
        %v1860 = vpop.permute.xlu0 %1859
        %1861 = vrot.lane.b32.xlu0 %v1661, 16
        %v1862 = vpop.permute.xlu0 %1861
        %1863 = vrot.lane.b32.xlu0 %v1664, 16
        %v1864 = vpop.permute.xlu0 %1863
        %1865 = vrot.lane.b32.xlu0 %v1667, 16
        %v1866 = vpop.permute.xlu0 %1865
        %1867 = vrot.lane.b32.xlu0 %v1670, 16
        %v1868 = vpop.permute.xlu0 %1867
        %1869 = vrot.lane.b32.xlu0 %v1674, 16
        %v1870 = vpop.permute.xlu0 %1869
        %1871 = vrot.lane.b32.xlu0 %v1677, 16
        %v1872 = vpop.permute.xlu0 %1871
        %1873 = vrot.lane.b32.xlu0 %v1680, 16
        %v1874 = vpop.permute.xlu0 %1873
        %1875 = vrot.lane.b32.xlu0 %v1683, 16
        %v1876 = vpop.permute.xlu0 %1875
        %1877 = vrot.lane.b32.xlu0 %v1687, 16
        %v1878 = vpop.permute.xlu0 %1877
        %1879 = vrot.lane.b32.xlu0 %v1690, 16
        %v1880 = vpop.permute.xlu0 %1879
        %1881 = vrot.lane.b32.xlu0 %v1693, 16
        %v1882 = vpop.permute.xlu0 %1881
        %1883 = vrot.lane.b32.xlu0 %v1696, 16
        %v1884 = vpop.permute.xlu0 %1883
        %1885 = vrot.lane.b32.xlu0 %v1700, 16
        %v1886 = vpop.permute.xlu0 %1885
        %1887 = vrot.lane.b32.xlu0 %v1703, 16
        %v1888 = vpop.permute.xlu0 %1887
        %1889 = vrot.lane.b32.xlu0 %v1706, 16
        %v1890 = vpop.permute.xlu0 %1889
        %1891 = vrot.lane.b32.xlu0 %v1709, 16
        %v1892 = vpop.permute.xlu0 %1891
        %1893 = vrot.lane.b32.xlu0 %v1713, 16
        %v1894 = vpop.permute.xlu0 %1893
        %1895 = vrot.lane.b32.xlu0 %v1716, 16
        %v1896 = vpop.permute.xlu0 %1895
        %1897 = vrot.lane.b32.xlu0 %v1719, 16
        %v1898 = vpop.permute.xlu0 %1897
        %1899 = vrot.lane.b32.xlu0 %v1722, 16
        %v1900 = vpop.permute.xlu0 %1899
        %1901 = vrot.lane.b32.xlu0 %v1726, 16
        %v1902 = vpop.permute.xlu0 %1901
        %1903 = vrot.lane.b32.xlu0 %v1729, 16
        %v1904 = vpop.permute.xlu0 %1903
        %1905 = vrot.lane.b32.xlu0 %v1732, 16
        %v1906 = vpop.permute.xlu0 %1905
        %1907 = vrot.lane.b32.xlu0 %v1735, 16
        %v1908 = vpop.permute.xlu0 %1907
        %1909 = vrot.lane.b32.xlu0 %v1739, 16
        %v1910 = vpop.permute.xlu0 %1909
        %1911 = vrot.lane.b32.xlu0 %v1742, 16
        %v1912 = vpop.permute.xlu0 %1911
        %1913 = vrot.lane.b32.xlu0 %v1745, 16
        %v1914 = vpop.permute.xlu0 %1913
        %1915 = vrot.lane.b32.xlu0 %v1748, 16
        %v1916 = vpop.permute.xlu0 %1915
        %1917 = vrot.lane.b32.xlu0 %v1752, 16
        %v1918 = vpop.permute.xlu0 %1917
        %1919 = vrot.lane.b32.xlu0 %v1755, 16
        %v1920 = vpop.permute.xlu0 %1919
        %1921 = vrot.lane.b32.xlu0 %v1758, 16
        %v1922 = vpop.permute.xlu0 %1921
        %1923 = vrot.lane.b32.xlu0 %v1761, 16
        %v1924 = vpop.permute.xlu0 %1923
        %1925 = vrot.lane.b32.xlu0 %v1765, 16
        %v1926 = vpop.permute.xlu0 %1925
        %1927 = vrot.lane.b32.xlu0 %v1768, 16
        %v1928 = vpop.permute.xlu0 %1927
        %1929 = vrot.lane.b32.xlu0 %v1771, 16
        %v1930 = vpop.permute.xlu0 %1929
        %1931 = vrot.lane.b32.xlu0 %v1774, 16
        %v1932 = vpop.permute.xlu0 %1931
        %1933 = vrot.lane.b32.xlu0 %v1778, 16
        %v1934 = vpop.permute.xlu0 %1933
        %1935 = vrot.lane.b32.xlu0 %v1781, 16
        %v1936 = vpop.permute.xlu0 %1935
        %1937 = vrot.lane.b32.xlu0 %v1784, 16
        %v1938 = vpop.permute.xlu0 %1937
        %1939 = vrot.lane.b32.xlu0 %v1787, 16
        %v1940 = vpop.permute.xlu0 %1939
        %1941 = vrot.lane.b32.xlu0 %v1791, 16
        %v1942 = vpop.permute.xlu0 %1941
        %1943 = vrot.lane.b32.xlu0 %v1794, 16
        %v1944 = vpop.permute.xlu0 %1943
        %1945 = vrot.lane.b32.xlu0 %v1797, 16
        %v1946 = vpop.permute.xlu0 %1945
        %1947 = vrot.lane.b32.xlu0 %v1800, 16
        %v1948 = vpop.permute.xlu0 %1947
        %1949 = vrot.lane.b32.xlu0 %v1804, 16
        %v1950 = vpop.permute.xlu0 %1949
        %1951 = vrot.lane.b32.xlu0 %v1807, 16
        %v1952 = vpop.permute.xlu0 %1951
        %1953 = vrot.lane.b32.xlu0 %v1810, 16
        %v1954 = vpop.permute.xlu0 %1953
        %1955 = vrot.lane.b32.xlu0 %v1813, 16
        %v1956 = vpop.permute.xlu0 %1955
        %1957 = vrot.lane.b32.xlu0 %v1817, 16
        %v1958 = vpop.permute.xlu0 %1957
        %1959 = vrot.lane.b32.xlu0 %v1820, 16
        %v1960 = vpop.permute.xlu0 %1959
        %1961 = vrot.lane.b32.xlu0 %v1823, 16
        %v1962 = vpop.permute.xlu0 %1961
        %1963 = vrot.lane.b32.xlu0 %v1826, 16
        %v1964 = vpop.permute.xlu0 %1963
        %1965 = vrot.lane.b32.xlu0 %v1830, 16
        %v1966 = vpop.permute.xlu0 %1965
        %1967 = vrot.lane.b32.xlu0 %v1833, 16
        %v1968 = vpop.permute.xlu0 %1967
        %1969 = vrot.lane.b32.xlu0 %v1836, 16
        %v1970 = vpop.permute.xlu0 %1969
        %1971 = vrot.lane.b32.xlu0 %v1839, 16
        %v1972 = vpop.permute.xlu0 %1971
        %1973 = vrot.lane.b32.xlu0 %v1843, 16
        %v1974 = vpop.permute.xlu0 %1973
        %1975 = vrot.lane.b32.xlu0 %v1846, 16
        %v1976 = vpop.permute.xlu0 %1975
        %1977 = vrot.lane.b32.xlu0 %v1849, 16
        %v1978 = vpop.permute.xlu0 %1977
        %1979 = vrot.lane.b32.xlu0 %v1852, 16
        %v1980 = vpop.permute.xlu0 %1979
        %vm2045 = vcmask 191616
        %2046 = vst.msk [vmem:[#allocation2] sm:$0xf] %vm2045, %v1854
        %2047 = vst.msk [vmem:[#allocation2 + $0x4] sm:$0xf] %vm2045, %v1856
        %2048 = vst.msk [vmem:[#allocation2 + $0x8] sm:$0xf] %vm2045, %v1858
        %2049 = vst.msk [vmem:[#allocation2 + $0xc] sm:$0xf] %vm2045, %v1860
        %2050 = vst.msk [vmem:[#allocation2 + $0x10] sm:$0xf] %vm2045, %v1862
        %2051 = vst.msk [vmem:[#allocation2 + $0x14] sm:$0xf] %vm2045, %v1864
        %2052 = vst.msk [vmem:[#allocation2 + $0x18] sm:$0xf] %vm2045, %v1866
        %2053 = vst.msk [vmem:[#allocation2 + $0x1c] sm:$0xf] %vm2045, %v1868
        %2054 = vst.msk [vmem:[#allocation2 + $0x20] sm:$0xf] %vm2045, %v1870
        %2055 = vst.msk [vmem:[#allocation2 + $0x24] sm:$0xf] %vm2045, %v1872
        %2056 = vst.msk [vmem:[#allocation2 + $0x28] sm:$0xf] %vm2045, %v1874
        %2057 = vst.msk [vmem:[#allocation2 + $0x2c] sm:$0xf] %vm2045, %v1876
        %2058 = vst.msk [vmem:[#allocation2 + $0x30] sm:$0xf] %vm2045, %v1878
        %2059 = vst.msk [vmem:[#allocation2 + $0x34] sm:$0xf] %vm2045, %v1880
        %2060 = vst.msk [vmem:[#allocation2 + $0x38] sm:$0xf] %vm2045, %v1882
        %2061 = vst.msk [vmem:[#allocation2 + $0x3c] sm:$0xf] %vm2045, %v1884
        %2062 = vst.msk [vmem:[#allocation2 + $0x40] sm:$0xf] %vm2045, %v1886
        %2063 = vst.msk [vmem:[#allocation2 + $0x44] sm:$0xf] %vm2045, %v1888
        %2064 = vst.msk [vmem:[#allocation2 + $0x48] sm:$0xf] %vm2045, %v1890
        %2065 = vst.msk [vmem:[#allocation2 + $0x4c] sm:$0xf] %vm2045, %v1892
        %2066 = vst.msk [vmem:[#allocation2 + $0x50] sm:$0xf] %vm2045, %v1894
        %2067 = vst.msk [vmem:[#allocation2 + $0x54] sm:$0xf] %vm2045, %v1896
        %2068 = vst.msk [vmem:[#allocation2 + $0x58] sm:$0xf] %vm2045, %v1898
        %2069 = vst.msk [vmem:[#allocation2 + $0x5c] sm:$0xf] %vm2045, %v1900
        %2070 = vst.msk [vmem:[#allocation2 + $0x60] sm:$0xf] %vm2045, %v1902
        %2071 = vst.msk [vmem:[#allocation2 + $0x64] sm:$0xf] %vm2045, %v1904
        %2072 = vst.msk [vmem:[#allocation2 + $0x68] sm:$0xf] %vm2045, %v1906
        %2073 = vst.msk [vmem:[#allocation2 + $0x6c] sm:$0xf] %vm2045, %v1908
        %2074 = vst.msk [vmem:[#allocation2 + $0x70] sm:$0xf] %vm2045, %v1910
        %2075 = vst.msk [vmem:[#allocation2 + $0x74] sm:$0xf] %vm2045, %v1912
        %2076 = vst.msk [vmem:[#allocation2 + $0x78] sm:$0xf] %vm2045, %v1914
        %2077 = vst.msk [vmem:[#allocation2 + $0x7c] sm:$0xf] %vm2045, %v1916
        %2078 = vst.msk [vmem:[#allocation2 + $0x80] sm:$0xf] %vm2045, %v1918
        %2079 = vst.msk [vmem:[#allocation2 + $0x84] sm:$0xf] %vm2045, %v1920
        %2080 = vst.msk [vmem:[#allocation2 + $0x88] sm:$0xf] %vm2045, %v1922
        %2081 = vst.msk [vmem:[#allocation2 + $0x8c] sm:$0xf] %vm2045, %v1924
        %2082 = vst.msk [vmem:[#allocation2 + $0x90] sm:$0xf] %vm2045, %v1926
        %2083 = vst.msk [vmem:[#allocation2 + $0x94] sm:$0xf] %vm2045, %v1928
        %2084 = vst.msk [vmem:[#allocation2 + $0x98] sm:$0xf] %vm2045, %v1930
        %2085 = vst.msk [vmem:[#allocation2 + $0x9c] sm:$0xf] %vm2045, %v1932
        %2086 = vst.msk [vmem:[#allocation2 + $0xa0] sm:$0xf] %vm2045, %v1934
        %2087 = vst.msk [vmem:[#allocation2 + $0xa4] sm:$0xf] %vm2045, %v1936
        %2088 = vst.msk [vmem:[#allocation2 + $0xa8] sm:$0xf] %vm2045, %v1938
        %2089 = vst.msk [vmem:[#allocation2 + $0xac] sm:$0xf] %vm2045, %v1940
        %2090 = vst.msk [vmem:[#allocation2 + $0xb0] sm:$0xf] %vm2045, %v1942
        %2091 = vst.msk [vmem:[#allocation2 + $0xb4] sm:$0xf] %vm2045, %v1944
        %2092 = vst.msk [vmem:[#allocation2 + $0xb8] sm:$0xf] %vm2045, %v1946
        %2093 = vst.msk [vmem:[#allocation2 + $0xbc] sm:$0xf] %vm2045, %v1948
        %2094 = vst.msk [vmem:[#allocation2 + $0xc0] sm:$0xf] %vm2045, %v1950
        %2095 = vst.msk [vmem:[#allocation2 + $0xc4] sm:$0xf] %vm2045, %v1952
        %2096 = vst.msk [vmem:[#allocation2 + $0xc8] sm:$0xf] %vm2045, %v1954
        %2097 = vst.msk [vmem:[#allocation2 + $0xcc] sm:$0xf] %vm2045, %v1956
        %2098 = vst.msk [vmem:[#allocation2 + $0xd0] sm:$0xf] %vm2045, %v1958
        %2099 = vst.msk [vmem:[#allocation2 + $0xd4] sm:$0xf] %vm2045, %v1960
        %2100 = vst.msk [vmem:[#allocation2 + $0xd8] sm:$0xf] %vm2045, %v1962
        %2101 = vst.msk [vmem:[#allocation2 + $0xdc] sm:$0xf] %vm2045, %v1964
        %2102 = vst.msk [vmem:[#allocation2 + $0xe0] sm:$0xf] %vm2045, %v1966
        %2103 = vst.msk [vmem:[#allocation2 + $0xe4] sm:$0xf] %vm2045, %v1968
        %2104 = vst.msk [vmem:[#allocation2 + $0xe8] sm:$0xf] %vm2045, %v1970
        %2105 = vst.msk [vmem:[#allocation2 + $0xec] sm:$0xf] %vm2045, %v1972
        %2106 = vst.msk [vmem:[#allocation2 + $0xf0] sm:$0xf] %vm2045, %v1974
        %2107 = vst.msk [vmem:[#allocation2 + $0xf4] sm:$0xf] %vm2045, %v1976
        %2108 = vst.msk [vmem:[#allocation2 + $0xf8] sm:$0xf] %vm2045, %v1978
        %2109 = vst.msk [vmem:[#allocation2 + $0xfc] sm:$0xf] %vm2045, %v1980
        %s2110 = scalar_lea.vmem %s285, 20
        %v2111 = vld [vmem:[%s2110] sm:$0xf]
        %v2112 = vld [vmem:[%s2110 + $0x4] sm:$0xf]
        %v2113 = vld [vmem:[%s2110 + $0x8] sm:$0xf]
        %v2114 = vld [vmem:[%s2110 + $0xc] sm:$0xf]
        %v2115 = vld [vmem:[%s2110 + $0x14] sm:$0xf]
        %v2116 = vld [vmem:[%s2110 + $0x18] sm:$0xf]
        %v2117 = vld [vmem:[%s2110 + $0x1c] sm:$0xf]
        %v2118 = vld [vmem:[%s2110 + $0x20] sm:$0xf]
        %v2119 = vld [vmem:[%s2110 + $0x28] sm:$0xf]
        %v2120 = vld [vmem:[%s2110 + $0x2c] sm:$0xf]
        %v2121 = vld [vmem:[%s2110 + $0x30] sm:$0xf]
        %v2122 = vld [vmem:[%s2110 + $0x34] sm:$0xf]
        %v2123 = vld [vmem:[%s2110 + $0x3c] sm:$0xf]
        %v2124 = vld [vmem:[%s2110 + $0x40] sm:$0xf]
        %v2125 = vld [vmem:[%s2110 + $0x44] sm:$0xf]
        %v2126 = vld [vmem:[%s2110 + $0x48] sm:$0xf]
        %v2127 = vld [vmem:[%s2110 + $0x50] sm:$0xf]
        %v2128 = vld [vmem:[%s2110 + $0x54] sm:$0xf]
        %v2129 = vld [vmem:[%s2110 + $0x58] sm:$0xf]
        %v2130 = vld [vmem:[%s2110 + $0x5c] sm:$0xf]
        %v2131 = vld [vmem:[%s2110 + $0x64] sm:$0xf]
        %v2132 = vld [vmem:[%s2110 + $0x68] sm:$0xf]
        %v2133 = vld [vmem:[%s2110 + $0x6c] sm:$0xf]
        %v2134 = vld [vmem:[%s2110 + $0x70] sm:$0xf]
        %v2135 = vld [vmem:[%s2110 + $0x78] sm:$0xf]
        %v2136 = vld [vmem:[%s2110 + $0x7c] sm:$0xf]
        %v2137 = vld [vmem:[%s2110 + $0x80] sm:$0xf]
        %v2138 = vld [vmem:[%s2110 + $0x84] sm:$0xf]
        %v2139 = vld [vmem:[%s2110 + $0x8c] sm:$0xf]
        %v2140 = vld [vmem:[%s2110 + $0x90] sm:$0xf]
        %v2141 = vld [vmem:[%s2110 + $0x94] sm:$0xf]
        %v2142 = vld [vmem:[%s2110 + $0x98] sm:$0xf]
        %v2143 = vld [vmem:[%s2110 + $0xa0] sm:$0xf]
        %v2144 = vld [vmem:[%s2110 + $0xa4] sm:$0xf]
        %v2145 = vld [vmem:[%s2110 + $0xa8] sm:$0xf]
        %v2146 = vld [vmem:[%s2110 + $0xac] sm:$0xf]
        %v2147 = vld [vmem:[%s2110 + $0xb4] sm:$0xf]
        %v2148 = vld [vmem:[%s2110 + $0xb8] sm:$0xf]
        %v2149 = vld [vmem:[%s2110 + $0xbc] sm:$0xf]
        %v2150 = vld [vmem:[%s2110 + $0xc0] sm:$0xf]
        %v2151 = vld [vmem:[%s2110 + $0xc8] sm:$0xf]
        %v2152 = vld [vmem:[%s2110 + $0xcc] sm:$0xf]
        %v2153 = vld [vmem:[%s2110 + $0xd0] sm:$0xf]
        %v2154 = vld [vmem:[%s2110 + $0xd4] sm:$0xf]
        %v2155 = vld [vmem:[%s2110 + $0xdc] sm:$0xf]
        %v2156 = vld [vmem:[%s2110 + $0xe0] sm:$0xf]
        %v2157 = vld [vmem:[%s2110 + $0xe4] sm:$0xf]
        %v2158 = vld [vmem:[%s2110 + $0xe8] sm:$0xf]
        %v2159 = vld [vmem:[%s2110 + $0xf0] sm:$0xf]
        %v2160 = vld [vmem:[%s2110 + $0xf4] sm:$0xf]
        %v2161 = vld [vmem:[%s2110 + $0xf8] sm:$0xf]
        %v2162 = vld [vmem:[%s2110 + $0xfc] sm:$0xf]
        %v2163 = vld [vmem:[%s2110 + $0x104] sm:$0xf]
        %v2164 = vld [vmem:[%s2110 + $0x108] sm:$0xf]
        %v2165 = vld [vmem:[%s2110 + $0x10c] sm:$0xf]
        %v2166 = vld [vmem:[%s2110 + $0x110] sm:$0xf]
        %v2167 = vld [vmem:[%s2110 + $0x118] sm:$0xf]
        %v2168 = vld [vmem:[%s2110 + $0x11c] sm:$0xf]
        %v2169 = vld [vmem:[%s2110 + $0x120] sm:$0xf]
        %v2170 = vld [vmem:[%s2110 + $0x124] sm:$0xf]
        %2231 = vrot.lane.b32.xlu0 %v2111, 24
        %v2232 = vpop.permute.xlu0 %2231
        %2233 = vrot.lane.b32.xlu0 %v2112, 24
        %v2234 = vpop.permute.xlu0 %2233
        %2235 = vrot.lane.b32.xlu0 %v2113, 24
        %v2236 = vpop.permute.xlu0 %2235
        %2237 = vrot.lane.b32.xlu0 %v2114, 24
        %v2238 = vpop.permute.xlu0 %2237
        %2239 = vrot.lane.b32.xlu0 %v2115, 24
        %v2240 = vpop.permute.xlu0 %2239
        %2241 = vrot.lane.b32.xlu0 %v2116, 24
        %v2242 = vpop.permute.xlu0 %2241
        %2243 = vrot.lane.b32.xlu0 %v2117, 24
        %v2244 = vpop.permute.xlu0 %2243
        %2245 = vrot.lane.b32.xlu0 %v2118, 24
        %v2246 = vpop.permute.xlu0 %2245
        %2247 = vrot.lane.b32.xlu0 %v2119, 24
        %v2248 = vpop.permute.xlu0 %2247
        %2249 = vrot.lane.b32.xlu0 %v2120, 24
        %v2250 = vpop.permute.xlu0 %2249
        %2251 = vrot.lane.b32.xlu0 %v2121, 24
        %v2252 = vpop.permute.xlu0 %2251
        %2253 = vrot.lane.b32.xlu0 %v2122, 24
        %v2254 = vpop.permute.xlu0 %2253
        %2255 = vrot.lane.b32.xlu0 %v2123, 24
        %v2256 = vpop.permute.xlu0 %2255
        %2257 = vrot.lane.b32.xlu0 %v2124, 24
        %v2258 = vpop.permute.xlu0 %2257
        %2259 = vrot.lane.b32.xlu0 %v2125, 24
        %v2260 = vpop.permute.xlu0 %2259
        %2261 = vrot.lane.b32.xlu0 %v2126, 24
        %v2262 = vpop.permute.xlu0 %2261
        %2263 = vrot.lane.b32.xlu0 %v2127, 24
        %v2264 = vpop.permute.xlu0 %2263
        %2265 = vrot.lane.b32.xlu0 %v2128, 24
        %v2266 = vpop.permute.xlu0 %2265
        %2267 = vrot.lane.b32.xlu0 %v2129, 24
        %v2268 = vpop.permute.xlu0 %2267
        %2269 = vrot.lane.b32.xlu0 %v2130, 24
        %v2270 = vpop.permute.xlu0 %2269
        %2271 = vrot.lane.b32.xlu0 %v2131, 24
        %v2272 = vpop.permute.xlu0 %2271
        %2273 = vrot.lane.b32.xlu0 %v2132, 24
        %v2274 = vpop.permute.xlu0 %2273
        %2275 = vrot.lane.b32.xlu0 %v2133, 24
        %v2276 = vpop.permute.xlu0 %2275
        %2277 = vrot.lane.b32.xlu0 %v2134, 24
        %v2278 = vpop.permute.xlu0 %2277
        %2279 = vrot.lane.b32.xlu0 %v2135, 24
        %v2280 = vpop.permute.xlu0 %2279
        %2281 = vrot.lane.b32.xlu0 %v2136, 24
        %v2282 = vpop.permute.xlu0 %2281
        %2283 = vrot.lane.b32.xlu0 %v2137, 24
        %v2284 = vpop.permute.xlu0 %2283
        %2285 = vrot.lane.b32.xlu0 %v2138, 24
        %v2286 = vpop.permute.xlu0 %2285
        %2287 = vrot.lane.b32.xlu0 %v2139, 24
        %v2288 = vpop.permute.xlu0 %2287
        %2289 = vrot.lane.b32.xlu0 %v2140, 24
        %v2290 = vpop.permute.xlu0 %2289
        %2291 = vrot.lane.b32.xlu0 %v2141, 24
        %v2292 = vpop.permute.xlu0 %2291
        %2293 = vrot.lane.b32.xlu0 %v2142, 24
        %v2294 = vpop.permute.xlu0 %2293
        %2295 = vrot.lane.b32.xlu0 %v2143, 24
        %v2296 = vpop.permute.xlu0 %2295
        %2297 = vrot.lane.b32.xlu0 %v2144, 24
        %v2298 = vpop.permute.xlu0 %2297
        %2299 = vrot.lane.b32.xlu0 %v2145, 24
        %v2300 = vpop.permute.xlu0 %2299
        %2301 = vrot.lane.b32.xlu0 %v2146, 24
        %v2302 = vpop.permute.xlu0 %2301
        %2303 = vrot.lane.b32.xlu0 %v2147, 24
        %v2304 = vpop.permute.xlu0 %2303
        %2305 = vrot.lane.b32.xlu0 %v2148, 24
        %v2306 = vpop.permute.xlu0 %2305
        %2307 = vrot.lane.b32.xlu0 %v2149, 24
        %v2308 = vpop.permute.xlu0 %2307
        %2309 = vrot.lane.b32.xlu0 %v2150, 24
        %v2310 = vpop.permute.xlu0 %2309
        %2311 = vrot.lane.b32.xlu0 %v2151, 24
        %v2312 = vpop.permute.xlu0 %2311
        %2313 = vrot.lane.b32.xlu0 %v2152, 24
        %v2314 = vpop.permute.xlu0 %2313
        %2315 = vrot.lane.b32.xlu0 %v2153, 24
        %v2316 = vpop.permute.xlu0 %2315
        %2317 = vrot.lane.b32.xlu0 %v2154, 24
        %v2318 = vpop.permute.xlu0 %2317
        %2319 = vrot.lane.b32.xlu0 %v2155, 24
        %v2320 = vpop.permute.xlu0 %2319
        %2321 = vrot.lane.b32.xlu0 %v2156, 24
        %v2322 = vpop.permute.xlu0 %2321
        %2323 = vrot.lane.b32.xlu0 %v2157, 24
        %v2324 = vpop.permute.xlu0 %2323
        %2325 = vrot.lane.b32.xlu0 %v2158, 24
        %v2326 = vpop.permute.xlu0 %2325
        %2327 = vrot.lane.b32.xlu0 %v2159, 24
        %v2328 = vpop.permute.xlu0 %2327
        %2329 = vrot.lane.b32.xlu0 %v2160, 24
        %v2330 = vpop.permute.xlu0 %2329
        %2331 = vrot.lane.b32.xlu0 %v2161, 24
        %v2332 = vpop.permute.xlu0 %2331
        %2333 = vrot.lane.b32.xlu0 %v2162, 24
        %v2334 = vpop.permute.xlu0 %2333
        %2335 = vrot.lane.b32.xlu0 %v2163, 24
        %v2336 = vpop.permute.xlu0 %2335
        %2337 = vrot.lane.b32.xlu0 %v2164, 24
        %v2338 = vpop.permute.xlu0 %2337
        %2339 = vrot.lane.b32.xlu0 %v2165, 24
        %v2340 = vpop.permute.xlu0 %2339
        %2341 = vrot.lane.b32.xlu0 %v2166, 24
        %v2342 = vpop.permute.xlu0 %2341
        %2343 = vrot.lane.b32.xlu0 %v2167, 24
        %v2344 = vpop.permute.xlu0 %2343
        %2345 = vrot.lane.b32.xlu0 %v2168, 24
        %v2346 = vpop.permute.xlu0 %2345
        %2347 = vrot.lane.b32.xlu0 %v2169, 24
        %v2348 = vpop.permute.xlu0 %2347
        %2349 = vrot.lane.b32.xlu0 %v2170, 24
        %v2350 = vpop.permute.xlu0 %2349
        %vm2411 = vcmask 257216
        %2412 = vst.msk [vmem:[#allocation2] sm:$0xf] %vm2411, %v2232
        %2413 = vst.msk [vmem:[#allocation2 + $0x4] sm:$0xf] %vm2411, %v2234
        %2414 = vst.msk [vmem:[#allocation2 + $0x8] sm:$0xf] %vm2411, %v2236
        %2415 = vst.msk [vmem:[#allocation2 + $0xc] sm:$0xf] %vm2411, %v2238
        %2416 = vst.msk [vmem:[#allocation2 + $0x10] sm:$0xf] %vm2411, %v2240
        %2417 = vst.msk [vmem:[#allocation2 + $0x14] sm:$0xf] %vm2411, %v2242
        %2418 = vst.msk [vmem:[#allocation2 + $0x18] sm:$0xf] %vm2411, %v2244
        %2419 = vst.msk [vmem:[#allocation2 + $0x1c] sm:$0xf] %vm2411, %v2246
        %2420 = vst.msk [vmem:[#allocation2 + $0x20] sm:$0xf] %vm2411, %v2248
        %2421 = vst.msk [vmem:[#allocation2 + $0x24] sm:$0xf] %vm2411, %v2250
        %2422 = vst.msk [vmem:[#allocation2 + $0x28] sm:$0xf] %vm2411, %v2252
        %2423 = vst.msk [vmem:[#allocation2 + $0x2c] sm:$0xf] %vm2411, %v2254
        %2424 = vst.msk [vmem:[#allocation2 + $0x30] sm:$0xf] %vm2411, %v2256
        %2425 = vst.msk [vmem:[#allocation2 + $0x34] sm:$0xf] %vm2411, %v2258
        %2426 = vst.msk [vmem:[#allocation2 + $0x38] sm:$0xf] %vm2411, %v2260
        %2427 = vst.msk [vmem:[#allocation2 + $0x3c] sm:$0xf] %vm2411, %v2262
        %2428 = vst.msk [vmem:[#allocation2 + $0x40] sm:$0xf] %vm2411, %v2264
        %2429 = vst.msk [vmem:[#allocation2 + $0x44] sm:$0xf] %vm2411, %v2266
        %2430 = vst.msk [vmem:[#allocation2 + $0x48] sm:$0xf] %vm2411, %v2268
        %2431 = vst.msk [vmem:[#allocation2 + $0x4c] sm:$0xf] %vm2411, %v2270
        %2432 = vst.msk [vmem:[#allocation2 + $0x50] sm:$0xf] %vm2411, %v2272
        %2433 = vst.msk [vmem:[#allocation2 + $0x54] sm:$0xf] %vm2411, %v2274
        %2434 = vst.msk [vmem:[#allocation2 + $0x58] sm:$0xf] %vm2411, %v2276
        %2435 = vst.msk [vmem:[#allocation2 + $0x5c] sm:$0xf] %vm2411, %v2278
        %2436 = vst.msk [vmem:[#allocation2 + $0x60] sm:$0xf] %vm2411, %v2280
        %2437 = vst.msk [vmem:[#allocation2 + $0x64] sm:$0xf] %vm2411, %v2282
        %2438 = vst.msk [vmem:[#allocation2 + $0x68] sm:$0xf] %vm2411, %v2284
        %2439 = vst.msk [vmem:[#allocation2 + $0x6c] sm:$0xf] %vm2411, %v2286
        %2440 = vst.msk [vmem:[#allocation2 + $0x70] sm:$0xf] %vm2411, %v2288
        %2441 = vst.msk [vmem:[#allocation2 + $0x74] sm:$0xf] %vm2411, %v2290
        %2442 = vst.msk [vmem:[#allocation2 + $0x78] sm:$0xf] %vm2411, %v2292
        %2443 = vst.msk [vmem:[#allocation2 + $0x7c] sm:$0xf] %vm2411, %v2294
        %2444 = vst.msk [vmem:[#allocation2 + $0x80] sm:$0xf] %vm2411, %v2296
        %2445 = vst.msk [vmem:[#allocation2 + $0x84] sm:$0xf] %vm2411, %v2298
        %2446 = vst.msk [vmem:[#allocation2 + $0x88] sm:$0xf] %vm2411, %v2300
        %2447 = vst.msk [vmem:[#allocation2 + $0x8c] sm:$0xf] %vm2411, %v2302
        %2448 = vst.msk [vmem:[#allocation2 + $0x90] sm:$0xf] %vm2411, %v2304
        %2449 = vst.msk [vmem:[#allocation2 + $0x94] sm:$0xf] %vm2411, %v2306
        %2450 = vst.msk [vmem:[#allocation2 + $0x98] sm:$0xf] %vm2411, %v2308
        %2451 = vst.msk [vmem:[#allocation2 + $0x9c] sm:$0xf] %vm2411, %v2310
        %2452 = vst.msk [vmem:[#allocation2 + $0xa0] sm:$0xf] %vm2411, %v2312
        %2453 = vst.msk [vmem:[#allocation2 + $0xa4] sm:$0xf] %vm2411, %v2314
        %2454 = vst.msk [vmem:[#allocation2 + $0xa8] sm:$0xf] %vm2411, %v2316
        %2455 = vst.msk [vmem:[#allocation2 + $0xac] sm:$0xf] %vm2411, %v2318
        %2456 = vst.msk [vmem:[#allocation2 + $0xb0] sm:$0xf] %vm2411, %v2320
        %2457 = vst.msk [vmem:[#allocation2 + $0xb4] sm:$0xf] %vm2411, %v2322
        %2458 = vst.msk [vmem:[#allocation2 + $0xb8] sm:$0xf] %vm2411, %v2324
        %2459 = vst.msk [vmem:[#allocation2 + $0xbc] sm:$0xf] %vm2411, %v2326
        %2460 = vst.msk [vmem:[#allocation2 + $0xc0] sm:$0xf] %vm2411, %v2328
        %2461 = vst.msk [vmem:[#allocation2 + $0xc4] sm:$0xf] %vm2411, %v2330
        %2462 = vst.msk [vmem:[#allocation2 + $0xc8] sm:$0xf] %vm2411, %v2332
        %2463 = vst.msk [vmem:[#allocation2 + $0xcc] sm:$0xf] %vm2411, %v2334
        %2464 = vst.msk [vmem:[#allocation2 + $0xd0] sm:$0xf] %vm2411, %v2336
        %2465 = vst.msk [vmem:[#allocation2 + $0xd4] sm:$0xf] %vm2411, %v2338
        %2466 = vst.msk [vmem:[#allocation2 + $0xd8] sm:$0xf] %vm2411, %v2340
        %2467 = vst.msk [vmem:[#allocation2 + $0xdc] sm:$0xf] %vm2411, %v2342
        %2468 = vst.msk [vmem:[#allocation2 + $0xe0] sm:$0xf] %vm2411, %v2344
        %2469 = vst.msk [vmem:[#allocation2 + $0xe4] sm:$0xf] %vm2411, %v2346
        %2470 = vst.msk [vmem:[#allocation2 + $0xe8] sm:$0xf] %vm2411, %v2348
        %2471 = vst.msk [vmem:[#allocation2 + $0xec] sm:$0xf] %vm2411, %v2350
        %v2472 = vld [vmem:[%s303] sm:$0xf]
        %v2473 = vld [vmem:[%s303 + $0x4] sm:$0xf]
        %v2474 = vld [vmem:[%s303 + $0x8] sm:$0xf]
        %v2475 = vld [vmem:[%s303 + $0xc] sm:$0xf]
        %2480 = vrot.lane.b32.xlu0 %v2472, 24
        %v2481 = vpop.permute.xlu0 %2480
        %2482 = vrot.lane.b32.xlu0 %v2473, 24
        %v2483 = vpop.permute.xlu0 %2482
        %2484 = vrot.lane.b32.xlu0 %v2474, 24
        %v2485 = vpop.permute.xlu0 %2484
        %2486 = vrot.lane.b32.xlu0 %v2475, 24
        %v2487 = vpop.permute.xlu0 %2486
        %2492 = vst.msk [vmem:[#allocation2 + $0xf0] sm:$0xf] %vm2411, %v2481
        %2493 = vst.msk [vmem:[#allocation2 + $0xf4] sm:$0xf] %vm2411, %v2483
        %2494 = vst.msk [vmem:[#allocation2 + $0xf8] sm:$0xf] %vm2411, %v2485
        %2495 = vst.msk [vmem:[#allocation2 + $0xfc] sm:$0xf] %vm2411, %v2487
        %v2496 = vld [vmem:[%s2110] sm:$0xf]
        %v2497 = vld [vmem:[%s2110 + $0x4] sm:$0xf]
        %v2498 = vld [vmem:[%s2110 + $0x8] sm:$0xf]
        %v2499 = vld [vmem:[%s2110 + $0xc] sm:$0xf]
        %v2500 = vld [vmem:[%s2110 + $0x10] sm:$0x1]
        %v2501 = vld [vmem:[%s2110 + $0x14] sm:$0xf]
        %v2502 = vld [vmem:[%s2110 + $0x18] sm:$0xf]
        %v2503 = vld [vmem:[%s2110 + $0x1c] sm:$0xf]
        %v2504 = vld [vmem:[%s2110 + $0x20] sm:$0xf]
        %v2505 = vld [vmem:[%s2110 + $0x24] sm:$0x1]
        %v2506 = vld [vmem:[%s2110 + $0x28] sm:$0xf]
        %v2507 = vld [vmem:[%s2110 + $0x2c] sm:$0xf]
        %v2508 = vld [vmem:[%s2110 + $0x30] sm:$0xf]
        %v2509 = vld [vmem:[%s2110 + $0x34] sm:$0xf]
        %v2510 = vld [vmem:[%s2110 + $0x38] sm:$0x1]
        %v2511 = vld [vmem:[%s2110 + $0x3c] sm:$0xf]
        %v2512 = vld [vmem:[%s2110 + $0x40] sm:$0xf]
        %v2513 = vld [vmem:[%s2110 + $0x44] sm:$0xf]
        %v2514 = vld [vmem:[%s2110 + $0x48] sm:$0xf]
        %v2515 = vld [vmem:[%s2110 + $0x4c] sm:$0x1]
        %v2516 = vld [vmem:[%s2110 + $0x50] sm:$0xf]
        %v2517 = vld [vmem:[%s2110 + $0x54] sm:$0xf]
        %v2518 = vld [vmem:[%s2110 + $0x58] sm:$0xf]
        %v2519 = vld [vmem:[%s2110 + $0x5c] sm:$0xf]
        %v2520 = vld [vmem:[%s2110 + $0x60] sm:$0x1]
        %v2521 = vld [vmem:[%s2110 + $0x64] sm:$0xf]
        %v2522 = vld [vmem:[%s2110 + $0x68] sm:$0xf]
        %v2523 = vld [vmem:[%s2110 + $0x6c] sm:$0xf]
        %v2524 = vld [vmem:[%s2110 + $0x70] sm:$0xf]
        %v2525 = vld [vmem:[%s2110 + $0x74] sm:$0x1]
        %v2526 = vld [vmem:[%s2110 + $0x78] sm:$0xf]
        %v2527 = vld [vmem:[%s2110 + $0x7c] sm:$0xf]
        %v2528 = vld [vmem:[%s2110 + $0x80] sm:$0xf]
        %v2529 = vld [vmem:[%s2110 + $0x84] sm:$0xf]
        %v2530 = vld [vmem:[%s2110 + $0x88] sm:$0x1]
        %v2531 = vld [vmem:[%s2110 + $0x8c] sm:$0xf]
        %v2532 = vld [vmem:[%s2110 + $0x90] sm:$0xf]
        %v2533 = vld [vmem:[%s2110 + $0x94] sm:$0xf]
        %v2534 = vld [vmem:[%s2110 + $0x98] sm:$0xf]
        %v2535 = vld [vmem:[%s2110 + $0x9c] sm:$0x1]
        %v2536 = vld [vmem:[%s2110 + $0xa0] sm:$0xf]
        %v2537 = vld [vmem:[%s2110 + $0xa4] sm:$0xf]
        %v2538 = vld [vmem:[%s2110 + $0xa8] sm:$0xf]
        %v2539 = vld [vmem:[%s2110 + $0xac] sm:$0xf]
        %v2540 = vld [vmem:[%s2110 + $0xb0] sm:$0x1]
        %v2541 = vld [vmem:[%s2110 + $0xb4] sm:$0xf]
        %v2542 = vld [vmem:[%s2110 + $0xb8] sm:$0xf]
        %v2543 = vld [vmem:[%s2110 + $0xbc] sm:$0xf]
        %v2544 = vld [vmem:[%s2110 + $0xc0] sm:$0xf]
        %v2545 = vld [vmem:[%s2110 + $0xc4] sm:$0x1]
        %v2546 = vld [vmem:[%s2110 + $0xc8] sm:$0xf]
        %v2547 = vld [vmem:[%s2110 + $0xcc] sm:$0xf]
        %v2548 = vld [vmem:[%s2110 + $0xd0] sm:$0xf]
        %v2549 = vld [vmem:[%s2110 + $0xd4] sm:$0xf]
        %v2550 = vld [vmem:[%s2110 + $0xd8] sm:$0x1]
        %v2551 = vld [vmem:[%s2110 + $0xdc] sm:$0xf]
        %v2552 = vld [vmem:[%s2110 + $0xe0] sm:$0xf]
        %v2553 = vld [vmem:[%s2110 + $0xe4] sm:$0xf]
        %v2554 = vld [vmem:[%s2110 + $0xe8] sm:$0xf]
        %v2555 = vld [vmem:[%s2110 + $0xec] sm:$0x1]
        %v2556 = vld [vmem:[%s2110 + $0xf0] sm:$0xf]
        %v2557 = vld [vmem:[%s2110 + $0xf4] sm:$0xf]
        %v2558 = vld [vmem:[%s2110 + $0xf8] sm:$0xf]
        %v2559 = vld [vmem:[%s2110 + $0xfc] sm:$0xf]
        %v2560 = vld [vmem:[%s2110 + $0x100] sm:$0x1]
        %v2561 = vld [vmem:[%s2110 + $0x104] sm:$0xf]
        %v2562 = vld [vmem:[%s2110 + $0x108] sm:$0xf]
        %v2563 = vld [vmem:[%s2110 + $0x10c] sm:$0xf]
        %v2564 = vld [vmem:[%s2110 + $0x110] sm:$0xf]
        %v2565 = vld [vmem:[%s2110 + $0x114] sm:$0x1]
        %v2566 = vld [vmem:[%s2110 + $0x118] sm:$0xf]
        %v2567 = vld [vmem:[%s2110 + $0x11c] sm:$0xf]
        %v2568 = vld [vmem:[%s2110 + $0x120] sm:$0xf]
        %v2569 = vld [vmem:[%s2110 + $0x124] sm:$0xf]
        %v2570 = vld [vmem:[%s2110 + $0x128] sm:$0x1]
        %v2572 = vshrl.u32 %v2496, 16
        %v2574 = vrot.slane %v2572, 4
        %v2575 = vshll.u32 %v2496, 16
        %v2577 = vrot.slane %v2575, 5
        %v2578 = vor.u32 %v2574, %v2577
        %v2579 = vrot.slane %v2578, 4
        %v2581 = vshll.u32 %v2497, 16
        %v2583 = vrot.slane %v2581, 5
        %v2584 = vsel %vm520, %v2579, %v2583
        %v2585 = vshrl.u32 %v2497, 16
        %v2587 = vrot.slane %v2585, 4
        %v2588 = vor.u32 %v2587, %v2583
        %v2589 = vrot.slane %v2588, 4
        %v2591 = vshll.u32 %v2498, 16
        %v2593 = vrot.slane %v2591, 5
        %v2594 = vsel %vm520, %v2589, %v2593
        %v2595 = vshrl.u32 %v2498, 16
        %v2597 = vrot.slane %v2595, 4
        %v2598 = vor.u32 %v2597, %v2593
        %v2599 = vrot.slane %v2598, 4
        %v2601 = vshll.u32 %v2499, 16
        %v2603 = vrot.slane %v2601, 5
        %v2604 = vsel %vm520, %v2599, %v2603
        %v2605 = vshrl.u32 %v2499, 16
        %v2607 = vrot.slane %v2605, 4
        %v2608 = vor.u32 %v2607, %v2603
        %v2609 = vrot.slane %v2608, 4
        %v2611 = vshll.u32 %v2500, 16
        %v2613 = vrot.slane %v2611, 5
        %v2614 = vsel %vm520, %v2609, %v2613
        %v2616 = vshrl.u32 %v2501, 16
        %v2618 = vrot.slane %v2616, 4
        %v2619 = vshll.u32 %v2501, 16
        %v2621 = vrot.slane %v2619, 5
        %v2622 = vor.u32 %v2618, %v2621
        %v2623 = vrot.slane %v2622, 4
        %v2625 = vshll.u32 %v2502, 16
        %v2627 = vrot.slane %v2625, 5
        %v2628 = vsel %vm520, %v2623, %v2627
        %v2629 = vshrl.u32 %v2502, 16
        %v2631 = vrot.slane %v2629, 4
        %v2632 = vor.u32 %v2631, %v2627
        %v2633 = vrot.slane %v2632, 4
        %v2635 = vshll.u32 %v2503, 16
        %v2637 = vrot.slane %v2635, 5
        %v2638 = vsel %vm520, %v2633, %v2637
        %v2639 = vshrl.u32 %v2503, 16
        %v2641 = vrot.slane %v2639, 4
        %v2642 = vor.u32 %v2641, %v2637
        %v2643 = vrot.slane %v2642, 4
        %v2645 = vshll.u32 %v2504, 16
        %v2647 = vrot.slane %v2645, 5
        %v2648 = vsel %vm520, %v2643, %v2647
        %v2649 = vshrl.u32 %v2504, 16
        %v2651 = vrot.slane %v2649, 4
        %v2652 = vor.u32 %v2651, %v2647
        %v2653 = vrot.slane %v2652, 4
        %v2655 = vshll.u32 %v2505, 16
        %v2657 = vrot.slane %v2655, 5
        %v2658 = vsel %vm520, %v2653, %v2657
        %v2660 = vshrl.u32 %v2506, 16
        %v2662 = vrot.slane %v2660, 4
        %v2663 = vshll.u32 %v2506, 16
        %v2665 = vrot.slane %v2663, 5
        %v2666 = vor.u32 %v2662, %v2665
        %v2667 = vrot.slane %v2666, 4
        %v2669 = vshll.u32 %v2507, 16
        %v2671 = vrot.slane %v2669, 5
        %v2672 = vsel %vm520, %v2667, %v2671
        %v2673 = vshrl.u32 %v2507, 16
        %v2675 = vrot.slane %v2673, 4
        %v2676 = vor.u32 %v2675, %v2671
        %v2677 = vrot.slane %v2676, 4
        %v2679 = vshll.u32 %v2508, 16
        %v2681 = vrot.slane %v2679, 5
        %v2682 = vsel %vm520, %v2677, %v2681
        %v2683 = vshrl.u32 %v2508, 16
        %v2685 = vrot.slane %v2683, 4
        %v2686 = vor.u32 %v2685, %v2681
        %v2687 = vrot.slane %v2686, 4
        %v2689 = vshll.u32 %v2509, 16
        %v2691 = vrot.slane %v2689, 5
        %v2692 = vsel %vm520, %v2687, %v2691
        %v2693 = vshrl.u32 %v2509, 16
        %v2695 = vrot.slane %v2693, 4
        %v2696 = vor.u32 %v2695, %v2691
        %v2697 = vrot.slane %v2696, 4
        %v2699 = vshll.u32 %v2510, 16
        %v2701 = vrot.slane %v2699, 5
        %v2702 = vsel %vm520, %v2697, %v2701
        %v2704 = vshrl.u32 %v2511, 16
        %v2706 = vrot.slane %v2704, 4
        %v2707 = vshll.u32 %v2511, 16
        %v2709 = vrot.slane %v2707, 5
        %v2710 = vor.u32 %v2706, %v2709
        %v2711 = vrot.slane %v2710, 4
        %v2713 = vshll.u32 %v2512, 16
        %v2715 = vrot.slane %v2713, 5
        %v2716 = vsel %vm520, %v2711, %v2715
        %v2717 = vshrl.u32 %v2512, 16
        %v2719 = vrot.slane %v2717, 4
        %v2720 = vor.u32 %v2719, %v2715
        %v2721 = vrot.slane %v2720, 4
        %v2723 = vshll.u32 %v2513, 16
        %v2725 = vrot.slane %v2723, 5
        %v2726 = vsel %vm520, %v2721, %v2725
        %v2727 = vshrl.u32 %v2513, 16
        %v2729 = vrot.slane %v2727, 4
        %v2730 = vor.u32 %v2729, %v2725
        %v2731 = vrot.slane %v2730, 4
        %v2733 = vshll.u32 %v2514, 16
        %v2735 = vrot.slane %v2733, 5
        %v2736 = vsel %vm520, %v2731, %v2735
        %v2737 = vshrl.u32 %v2514, 16
        %v2739 = vrot.slane %v2737, 4
        %v2740 = vor.u32 %v2739, %v2735
        %v2741 = vrot.slane %v2740, 4
        %v2743 = vshll.u32 %v2515, 16
        %v2745 = vrot.slane %v2743, 5
        %v2746 = vsel %vm520, %v2741, %v2745
        %v2748 = vshrl.u32 %v2516, 16
        %v2750 = vrot.slane %v2748, 4
        %v2751 = vshll.u32 %v2516, 16
        %v2753 = vrot.slane %v2751, 5
        %v2754 = vor.u32 %v2750, %v2753
        %v2755 = vrot.slane %v2754, 4
        %v2757 = vshll.u32 %v2517, 16
        %v2759 = vrot.slane %v2757, 5
        %v2760 = vsel %vm520, %v2755, %v2759
        %v2761 = vshrl.u32 %v2517, 16
        %v2763 = vrot.slane %v2761, 4
        %v2764 = vor.u32 %v2763, %v2759
        %v2765 = vrot.slane %v2764, 4
        %v2767 = vshll.u32 %v2518, 16
        %v2769 = vrot.slane %v2767, 5
        %v2770 = vsel %vm520, %v2765, %v2769
        %v2771 = vshrl.u32 %v2518, 16
        %v2773 = vrot.slane %v2771, 4
        %v2774 = vor.u32 %v2773, %v2769
        %v2775 = vrot.slane %v2774, 4
        %v2777 = vshll.u32 %v2519, 16
        %v2779 = vrot.slane %v2777, 5
        %v2780 = vsel %vm520, %v2775, %v2779
        %v2781 = vshrl.u32 %v2519, 16
        %v2783 = vrot.slane %v2781, 4
        %v2784 = vor.u32 %v2783, %v2779
        %v2785 = vrot.slane %v2784, 4
        %v2787 = vshll.u32 %v2520, 16
        %v2789 = vrot.slane %v2787, 5
        %v2790 = vsel %vm520, %v2785, %v2789
        %v2792 = vshrl.u32 %v2521, 16
        %v2794 = vrot.slane %v2792, 4
        %v2795 = vshll.u32 %v2521, 16
        %v2797 = vrot.slane %v2795, 5
        %v2798 = vor.u32 %v2794, %v2797
        %v2799 = vrot.slane %v2798, 4
        %v2801 = vshll.u32 %v2522, 16
        %v2803 = vrot.slane %v2801, 5
        %v2804 = vsel %vm520, %v2799, %v2803
        %v2805 = vshrl.u32 %v2522, 16
        %v2807 = vrot.slane %v2805, 4
        %v2808 = vor.u32 %v2807, %v2803
        %v2809 = vrot.slane %v2808, 4
        %v2811 = vshll.u32 %v2523, 16
        %v2813 = vrot.slane %v2811, 5
        %v2814 = vsel %vm520, %v2809, %v2813
        %v2815 = vshrl.u32 %v2523, 16
        %v2817 = vrot.slane %v2815, 4
        %v2818 = vor.u32 %v2817, %v2813
        %v2819 = vrot.slane %v2818, 4
        %v2821 = vshll.u32 %v2524, 16
        %v2823 = vrot.slane %v2821, 5
        %v2824 = vsel %vm520, %v2819, %v2823
        %v2825 = vshrl.u32 %v2524, 16
        %v2827 = vrot.slane %v2825, 4
        %v2828 = vor.u32 %v2827, %v2823
        %v2829 = vrot.slane %v2828, 4
        %v2831 = vshll.u32 %v2525, 16
        %v2833 = vrot.slane %v2831, 5
        %v2834 = vsel %vm520, %v2829, %v2833
        %v2836 = vshrl.u32 %v2526, 16
        %v2838 = vrot.slane %v2836, 4
        %v2839 = vshll.u32 %v2526, 16
        %v2841 = vrot.slane %v2839, 5
        %v2842 = vor.u32 %v2838, %v2841
        %v2843 = vrot.slane %v2842, 4
        %v2845 = vshll.u32 %v2527, 16
        %v2847 = vrot.slane %v2845, 5
        %v2848 = vsel %vm520, %v2843, %v2847
        %v2849 = vshrl.u32 %v2527, 16
        %v2851 = vrot.slane %v2849, 4
        %v2852 = vor.u32 %v2851, %v2847
        %v2853 = vrot.slane %v2852, 4
        %v2855 = vshll.u32 %v2528, 16
        %v2857 = vrot.slane %v2855, 5
        %v2858 = vsel %vm520, %v2853, %v2857
        %v2859 = vshrl.u32 %v2528, 16
        %v2861 = vrot.slane %v2859, 4
        %v2862 = vor.u32 %v2861, %v2857
        %v2863 = vrot.slane %v2862, 4
        %v2865 = vshll.u32 %v2529, 16
        %v2867 = vrot.slane %v2865, 5
        %v2868 = vsel %vm520, %v2863, %v2867
        %v2869 = vshrl.u32 %v2529, 16
        %v2871 = vrot.slane %v2869, 4
        %v2872 = vor.u32 %v2871, %v2867
        %v2873 = vrot.slane %v2872, 4
        %v2875 = vshll.u32 %v2530, 16
        %v2877 = vrot.slane %v2875, 5
        %v2878 = vsel %vm520, %v2873, %v2877
        %v2880 = vshrl.u32 %v2531, 16
        %v2882 = vrot.slane %v2880, 4
        %v2883 = vshll.u32 %v2531, 16
        %v2885 = vrot.slane %v2883, 5
        %v2886 = vor.u32 %v2882, %v2885
        %v2887 = vrot.slane %v2886, 4
        %v2889 = vshll.u32 %v2532, 16
        %v2891 = vrot.slane %v2889, 5
        %v2892 = vsel %vm520, %v2887, %v2891
        %v2893 = vshrl.u32 %v2532, 16
        %v2895 = vrot.slane %v2893, 4
        %v2896 = vor.u32 %v2895, %v2891
        %v2897 = vrot.slane %v2896, 4
        %v2899 = vshll.u32 %v2533, 16
        %v2901 = vrot.slane %v2899, 5
        %v2902 = vsel %vm520, %v2897, %v2901
        %v2903 = vshrl.u32 %v2533, 16
        %v2905 = vrot.slane %v2903, 4
        %v2906 = vor.u32 %v2905, %v2901
        %v2907 = vrot.slane %v2906, 4
        %v2909 = vshll.u32 %v2534, 16
        %v2911 = vrot.slane %v2909, 5
        %v2912 = vsel %vm520, %v2907, %v2911
        %v2913 = vshrl.u32 %v2534, 16
        %v2915 = vrot.slane %v2913, 4
        %v2916 = vor.u32 %v2915, %v2911
        %v2917 = vrot.slane %v2916, 4
        %v2919 = vshll.u32 %v2535, 16
        %v2921 = vrot.slane %v2919, 5
        %v2922 = vsel %vm520, %v2917, %v2921
        %v2924 = vshrl.u32 %v2536, 16
        %v2926 = vrot.slane %v2924, 4
        %v2927 = vshll.u32 %v2536, 16
        %v2929 = vrot.slane %v2927, 5
        %v2930 = vor.u32 %v2926, %v2929
        %v2931 = vrot.slane %v2930, 4
        %v2933 = vshll.u32 %v2537, 16
        %v2935 = vrot.slane %v2933, 5
        %v2936 = vsel %vm520, %v2931, %v2935
        %v2937 = vshrl.u32 %v2537, 16
        %v2939 = vrot.slane %v2937, 4
        %v2940 = vor.u32 %v2939, %v2935
        %v2941 = vrot.slane %v2940, 4
        %v2943 = vshll.u32 %v2538, 16
        %v2945 = vrot.slane %v2943, 5
        %v2946 = vsel %vm520, %v2941, %v2945
        %v2947 = vshrl.u32 %v2538, 16
        %v2949 = vrot.slane %v2947, 4
        %v2950 = vor.u32 %v2949, %v2945
        %v2951 = vrot.slane %v2950, 4
        %v2953 = vshll.u32 %v2539, 16
        %v2955 = vrot.slane %v2953, 5
        %v2956 = vsel %vm520, %v2951, %v2955
        %v2957 = vshrl.u32 %v2539, 16
        %v2959 = vrot.slane %v2957, 4
        %v2960 = vor.u32 %v2959, %v2955
        %v2961 = vrot.slane %v2960, 4
        %v2963 = vshll.u32 %v2540, 16
        %v2965 = vrot.slane %v2963, 5
        %v2966 = vsel %vm520, %v2961, %v2965
        %v2968 = vshrl.u32 %v2541, 16
        %v2970 = vrot.slane %v2968, 4
        %v2971 = vshll.u32 %v2541, 16
        %v2973 = vrot.slane %v2971, 5
        %v2974 = vor.u32 %v2970, %v2973
        %v2975 = vrot.slane %v2974, 4
        %v2977 = vshll.u32 %v2542, 16
        %v2979 = vrot.slane %v2977, 5
        %v2980 = vsel %vm520, %v2975, %v2979
        %v2981 = vshrl.u32 %v2542, 16
        %v2983 = vrot.slane %v2981, 4
        %v2984 = vor.u32 %v2983, %v2979
        %v2985 = vrot.slane %v2984, 4
        %v2987 = vshll.u32 %v2543, 16
        %v2989 = vrot.slane %v2987, 5
        %v2990 = vsel %vm520, %v2985, %v2989
        %v2991 = vshrl.u32 %v2543, 16
        %v2993 = vrot.slane %v2991, 4
        %v2994 = vor.u32 %v2993, %v2989
        %v2995 = vrot.slane %v2994, 4
        %v2997 = vshll.u32 %v2544, 16
        %v2999 = vrot.slane %v2997, 5
        %v3000 = vsel %vm520, %v2995, %v2999
        %v3001 = vshrl.u32 %v2544, 16
        %v3003 = vrot.slane %v3001, 4
        %v3004 = vor.u32 %v3003, %v2999
        %v3005 = vrot.slane %v3004, 4
        %v3007 = vshll.u32 %v2545, 16
        %v3009 = vrot.slane %v3007, 5
        %v3010 = vsel %vm520, %v3005, %v3009
        %v3012 = vshrl.u32 %v2546, 16
        %v3014 = vrot.slane %v3012, 4
        %v3015 = vshll.u32 %v2546, 16
        %v3017 = vrot.slane %v3015, 5
        %v3018 = vor.u32 %v3014, %v3017
        %v3019 = vrot.slane %v3018, 4
        %v3021 = vshll.u32 %v2547, 16
        %v3023 = vrot.slane %v3021, 5
        %v3024 = vsel %vm520, %v3019, %v3023
        %v3025 = vshrl.u32 %v2547, 16
        %v3027 = vrot.slane %v3025, 4
        %v3028 = vor.u32 %v3027, %v3023
        %v3029 = vrot.slane %v3028, 4
        %v3031 = vshll.u32 %v2548, 16
        %v3033 = vrot.slane %v3031, 5
        %v3034 = vsel %vm520, %v3029, %v3033
        %v3035 = vshrl.u32 %v2548, 16
        %v3037 = vrot.slane %v3035, 4
        %v3038 = vor.u32 %v3037, %v3033
        %v3039 = vrot.slane %v3038, 4
        %v3041 = vshll.u32 %v2549, 16
        %v3043 = vrot.slane %v3041, 5
        %v3044 = vsel %vm520, %v3039, %v3043
        %v3045 = vshrl.u32 %v2549, 16
        %v3047 = vrot.slane %v3045, 4
        %v3048 = vor.u32 %v3047, %v3043
        %v3049 = vrot.slane %v3048, 4
        %v3051 = vshll.u32 %v2550, 16
        %v3053 = vrot.slane %v3051, 5
        %v3054 = vsel %vm520, %v3049, %v3053
        %v3056 = vshrl.u32 %v2551, 16
        %v3058 = vrot.slane %v3056, 4
        %v3059 = vshll.u32 %v2551, 16
        %v3061 = vrot.slane %v3059, 5
        %v3062 = vor.u32 %v3058, %v3061
        %v3063 = vrot.slane %v3062, 4
        %v3065 = vshll.u32 %v2552, 16
        %v3067 = vrot.slane %v3065, 5
        %v3068 = vsel %vm520, %v3063, %v3067
        %v3069 = vshrl.u32 %v2552, 16
        %v3071 = vrot.slane %v3069, 4
        %v3072 = vor.u32 %v3071, %v3067
        %v3073 = vrot.slane %v3072, 4
        %v3075 = vshll.u32 %v2553, 16
        %v3077 = vrot.slane %v3075, 5
        %v3078 = vsel %vm520, %v3073, %v3077
        %v3079 = vshrl.u32 %v2553, 16
        %v3081 = vrot.slane %v3079, 4
        %v3082 = vor.u32 %v3081, %v3077
        %v3083 = vrot.slane %v3082, 4
        %v3085 = vshll.u32 %v2554, 16
        %v3087 = vrot.slane %v3085, 5
        %v3088 = vsel %vm520, %v3083, %v3087
        %v3089 = vshrl.u32 %v2554, 16
        %v3091 = vrot.slane %v3089, 4
        %v3092 = vor.u32 %v3091, %v3087
        %v3093 = vrot.slane %v3092, 4
        %v3095 = vshll.u32 %v2555, 16
        %v3097 = vrot.slane %v3095, 5
        %v3098 = vsel %vm520, %v3093, %v3097
        %v3100 = vshrl.u32 %v2556, 16
        %v3102 = vrot.slane %v3100, 4
        %v3103 = vshll.u32 %v2556, 16
        %v3105 = vrot.slane %v3103, 5
        %v3106 = vor.u32 %v3102, %v3105
        %v3107 = vrot.slane %v3106, 4
        %v3109 = vshll.u32 %v2557, 16
        %v3111 = vrot.slane %v3109, 5
        %v3112 = vsel %vm520, %v3107, %v3111
        %v3113 = vshrl.u32 %v2557, 16
        %v3115 = vrot.slane %v3113, 4
        %v3116 = vor.u32 %v3115, %v3111
        %v3117 = vrot.slane %v3116, 4
        %v3119 = vshll.u32 %v2558, 16
        %v3121 = vrot.slane %v3119, 5
        %v3122 = vsel %vm520, %v3117, %v3121
        %v3123 = vshrl.u32 %v2558, 16
        %v3125 = vrot.slane %v3123, 4
        %v3126 = vor.u32 %v3125, %v3121
        %v3127 = vrot.slane %v3126, 4
        %v3129 = vshll.u32 %v2559, 16
        %v3131 = vrot.slane %v3129, 5
        %v3132 = vsel %vm520, %v3127, %v3131
        %v3133 = vshrl.u32 %v2559, 16
        %v3135 = vrot.slane %v3133, 4
        %v3136 = vor.u32 %v3135, %v3131
        %v3137 = vrot.slane %v3136, 4
        %v3139 = vshll.u32 %v2560, 16
        %v3141 = vrot.slane %v3139, 5
        %v3142 = vsel %vm520, %v3137, %v3141
        %v3144 = vshrl.u32 %v2561, 16
        %v3146 = vrot.slane %v3144, 4
        %v3147 = vshll.u32 %v2561, 16
        %v3149 = vrot.slane %v3147, 5
        %v3150 = vor.u32 %v3146, %v3149
        %v3151 = vrot.slane %v3150, 4
        %v3153 = vshll.u32 %v2562, 16
        %v3155 = vrot.slane %v3153, 5
        %v3156 = vsel %vm520, %v3151, %v3155
        %v3157 = vshrl.u32 %v2562, 16
        %v3159 = vrot.slane %v3157, 4
        %v3160 = vor.u32 %v3159, %v3155
        %v3161 = vrot.slane %v3160, 4
        %v3163 = vshll.u32 %v2563, 16
        %v3165 = vrot.slane %v3163, 5
        %v3166 = vsel %vm520, %v3161, %v3165
        %v3167 = vshrl.u32 %v2563, 16
        %v3169 = vrot.slane %v3167, 4
        %v3170 = vor.u32 %v3169, %v3165
        %v3171 = vrot.slane %v3170, 4
        %v3173 = vshll.u32 %v2564, 16
        %v3175 = vrot.slane %v3173, 5
        %v3176 = vsel %vm520, %v3171, %v3175
        %v3177 = vshrl.u32 %v2564, 16
        %v3179 = vrot.slane %v3177, 4
        %v3180 = vor.u32 %v3179, %v3175
        %v3181 = vrot.slane %v3180, 4
        %v3183 = vshll.u32 %v2565, 16
        %v3185 = vrot.slane %v3183, 5
        %v3186 = vsel %vm520, %v3181, %v3185
        %v3188 = vshrl.u32 %v2566, 16
        %v3190 = vrot.slane %v3188, 4
        %v3191 = vshll.u32 %v2566, 16
        %v3193 = vrot.slane %v3191, 5
        %v3194 = vor.u32 %v3190, %v3193
        %v3195 = vrot.slane %v3194, 4
        %v3197 = vshll.u32 %v2567, 16
        %v3199 = vrot.slane %v3197, 5
        %v3200 = vsel %vm520, %v3195, %v3199
        %v3201 = vshrl.u32 %v2567, 16
        %v3203 = vrot.slane %v3201, 4
        %v3204 = vor.u32 %v3203, %v3199
        %v3205 = vrot.slane %v3204, 4
        %v3207 = vshll.u32 %v2568, 16
        %v3209 = vrot.slane %v3207, 5
        %v3210 = vsel %vm520, %v3205, %v3209
        %v3211 = vshrl.u32 %v2568, 16
        %v3213 = vrot.slane %v3211, 4
        %v3214 = vor.u32 %v3213, %v3209
        %v3215 = vrot.slane %v3214, 4
        %v3217 = vshll.u32 %v2569, 16
        %v3219 = vrot.slane %v3217, 5
        %v3220 = vsel %vm520, %v3215, %v3219
        %v3221 = vshrl.u32 %v2569, 16
        %v3223 = vrot.slane %v3221, 4
        %v3224 = vor.u32 %v3223, %v3219
        %v3225 = vrot.slane %v3224, 4
        %v3227 = vshll.u32 %v2570, 16
        %v3229 = vrot.slane %v3227, 5
        %v3230 = vsel %vm520, %v3225, %v3229
        %3231 = vrot.lane.b32.xlu0 %v2584, 32
        %v3232 = vpop.permute.xlu0 %3231
        %3233 = vrot.lane.b32.xlu0 %v2594, 32
        %v3234 = vpop.permute.xlu0 %3233
        %3235 = vrot.lane.b32.xlu0 %v2604, 32
        %v3236 = vpop.permute.xlu0 %3235
        %3237 = vrot.lane.b32.xlu0 %v2614, 32
        %v3238 = vpop.permute.xlu0 %3237
        %3239 = vrot.lane.b32.xlu0 %v2628, 32
        %v3240 = vpop.permute.xlu0 %3239
        %3241 = vrot.lane.b32.xlu0 %v2638, 32
        %v3242 = vpop.permute.xlu0 %3241
        %3243 = vrot.lane.b32.xlu0 %v2648, 32
        %v3244 = vpop.permute.xlu0 %3243
        %3245 = vrot.lane.b32.xlu0 %v2658, 32
        %v3246 = vpop.permute.xlu0 %3245
        %3247 = vrot.lane.b32.xlu0 %v2672, 32
        %v3248 = vpop.permute.xlu0 %3247
        %3249 = vrot.lane.b32.xlu0 %v2682, 32
        %v3250 = vpop.permute.xlu0 %3249
        %3251 = vrot.lane.b32.xlu0 %v2692, 32
        %v3252 = vpop.permute.xlu0 %3251
        %3253 = vrot.lane.b32.xlu0 %v2702, 32
        %v3254 = vpop.permute.xlu0 %3253
        %3255 = vrot.lane.b32.xlu0 %v2716, 32
        %v3256 = vpop.permute.xlu0 %3255
        %3257 = vrot.lane.b32.xlu0 %v2726, 32
        %v3258 = vpop.permute.xlu0 %3257
        %3259 = vrot.lane.b32.xlu0 %v2736, 32
        %v3260 = vpop.permute.xlu0 %3259
        %3261 = vrot.lane.b32.xlu0 %v2746, 32
        %v3262 = vpop.permute.xlu0 %3261
        %3263 = vrot.lane.b32.xlu0 %v2760, 32
        %v3264 = vpop.permute.xlu0 %3263
        %3265 = vrot.lane.b32.xlu0 %v2770, 32
        %v3266 = vpop.permute.xlu0 %3265
        %3267 = vrot.lane.b32.xlu0 %v2780, 32
        %v3268 = vpop.permute.xlu0 %3267
        %3269 = vrot.lane.b32.xlu0 %v2790, 32
        %v3270 = vpop.permute.xlu0 %3269
        %3271 = vrot.lane.b32.xlu0 %v2804, 32
        %v3272 = vpop.permute.xlu0 %3271
        %3273 = vrot.lane.b32.xlu0 %v2814, 32
        %v3274 = vpop.permute.xlu0 %3273
        %3275 = vrot.lane.b32.xlu0 %v2824, 32
        %v3276 = vpop.permute.xlu0 %3275
        %3277 = vrot.lane.b32.xlu0 %v2834, 32
        %v3278 = vpop.permute.xlu0 %3277
        %3279 = vrot.lane.b32.xlu0 %v2848, 32
        %v3280 = vpop.permute.xlu0 %3279
        %3281 = vrot.lane.b32.xlu0 %v2858, 32
        %v3282 = vpop.permute.xlu0 %3281
        %3283 = vrot.lane.b32.xlu0 %v2868, 32
        %v3284 = vpop.permute.xlu0 %3283
        %3285 = vrot.lane.b32.xlu0 %v2878, 32
        %v3286 = vpop.permute.xlu0 %3285
        %3287 = vrot.lane.b32.xlu0 %v2892, 32
        %v3288 = vpop.permute.xlu0 %3287
        %3289 = vrot.lane.b32.xlu0 %v2902, 32
        %v3290 = vpop.permute.xlu0 %3289
        %3291 = vrot.lane.b32.xlu0 %v2912, 32
        %v3292 = vpop.permute.xlu0 %3291
        %3293 = vrot.lane.b32.xlu0 %v2922, 32
        %v3294 = vpop.permute.xlu0 %3293
        %3295 = vrot.lane.b32.xlu0 %v2936, 32
        %v3296 = vpop.permute.xlu0 %3295
        %3297 = vrot.lane.b32.xlu0 %v2946, 32
        %v3298 = vpop.permute.xlu0 %3297
        %3299 = vrot.lane.b32.xlu0 %v2956, 32
        %v3300 = vpop.permute.xlu0 %3299
        %3301 = vrot.lane.b32.xlu0 %v2966, 32
        %v3302 = vpop.permute.xlu0 %3301
        %3303 = vrot.lane.b32.xlu0 %v2980, 32
        %v3304 = vpop.permute.xlu0 %3303
        %3305 = vrot.lane.b32.xlu0 %v2990, 32
        %v3306 = vpop.permute.xlu0 %3305
        %3307 = vrot.lane.b32.xlu0 %v3000, 32
        %v3308 = vpop.permute.xlu0 %3307
        %3309 = vrot.lane.b32.xlu0 %v3010, 32
        %v3310 = vpop.permute.xlu0 %3309
        %3311 = vrot.lane.b32.xlu0 %v3024, 32
        %v3312 = vpop.permute.xlu0 %3311
        %3313 = vrot.lane.b32.xlu0 %v3034, 32
        %v3314 = vpop.permute.xlu0 %3313
        %3315 = vrot.lane.b32.xlu0 %v3044, 32
        %v3316 = vpop.permute.xlu0 %3315
        %3317 = vrot.lane.b32.xlu0 %v3054, 32
        %v3318 = vpop.permute.xlu0 %3317
        %3319 = vrot.lane.b32.xlu0 %v3068, 32
        %v3320 = vpop.permute.xlu0 %3319
        %3321 = vrot.lane.b32.xlu0 %v3078, 32
        %v3322 = vpop.permute.xlu0 %3321
        %3323 = vrot.lane.b32.xlu0 %v3088, 32
        %v3324 = vpop.permute.xlu0 %3323
        %3325 = vrot.lane.b32.xlu0 %v3098, 32
        %v3326 = vpop.permute.xlu0 %3325
        %3327 = vrot.lane.b32.xlu0 %v3112, 32
        %v3328 = vpop.permute.xlu0 %3327
        %3329 = vrot.lane.b32.xlu0 %v3122, 32
        %v3330 = vpop.permute.xlu0 %3329
        %3331 = vrot.lane.b32.xlu0 %v3132, 32
        %v3332 = vpop.permute.xlu0 %3331
        %3333 = vrot.lane.b32.xlu0 %v3142, 32
        %v3334 = vpop.permute.xlu0 %3333
        %3335 = vrot.lane.b32.xlu0 %v3156, 32
        %v3336 = vpop.permute.xlu0 %3335
        %3337 = vrot.lane.b32.xlu0 %v3166, 32
        %v3338 = vpop.permute.xlu0 %3337
        %3339 = vrot.lane.b32.xlu0 %v3176, 32
        %v3340 = vpop.permute.xlu0 %3339
        %3341 = vrot.lane.b32.xlu0 %v3186, 32
        %v3342 = vpop.permute.xlu0 %3341
        %3343 = vrot.lane.b32.xlu0 %v3200, 32
        %v3344 = vpop.permute.xlu0 %3343
        %3345 = vrot.lane.b32.xlu0 %v3210, 32
        %v3346 = vpop.permute.xlu0 %3345
        %3347 = vrot.lane.b32.xlu0 %v3220, 32
        %v3348 = vpop.permute.xlu0 %3347
        %3349 = vrot.lane.b32.xlu0 %v3230, 32
        %v3350 = vpop.permute.xlu0 %3349
        %vm3411 = vcmask 322816
        %3412 = vst.msk [vmem:[#allocation2] sm:$0xf] %vm3411, %v3232
        %3413 = vst.msk [vmem:[#allocation2 + $0x4] sm:$0xf] %vm3411, %v3234
        %3414 = vst.msk [vmem:[#allocation2 + $0x8] sm:$0xf] %vm3411, %v3236
        %3415 = vst.msk [vmem:[#allocation2 + $0xc] sm:$0xf] %vm3411, %v3238
        %3416 = vst.msk [vmem:[#allocation2 + $0x10] sm:$0xf] %vm3411, %v3240
        %3417 = vst.msk [vmem:[#allocation2 + $0x14] sm:$0xf] %vm3411, %v3242
        %3418 = vst.msk [vmem:[#allocation2 + $0x18] sm:$0xf] %vm3411, %v3244
        %3419 = vst.msk [vmem:[#allocation2 + $0x1c] sm:$0xf] %vm3411, %v3246
        %3420 = vst.msk [vmem:[#allocation2 + $0x20] sm:$0xf] %vm3411, %v3248
        %3421 = vst.msk [vmem:[#allocation2 + $0x24] sm:$0xf] %vm3411, %v3250
        %3422 = vst.msk [vmem:[#allocation2 + $0x28] sm:$0xf] %vm3411, %v3252
        %3423 = vst.msk [vmem:[#allocation2 + $0x2c] sm:$0xf] %vm3411, %v3254
        %3424 = vst.msk [vmem:[#allocation2 + $0x30] sm:$0xf] %vm3411, %v3256
        %3425 = vst.msk [vmem:[#allocation2 + $0x34] sm:$0xf] %vm3411, %v3258
        %3426 = vst.msk [vmem:[#allocation2 + $0x38] sm:$0xf] %vm3411, %v3260
        %3427 = vst.msk [vmem:[#allocation2 + $0x3c] sm:$0xf] %vm3411, %v3262
        %3428 = vst.msk [vmem:[#allocation2 + $0x40] sm:$0xf] %vm3411, %v3264
        %3429 = vst.msk [vmem:[#allocation2 + $0x44] sm:$0xf] %vm3411, %v3266
        %3430 = vst.msk [vmem:[#allocation2 + $0x48] sm:$0xf] %vm3411, %v3268
        %3431 = vst.msk [vmem:[#allocation2 + $0x4c] sm:$0xf] %vm3411, %v3270
        %3432 = vst.msk [vmem:[#allocation2 + $0x50] sm:$0xf] %vm3411, %v3272
        %3433 = vst.msk [vmem:[#allocation2 + $0x54] sm:$0xf] %vm3411, %v3274
        %3434 = vst.msk [vmem:[#allocation2 + $0x58] sm:$0xf] %vm3411, %v3276
        %3435 = vst.msk [vmem:[#allocation2 + $0x5c] sm:$0xf] %vm3411, %v3278
        %3436 = vst.msk [vmem:[#allocation2 + $0x60] sm:$0xf] %vm3411, %v3280
        %3437 = vst.msk [vmem:[#allocation2 + $0x64] sm:$0xf] %vm3411, %v3282
        %3438 = vst.msk [vmem:[#allocation2 + $0x68] sm:$0xf] %vm3411, %v3284
        %3439 = vst.msk [vmem:[#allocation2 + $0x6c] sm:$0xf] %vm3411, %v3286
        %3440 = vst.msk [vmem:[#allocation2 + $0x70] sm:$0xf] %vm3411, %v3288
        %3441 = vst.msk [vmem:[#allocation2 + $0x74] sm:$0xf] %vm3411, %v3290
        %3442 = vst.msk [vmem:[#allocation2 + $0x78] sm:$0xf] %vm3411, %v3292
        %3443 = vst.msk [vmem:[#allocation2 + $0x7c] sm:$0xf] %vm3411, %v3294
        %3444 = vst.msk [vmem:[#allocation2 + $0x80] sm:$0xf] %vm3411, %v3296
        %3445 = vst.msk [vmem:[#allocation2 + $0x84] sm:$0xf] %vm3411, %v3298
        %3446 = vst.msk [vmem:[#allocation2 + $0x88] sm:$0xf] %vm3411, %v3300
        %3447 = vst.msk [vmem:[#allocation2 + $0x8c] sm:$0xf] %vm3411, %v3302
        %3448 = vst.msk [vmem:[#allocation2 + $0x90] sm:$0xf] %vm3411, %v3304
        %3449 = vst.msk [vmem:[#allocation2 + $0x94] sm:$0xf] %vm3411, %v3306
        %3450 = vst.msk [vmem:[#allocation2 + $0x98] sm:$0xf] %vm3411, %v3308
        %3451 = vst.msk [vmem:[#allocation2 + $0x9c] sm:$0xf] %vm3411, %v3310
        %3452 = vst.msk [vmem:[#allocation2 + $0xa0] sm:$0xf] %vm3411, %v3312
        %3453 = vst.msk [vmem:[#allocation2 + $0xa4] sm:$0xf] %vm3411, %v3314
        %3454 = vst.msk [vmem:[#allocation2 + $0xa8] sm:$0xf] %vm3411, %v3316
        %3455 = vst.msk [vmem:[#allocation2 + $0xac] sm:$0xf] %vm3411, %v3318
        %3456 = vst.msk [vmem:[#allocation2 + $0xb0] sm:$0xf] %vm3411, %v3320
        %3457 = vst.msk [vmem:[#allocation2 + $0xb4] sm:$0xf] %vm3411, %v3322
        %3458 = vst.msk [vmem:[#allocation2 + $0xb8] sm:$0xf] %vm3411, %v3324
        %3459 = vst.msk [vmem:[#allocation2 + $0xbc] sm:$0xf] %vm3411, %v3326
        %3460 = vst.msk [vmem:[#allocation2 + $0xc0] sm:$0xf] %vm3411, %v3328
        %3461 = vst.msk [vmem:[#allocation2 + $0xc4] sm:$0xf] %vm3411, %v3330
        %3462 = vst.msk [vmem:[#allocation2 + $0xc8] sm:$0xf] %vm3411, %v3332
        %3463 = vst.msk [vmem:[#allocation2 + $0xcc] sm:$0xf] %vm3411, %v3334
        %3464 = vst.msk [vmem:[#allocation2 + $0xd0] sm:$0xf] %vm3411, %v3336
        %3465 = vst.msk [vmem:[#allocation2 + $0xd4] sm:$0xf] %vm3411, %v3338
        %3466 = vst.msk [vmem:[#allocation2 + $0xd8] sm:$0xf] %vm3411, %v3340
        %3467 = vst.msk [vmem:[#allocation2 + $0xdc] sm:$0xf] %vm3411, %v3342
        %3468 = vst.msk [vmem:[#allocation2 + $0xe0] sm:$0xf] %vm3411, %v3344
        %3469 = vst.msk [vmem:[#allocation2 + $0xe4] sm:$0xf] %vm3411, %v3346
        %3470 = vst.msk [vmem:[#allocation2 + $0xe8] sm:$0xf] %vm3411, %v3348
        %3471 = vst.msk [vmem:[#allocation2 + $0xec] sm:$0xf] %vm3411, %v3350
        %v3472 = vld [vmem:[%s303] sm:$0xf]
        %v3473 = vld [vmem:[%s303 + $0x4] sm:$0xf]
        %v3474 = vld [vmem:[%s303 + $0x8] sm:$0xf]
        %v3475 = vld [vmem:[%s303 + $0xc] sm:$0xf]
        %v3476 = vld [vmem:[%s303 + $0x10] sm:$0x1]
        %v3478 = vshrl.u32 %v3472, 16
        %v3480 = vrot.slane %v3478, 4
        %v3481 = vshll.u32 %v3472, 16
        %v3483 = vrot.slane %v3481, 5
        %v3484 = vor.u32 %v3480, %v3483
        %v3485 = vrot.slane %v3484, 4
        %v3487 = vshll.u32 %v3473, 16
        %v3489 = vrot.slane %v3487, 5
        %v3490 = vsel %vm520, %v3485, %v3489
        %v3491 = vshrl.u32 %v3473, 16
        %v3493 = vrot.slane %v3491, 4
        %v3494 = vor.u32 %v3493, %v3489
        %v3495 = vrot.slane %v3494, 4
        %v3497 = vshll.u32 %v3474, 16
        %v3499 = vrot.slane %v3497, 5
        %v3500 = vsel %vm520, %v3495, %v3499
        %v3501 = vshrl.u32 %v3474, 16
        %v3503 = vrot.slane %v3501, 4
        %v3504 = vor.u32 %v3503, %v3499
        %v3505 = vrot.slane %v3504, 4
        %v3507 = vshll.u32 %v3475, 16
        %v3509 = vrot.slane %v3507, 5
        %v3510 = vsel %vm520, %v3505, %v3509
        %v3511 = vshrl.u32 %v3475, 16
        %v3513 = vrot.slane %v3511, 4
        %v3514 = vor.u32 %v3513, %v3509
        %v3515 = vrot.slane %v3514, 4
        %v3517 = vshll.u32 %v3476, 16
        %v3519 = vrot.slane %v3517, 5
        %v3520 = vsel %vm520, %v3515, %v3519
        %3521 = vrot.lane.b32.xlu0 %v3490, 32
        %v3522 = vpop.permute.xlu0 %3521
        %3523 = vrot.lane.b32.xlu0 %v3500, 32
        %v3524 = vpop.permute.xlu0 %3523
        %3525 = vrot.lane.b32.xlu0 %v3510, 32
        %v3526 = vpop.permute.xlu0 %3525
        %3527 = vrot.lane.b32.xlu0 %v3520, 32
        %v3528 = vpop.permute.xlu0 %3527
        %3533 = vst.msk [vmem:[#allocation2 + $0xf0] sm:$0xf] %vm3411, %v3522
        %3534 = vst.msk [vmem:[#allocation2 + $0xf4] sm:$0xf] %vm3411, %v3524
        %3535 = vst.msk [vmem:[#allocation2 + $0xf8] sm:$0xf] %vm3411, %v3526
        %3536 = vst.msk [vmem:[#allocation2 + $0xfc] sm:$0xf] %vm3411, %v3528
        %v3537 = vld [vmem:[%s2110] sm:$0xe]
        %v3538 = vld [vmem:[%s2110 + $0x4] sm:$0xf]
        %v3539 = vld [vmem:[%s2110 + $0x8] sm:$0xf]
        %v3540 = vld [vmem:[%s2110 + $0xc] sm:$0xf]
        %v3541 = vld [vmem:[%s2110 + $0x10] sm:$0x1]
        %v3542 = vld [vmem:[%s2110 + $0x14] sm:$0xe]
        %v3543 = vld [vmem:[%s2110 + $0x18] sm:$0xf]
        %v3544 = vld [vmem:[%s2110 + $0x1c] sm:$0xf]
        %v3545 = vld [vmem:[%s2110 + $0x20] sm:$0xf]
        %v3546 = vld [vmem:[%s2110 + $0x24] sm:$0x1]
        %v3547 = vld [vmem:[%s2110 + $0x28] sm:$0xe]
        %v3548 = vld [vmem:[%s2110 + $0x2c] sm:$0xf]
        %v3549 = vld [vmem:[%s2110 + $0x30] sm:$0xf]
        %v3550 = vld [vmem:[%s2110 + $0x34] sm:$0xf]
        %v3551 = vld [vmem:[%s2110 + $0x38] sm:$0x1]
        %v3552 = vld [vmem:[%s2110 + $0x3c] sm:$0xe]
        %v3553 = vld [vmem:[%s2110 + $0x40] sm:$0xf]
        %v3554 = vld [vmem:[%s2110 + $0x44] sm:$0xf]
        %v3555 = vld [vmem:[%s2110 + $0x48] sm:$0xf]
        %v3556 = vld [vmem:[%s2110 + $0x4c] sm:$0x1]
        %v3557 = vld [vmem:[%s2110 + $0x50] sm:$0xe]
        %v3558 = vld [vmem:[%s2110 + $0x54] sm:$0xf]
        %v3559 = vld [vmem:[%s2110 + $0x58] sm:$0xf]
        %v3560 = vld [vmem:[%s2110 + $0x5c] sm:$0xf]
        %v3561 = vld [vmem:[%s2110 + $0x60] sm:$0x1]
        %v3562 = vld [vmem:[%s2110 + $0x64] sm:$0xe]
        %v3563 = vld [vmem:[%s2110 + $0x68] sm:$0xf]
        %v3564 = vld [vmem:[%s2110 + $0x6c] sm:$0xf]
        %v3565 = vld [vmem:[%s2110 + $0x70] sm:$0xf]
        %v3566 = vld [vmem:[%s2110 + $0x74] sm:$0x1]
        %v3567 = vld [vmem:[%s2110 + $0x78] sm:$0xe]
        %v3568 = vld [vmem:[%s2110 + $0x7c] sm:$0xf]
        %v3569 = vld [vmem:[%s2110 + $0x80] sm:$0xf]
        %v3570 = vld [vmem:[%s2110 + $0x84] sm:$0xf]
        %v3571 = vld [vmem:[%s2110 + $0x88] sm:$0x1]
        %v3572 = vld [vmem:[%s2110 + $0x8c] sm:$0xe]
        %v3573 = vld [vmem:[%s2110 + $0x90] sm:$0xf]
        %v3574 = vld [vmem:[%s2110 + $0x94] sm:$0xf]
        %v3575 = vld [vmem:[%s2110 + $0x98] sm:$0xf]
        %v3576 = vld [vmem:[%s2110 + $0x9c] sm:$0x1]
        %v3577 = vld [vmem:[%s2110 + $0xa0] sm:$0xe]
        %v3578 = vld [vmem:[%s2110 + $0xa4] sm:$0xf]
        %v3579 = vld [vmem:[%s2110 + $0xa8] sm:$0xf]
        %v3580 = vld [vmem:[%s2110 + $0xac] sm:$0xf]
        %v3581 = vld [vmem:[%s2110 + $0xb0] sm:$0x1]
        %v3582 = vld [vmem:[%s2110 + $0xb4] sm:$0xe]
        %v3583 = vld [vmem:[%s2110 + $0xb8] sm:$0xf]
        %v3584 = vld [vmem:[%s2110 + $0xbc] sm:$0xf]
        %v3585 = vld [vmem:[%s2110 + $0xc0] sm:$0xf]
        %v3586 = vld [vmem:[%s2110 + $0xc4] sm:$0x1]
        %v3587 = vld [vmem:[%s2110 + $0xc8] sm:$0xe]
        %v3588 = vld [vmem:[%s2110 + $0xcc] sm:$0xf]
        %v3589 = vld [vmem:[%s2110 + $0xd0] sm:$0xf]
        %v3590 = vld [vmem:[%s2110 + $0xd4] sm:$0xf]
        %v3591 = vld [vmem:[%s2110 + $0xd8] sm:$0x1]
        %v3592 = vld [vmem:[%s2110 + $0xdc] sm:$0xe]
        %v3593 = vld [vmem:[%s2110 + $0xe0] sm:$0xf]
        %v3594 = vld [vmem:[%s2110 + $0xe4] sm:$0xf]
        %v3595 = vld [vmem:[%s2110 + $0xe8] sm:$0xf]
        %v3596 = vld [vmem:[%s2110 + $0xec] sm:$0x1]
        %v3597 = vld [vmem:[%s2110 + $0xf0] sm:$0xe]
        %v3598 = vld [vmem:[%s2110 + $0xf4] sm:$0xf]
        %v3599 = vld [vmem:[%s2110 + $0xf8] sm:$0xf]
        %v3600 = vld [vmem:[%s2110 + $0xfc] sm:$0xf]
        %v3601 = vld [vmem:[%s2110 + $0x100] sm:$0x1]
        %v3602 = vld [vmem:[%s2110 + $0x104] sm:$0xe]
        %v3603 = vld [vmem:[%s2110 + $0x108] sm:$0xf]
        %v3604 = vld [vmem:[%s2110 + $0x10c] sm:$0xf]
        %v3605 = vld [vmem:[%s2110 + $0x110] sm:$0xf]
        %v3606 = vld [vmem:[%s2110 + $0x114] sm:$0x1]
        %v3607 = vld [vmem:[%s2110 + $0x118] sm:$0xe]
        %v3608 = vld [vmem:[%s2110 + $0x11c] sm:$0xf]
        %v3609 = vld [vmem:[%s2110 + $0x120] sm:$0xf]
        %v3610 = vld [vmem:[%s2110 + $0x124] sm:$0xf]
        %v3611 = vld [vmem:[%s2110 + $0x128] sm:$0x1]
        %v3687 = vrot.slane %v3537, 5
        %v3688 = vrot.slane %v3687, 4
        %v3689 = vrot.slane %v3538, 5
        %v3690 = vsel %vm1644, %v3688, %v3689
        %v3691 = vrot.slane %v3689, 4
        %v3692 = vrot.slane %v3539, 5
        %v3693 = vsel %vm1644, %v3691, %v3692
        %v3694 = vrot.slane %v3692, 4
        %v3695 = vrot.slane %v3540, 5
        %v3696 = vsel %vm1644, %v3694, %v3695
        %v3697 = vrot.slane %v3695, 4
        %v3698 = vrot.slane %v3541, 5
        %v3699 = vsel %vm1644, %v3697, %v3698
        %v3700 = vrot.slane %v3542, 5
        %v3701 = vrot.slane %v3700, 4
        %v3702 = vrot.slane %v3543, 5
        %v3703 = vsel %vm1644, %v3701, %v3702
        %v3704 = vrot.slane %v3702, 4
        %v3705 = vrot.slane %v3544, 5
        %v3706 = vsel %vm1644, %v3704, %v3705
        %v3707 = vrot.slane %v3705, 4
        %v3708 = vrot.slane %v3545, 5
        %v3709 = vsel %vm1644, %v3707, %v3708
        %v3710 = vrot.slane %v3708, 4
        %v3711 = vrot.slane %v3546, 5
        %v3712 = vsel %vm1644, %v3710, %v3711
        %v3713 = vrot.slane %v3547, 5
        %v3714 = vrot.slane %v3713, 4
        %v3715 = vrot.slane %v3548, 5
        %v3716 = vsel %vm1644, %v3714, %v3715
        %v3717 = vrot.slane %v3715, 4
        %v3718 = vrot.slane %v3549, 5
        %v3719 = vsel %vm1644, %v3717, %v3718
        %v3720 = vrot.slane %v3718, 4
        %v3721 = vrot.slane %v3550, 5
        %v3722 = vsel %vm1644, %v3720, %v3721
        %v3723 = vrot.slane %v3721, 4
        %v3724 = vrot.slane %v3551, 5
        %v3725 = vsel %vm1644, %v3723, %v3724
        %v3726 = vrot.slane %v3552, 5
        %v3727 = vrot.slane %v3726, 4
        %v3728 = vrot.slane %v3553, 5
        %v3729 = vsel %vm1644, %v3727, %v3728
        %v3730 = vrot.slane %v3728, 4
        %v3731 = vrot.slane %v3554, 5
        %v3732 = vsel %vm1644, %v3730, %v3731
        %v3733 = vrot.slane %v3731, 4
        %v3734 = vrot.slane %v3555, 5
        %v3735 = vsel %vm1644, %v3733, %v3734
        %v3736 = vrot.slane %v3734, 4
        %v3737 = vrot.slane %v3556, 5
        %v3738 = vsel %vm1644, %v3736, %v3737
        %v3739 = vrot.slane %v3557, 5
        %v3740 = vrot.slane %v3739, 4
        %v3741 = vrot.slane %v3558, 5
        %v3742 = vsel %vm1644, %v3740, %v3741
        %v3743 = vrot.slane %v3741, 4
        %v3744 = vrot.slane %v3559, 5
        %v3745 = vsel %vm1644, %v3743, %v3744
        %v3746 = vrot.slane %v3744, 4
        %v3747 = vrot.slane %v3560, 5
        %v3748 = vsel %vm1644, %v3746, %v3747
        %v3749 = vrot.slane %v3747, 4
        %v3750 = vrot.slane %v3561, 5
        %v3751 = vsel %vm1644, %v3749, %v3750
        %v3752 = vrot.slane %v3562, 5
        %v3753 = vrot.slane %v3752, 4
        %v3754 = vrot.slane %v3563, 5
        %v3755 = vsel %vm1644, %v3753, %v3754
        %v3756 = vrot.slane %v3754, 4
        %v3757 = vrot.slane %v3564, 5
        %v3758 = vsel %vm1644, %v3756, %v3757
        %v3759 = vrot.slane %v3757, 4
        %v3760 = vrot.slane %v3565, 5
        %v3761 = vsel %vm1644, %v3759, %v3760
        %v3762 = vrot.slane %v3760, 4
        %v3763 = vrot.slane %v3566, 5
        %v3764 = vsel %vm1644, %v3762, %v3763
        %v3765 = vrot.slane %v3567, 5
        %v3766 = vrot.slane %v3765, 4
        %v3767 = vrot.slane %v3568, 5
        %v3768 = vsel %vm1644, %v3766, %v3767
        %v3769 = vrot.slane %v3767, 4
        %v3770 = vrot.slane %v3569, 5
        %v3771 = vsel %vm1644, %v3769, %v3770
        %v3772 = vrot.slane %v3770, 4
        %v3773 = vrot.slane %v3570, 5
        %v3774 = vsel %vm1644, %v3772, %v3773
        %v3775 = vrot.slane %v3773, 4
        %v3776 = vrot.slane %v3571, 5
        %v3777 = vsel %vm1644, %v3775, %v3776
        %v3778 = vrot.slane %v3572, 5
        %v3779 = vrot.slane %v3778, 4
        %v3780 = vrot.slane %v3573, 5
        %v3781 = vsel %vm1644, %v3779, %v3780
        %v3782 = vrot.slane %v3780, 4
        %v3783 = vrot.slane %v3574, 5
        %v3784 = vsel %vm1644, %v3782, %v3783
        %v3785 = vrot.slane %v3783, 4
        %v3786 = vrot.slane %v3575, 5
        %v3787 = vsel %vm1644, %v3785, %v3786
        %v3788 = vrot.slane %v3786, 4
        %v3789 = vrot.slane %v3576, 5
        %v3790 = vsel %vm1644, %v3788, %v3789
        %v3791 = vrot.slane %v3577, 5
        %v3792 = vrot.slane %v3791, 4
        %v3793 = vrot.slane %v3578, 5
        %v3794 = vsel %vm1644, %v3792, %v3793
        %v3795 = vrot.slane %v3793, 4
        %v3796 = vrot.slane %v3579, 5
        %v3797 = vsel %vm1644, %v3795, %v3796
        %v3798 = vrot.slane %v3796, 4
        %v3799 = vrot.slane %v3580, 5
        %v3800 = vsel %vm1644, %v3798, %v3799
        %v3801 = vrot.slane %v3799, 4
        %v3802 = vrot.slane %v3581, 5
        %v3803 = vsel %vm1644, %v3801, %v3802
        %v3804 = vrot.slane %v3582, 5
        %v3805 = vrot.slane %v3804, 4
        %v3806 = vrot.slane %v3583, 5
        %v3807 = vsel %vm1644, %v3805, %v3806
        %v3808 = vrot.slane %v3806, 4
        %v3809 = vrot.slane %v3584, 5
        %v3810 = vsel %vm1644, %v3808, %v3809
        %v3811 = vrot.slane %v3809, 4
        %v3812 = vrot.slane %v3585, 5
        %v3813 = vsel %vm1644, %v3811, %v3812
        %v3814 = vrot.slane %v3812, 4
        %v3815 = vrot.slane %v3586, 5
        %v3816 = vsel %vm1644, %v3814, %v3815
        %v3817 = vrot.slane %v3587, 5
        %v3818 = vrot.slane %v3817, 4
        %v3819 = vrot.slane %v3588, 5
        %v3820 = vsel %vm1644, %v3818, %v3819
        %v3821 = vrot.slane %v3819, 4
        %v3822 = vrot.slane %v3589, 5
        %v3823 = vsel %vm1644, %v3821, %v3822
        %v3824 = vrot.slane %v3822, 4
        %v3825 = vrot.slane %v3590, 5
        %v3826 = vsel %vm1644, %v3824, %v3825
        %v3827 = vrot.slane %v3825, 4
        %v3828 = vrot.slane %v3591, 5
        %v3829 = vsel %vm1644, %v3827, %v3828
        %v3830 = vrot.slane %v3592, 5
        %v3831 = vrot.slane %v3830, 4
        %v3832 = vrot.slane %v3593, 5
        %v3833 = vsel %vm1644, %v3831, %v3832
        %v3834 = vrot.slane %v3832, 4
        %v3835 = vrot.slane %v3594, 5
        %v3836 = vsel %vm1644, %v3834, %v3835
        %v3837 = vrot.slane %v3835, 4
        %v3838 = vrot.slane %v3595, 5
        %v3839 = vsel %vm1644, %v3837, %v3838
        %v3840 = vrot.slane %v3838, 4
        %v3841 = vrot.slane %v3596, 5
        %v3842 = vsel %vm1644, %v3840, %v3841
        %v3843 = vrot.slane %v3597, 5
        %v3844 = vrot.slane %v3843, 4
        %v3845 = vrot.slane %v3598, 5
        %v3846 = vsel %vm1644, %v3844, %v3845
        %v3847 = vrot.slane %v3845, 4
        %v3848 = vrot.slane %v3599, 5
        %v3849 = vsel %vm1644, %v3847, %v3848
        %v3850 = vrot.slane %v3848, 4
        %v3851 = vrot.slane %v3600, 5
        %v3852 = vsel %vm1644, %v3850, %v3851
        %v3853 = vrot.slane %v3851, 4
        %v3854 = vrot.slane %v3601, 5
        %v3855 = vsel %vm1644, %v3853, %v3854
        %v3856 = vrot.slane %v3602, 5
        %v3857 = vrot.slane %v3856, 4
        %v3858 = vrot.slane %v3603, 5
        %v3859 = vsel %vm1644, %v3857, %v3858
        %v3860 = vrot.slane %v3858, 4
        %v3861 = vrot.slane %v3604, 5
        %v3862 = vsel %vm1644, %v3860, %v3861
        %v3863 = vrot.slane %v3861, 4
        %v3864 = vrot.slane %v3605, 5
        %v3865 = vsel %vm1644, %v3863, %v3864
        %v3866 = vrot.slane %v3864, 4
        %v3867 = vrot.slane %v3606, 5
        %v3868 = vsel %vm1644, %v3866, %v3867
        %v3869 = vrot.slane %v3607, 5
        %v3870 = vrot.slane %v3869, 4
        %v3871 = vrot.slane %v3608, 5
        %v3872 = vsel %vm1644, %v3870, %v3871
        %v3873 = vrot.slane %v3871, 4
        %v3874 = vrot.slane %v3609, 5
        %v3875 = vsel %vm1644, %v3873, %v3874
        %v3876 = vrot.slane %v3874, 4
        %v3877 = vrot.slane %v3610, 5
        %v3878 = vsel %vm1644, %v3876, %v3877
        %v3879 = vrot.slane %v3877, 4
        %v3880 = vrot.slane %v3611, 5
        %v3881 = vsel %vm1644, %v3879, %v3880
        %3882 = vrot.lane.b32.xlu0 %v3690, 40
        %v3883 = vpop.permute.xlu0 %3882
        %3884 = vrot.lane.b32.xlu0 %v3693, 40
        %v3885 = vpop.permute.xlu0 %3884
        %3886 = vrot.lane.b32.xlu0 %v3696, 40
        %v3887 = vpop.permute.xlu0 %3886
        %3888 = vrot.lane.b32.xlu0 %v3699, 40
        %v3889 = vpop.permute.xlu0 %3888
        %3890 = vrot.lane.b32.xlu0 %v3703, 40
        %v3891 = vpop.permute.xlu0 %3890
        %3892 = vrot.lane.b32.xlu0 %v3706, 40
        %v3893 = vpop.permute.xlu0 %3892
        %3894 = vrot.lane.b32.xlu0 %v3709, 40
        %v3895 = vpop.permute.xlu0 %3894
        %3896 = vrot.lane.b32.xlu0 %v3712, 40
        %v3897 = vpop.permute.xlu0 %3896
        %3898 = vrot.lane.b32.xlu0 %v3716, 40
        %v3899 = vpop.permute.xlu0 %3898
        %3900 = vrot.lane.b32.xlu0 %v3719, 40
        %v3901 = vpop.permute.xlu0 %3900
        %3902 = vrot.lane.b32.xlu0 %v3722, 40
        %v3903 = vpop.permute.xlu0 %3902
        %3904 = vrot.lane.b32.xlu0 %v3725, 40
        %v3905 = vpop.permute.xlu0 %3904
        %3906 = vrot.lane.b32.xlu0 %v3729, 40
        %v3907 = vpop.permute.xlu0 %3906
        %3908 = vrot.lane.b32.xlu0 %v3732, 40
        %v3909 = vpop.permute.xlu0 %3908
        %3910 = vrot.lane.b32.xlu0 %v3735, 40
        %v3911 = vpop.permute.xlu0 %3910
        %3912 = vrot.lane.b32.xlu0 %v3738, 40
        %v3913 = vpop.permute.xlu0 %3912
        %3914 = vrot.lane.b32.xlu0 %v3742, 40
        %v3915 = vpop.permute.xlu0 %3914
        %3916 = vrot.lane.b32.xlu0 %v3745, 40
        %v3917 = vpop.permute.xlu0 %3916
        %3918 = vrot.lane.b32.xlu0 %v3748, 40
        %v3919 = vpop.permute.xlu0 %3918
        %3920 = vrot.lane.b32.xlu0 %v3751, 40
        %v3921 = vpop.permute.xlu0 %3920
        %3922 = vrot.lane.b32.xlu0 %v3755, 40
        %v3923 = vpop.permute.xlu0 %3922
        %3924 = vrot.lane.b32.xlu0 %v3758, 40
        %v3925 = vpop.permute.xlu0 %3924
        %3926 = vrot.lane.b32.xlu0 %v3761, 40
        %v3927 = vpop.permute.xlu0 %3926
        %3928 = vrot.lane.b32.xlu0 %v3764, 40
        %v3929 = vpop.permute.xlu0 %3928
        %3930 = vrot.lane.b32.xlu0 %v3768, 40
        %v3931 = vpop.permute.xlu0 %3930
        %3932 = vrot.lane.b32.xlu0 %v3771, 40
        %v3933 = vpop.permute.xlu0 %3932
        %3934 = vrot.lane.b32.xlu0 %v3774, 40
        %v3935 = vpop.permute.xlu0 %3934
        %3936 = vrot.lane.b32.xlu0 %v3777, 40
        %v3937 = vpop.permute.xlu0 %3936
        %3938 = vrot.lane.b32.xlu0 %v3781, 40
        %v3939 = vpop.permute.xlu0 %3938
        %3940 = vrot.lane.b32.xlu0 %v3784, 40
        %v3941 = vpop.permute.xlu0 %3940
        %3942 = vrot.lane.b32.xlu0 %v3787, 40
        %v3943 = vpop.permute.xlu0 %3942
        %3944 = vrot.lane.b32.xlu0 %v3790, 40
        %v3945 = vpop.permute.xlu0 %3944
        %3946 = vrot.lane.b32.xlu0 %v3794, 40
        %v3947 = vpop.permute.xlu0 %3946
        %3948 = vrot.lane.b32.xlu0 %v3797, 40
        %v3949 = vpop.permute.xlu0 %3948
        %3950 = vrot.lane.b32.xlu0 %v3800, 40
        %v3951 = vpop.permute.xlu0 %3950
        %3952 = vrot.lane.b32.xlu0 %v3803, 40
        %v3953 = vpop.permute.xlu0 %3952
        %3954 = vrot.lane.b32.xlu0 %v3807, 40
        %v3955 = vpop.permute.xlu0 %3954
        %3956 = vrot.lane.b32.xlu0 %v3810, 40
        %v3957 = vpop.permute.xlu0 %3956
        %3958 = vrot.lane.b32.xlu0 %v3813, 40
        %v3959 = vpop.permute.xlu0 %3958
        %3960 = vrot.lane.b32.xlu0 %v3816, 40
        %v3961 = vpop.permute.xlu0 %3960
        %3962 = vrot.lane.b32.xlu0 %v3820, 40
        %v3963 = vpop.permute.xlu0 %3962
        %3964 = vrot.lane.b32.xlu0 %v3823, 40
        %v3965 = vpop.permute.xlu0 %3964
        %3966 = vrot.lane.b32.xlu0 %v3826, 40
        %v3967 = vpop.permute.xlu0 %3966
        %3968 = vrot.lane.b32.xlu0 %v3829, 40
        %v3969 = vpop.permute.xlu0 %3968
        %3970 = vrot.lane.b32.xlu0 %v3833, 40
        %v3971 = vpop.permute.xlu0 %3970
        %3972 = vrot.lane.b32.xlu0 %v3836, 40
        %v3973 = vpop.permute.xlu0 %3972
        %3974 = vrot.lane.b32.xlu0 %v3839, 40
        %v3975 = vpop.permute.xlu0 %3974
        %3976 = vrot.lane.b32.xlu0 %v3842, 40
        %v3977 = vpop.permute.xlu0 %3976
        %3978 = vrot.lane.b32.xlu0 %v3846, 40
        %v3979 = vpop.permute.xlu0 %3978
        %3980 = vrot.lane.b32.xlu0 %v3849, 40
        %v3981 = vpop.permute.xlu0 %3980
        %3982 = vrot.lane.b32.xlu0 %v3852, 40
        %v3983 = vpop.permute.xlu0 %3982
        %3984 = vrot.lane.b32.xlu0 %v3855, 40
        %v3985 = vpop.permute.xlu0 %3984
        %3986 = vrot.lane.b32.xlu0 %v3859, 40
        %v3987 = vpop.permute.xlu0 %3986
        %3988 = vrot.lane.b32.xlu0 %v3862, 40
        %v3989 = vpop.permute.xlu0 %3988
        %3990 = vrot.lane.b32.xlu0 %v3865, 40
        %v3991 = vpop.permute.xlu0 %3990
        %3992 = vrot.lane.b32.xlu0 %v3868, 40
        %v3993 = vpop.permute.xlu0 %3992
        %3994 = vrot.lane.b32.xlu0 %v3872, 40
        %v3995 = vpop.permute.xlu0 %3994
        %3996 = vrot.lane.b32.xlu0 %v3875, 40
        %v3997 = vpop.permute.xlu0 %3996
        %3998 = vrot.lane.b32.xlu0 %v3878, 40
        %v3999 = vpop.permute.xlu0 %3998
        %4000 = vrot.lane.b32.xlu0 %v3881, 40
        %v4001 = vpop.permute.xlu0 %4000
        %vm4062 = vcmask 388416
        %4063 = vst.msk [vmem:[#allocation2] sm:$0xf] %vm4062, %v3883
        %4064 = vst.msk [vmem:[#allocation2 + $0x4] sm:$0xf] %vm4062, %v3885
        %4065 = vst.msk [vmem:[#allocation2 + $0x8] sm:$0xf] %vm4062, %v3887
        %4066 = vst.msk [vmem:[#allocation2 + $0xc] sm:$0xf] %vm4062, %v3889
        %4067 = vst.msk [vmem:[#allocation2 + $0x10] sm:$0xf] %vm4062, %v3891
        %4068 = vst.msk [vmem:[#allocation2 + $0x14] sm:$0xf] %vm4062, %v3893
        %4069 = vst.msk [vmem:[#allocation2 + $0x18] sm:$0xf] %vm4062, %v3895
        %4070 = vst.msk [vmem:[#allocation2 + $0x1c] sm:$0xf] %vm4062, %v3897
        %4071 = vst.msk [vmem:[#allocation2 + $0x20] sm:$0xf] %vm4062, %v3899
        %4072 = vst.msk [vmem:[#allocation2 + $0x24] sm:$0xf] %vm4062, %v3901
        %4073 = vst.msk [vmem:[#allocation2 + $0x28] sm:$0xf] %vm4062, %v3903
        %4074 = vst.msk [vmem:[#allocation2 + $0x2c] sm:$0xf] %vm4062, %v3905
        %4075 = vst.msk [vmem:[#allocation2 + $0x30] sm:$0xf] %vm4062, %v3907
        %4076 = vst.msk [vmem:[#allocation2 + $0x34] sm:$0xf] %vm4062, %v3909
        %4077 = vst.msk [vmem:[#allocation2 + $0x38] sm:$0xf] %vm4062, %v3911
        %4078 = vst.msk [vmem:[#allocation2 + $0x3c] sm:$0xf] %vm4062, %v3913
        %4079 = vst.msk [vmem:[#allocation2 + $0x40] sm:$0xf] %vm4062, %v3915
        %4080 = vst.msk [vmem:[#allocation2 + $0x44] sm:$0xf] %vm4062, %v3917
        %4081 = vst.msk [vmem:[#allocation2 + $0x48] sm:$0xf] %vm4062, %v3919
        %4082 = vst.msk [vmem:[#allocation2 + $0x4c] sm:$0xf] %vm4062, %v3921
        %4083 = vst.msk [vmem:[#allocation2 + $0x50] sm:$0xf] %vm4062, %v3923
        %4084 = vst.msk [vmem:[#allocation2 + $0x54] sm:$0xf] %vm4062, %v3925
        %4085 = vst.msk [vmem:[#allocation2 + $0x58] sm:$0xf] %vm4062, %v3927
        %4086 = vst.msk [vmem:[#allocation2 + $0x5c] sm:$0xf] %vm4062, %v3929
        %4087 = vst.msk [vmem:[#allocation2 + $0x60] sm:$0xf] %vm4062, %v3931
        %4088 = vst.msk [vmem:[#allocation2 + $0x64] sm:$0xf] %vm4062, %v3933
        %4089 = vst.msk [vmem:[#allocation2 + $0x68] sm:$0xf] %vm4062, %v3935
        %4090 = vst.msk [vmem:[#allocation2 + $0x6c] sm:$0xf] %vm4062, %v3937
        %4091 = vst.msk [vmem:[#allocation2 + $0x70] sm:$0xf] %vm4062, %v3939
        %4092 = vst.msk [vmem:[#allocation2 + $0x74] sm:$0xf] %vm4062, %v3941
        %4093 = vst.msk [vmem:[#allocation2 + $0x78] sm:$0xf] %vm4062, %v3943
        %4094 = vst.msk [vmem:[#allocation2 + $0x7c] sm:$0xf] %vm4062, %v3945
        %4095 = vst.msk [vmem:[#allocation2 + $0x80] sm:$0xf] %vm4062, %v3947
        %4096 = vst.msk [vmem:[#allocation2 + $0x84] sm:$0xf] %vm4062, %v3949
        %4097 = vst.msk [vmem:[#allocation2 + $0x88] sm:$0xf] %vm4062, %v3951
        %4098 = vst.msk [vmem:[#allocation2 + $0x8c] sm:$0xf] %vm4062, %v3953
        %4099 = vst.msk [vmem:[#allocation2 + $0x90] sm:$0xf] %vm4062, %v3955
        %4100 = vst.msk [vmem:[#allocation2 + $0x94] sm:$0xf] %vm4062, %v3957
        %4101 = vst.msk [vmem:[#allocation2 + $0x98] sm:$0xf] %vm4062, %v3959
        %4102 = vst.msk [vmem:[#allocation2 + $0x9c] sm:$0xf] %vm4062, %v3961
        %4103 = vst.msk [vmem:[#allocation2 + $0xa0] sm:$0xf] %vm4062, %v3963
        %4104 = vst.msk [vmem:[#allocation2 + $0xa4] sm:$0xf] %vm4062, %v3965
        %4105 = vst.msk [vmem:[#allocation2 + $0xa8] sm:$0xf] %vm4062, %v3967
        %4106 = vst.msk [vmem:[#allocation2 + $0xac] sm:$0xf] %vm4062, %v3969
        %4107 = vst.msk [vmem:[#allocation2 + $0xb0] sm:$0xf] %vm4062, %v3971
        %4108 = vst.msk [vmem:[#allocation2 + $0xb4] sm:$0xf] %vm4062, %v3973
        %4109 = vst.msk [vmem:[#allocation2 + $0xb8] sm:$0xf] %vm4062, %v3975
        %4110 = vst.msk [vmem:[#allocation2 + $0xbc] sm:$0xf] %vm4062, %v3977
        %4111 = vst.msk [vmem:[#allocation2 + $0xc0] sm:$0xf] %vm4062, %v3979
        %4112 = vst.msk [vmem:[#allocation2 + $0xc4] sm:$0xf] %vm4062, %v3981
        %4113 = vst.msk [vmem:[#allocation2 + $0xc8] sm:$0xf] %vm4062, %v3983
        %4114 = vst.msk [vmem:[#allocation2 + $0xcc] sm:$0xf] %vm4062, %v3985
        %4115 = vst.msk [vmem:[#allocation2 + $0xd0] sm:$0xf] %vm4062, %v3987
        %4116 = vst.msk [vmem:[#allocation2 + $0xd4] sm:$0xf] %vm4062, %v3989
        %4117 = vst.msk [vmem:[#allocation2 + $0xd8] sm:$0xf] %vm4062, %v3991
        %4118 = vst.msk [vmem:[#allocation2 + $0xdc] sm:$0xf] %vm4062, %v3993
        %4119 = vst.msk [vmem:[#allocation2 + $0xe0] sm:$0xf] %vm4062, %v3995
        %4120 = vst.msk [vmem:[#allocation2 + $0xe4] sm:$0xf] %vm4062, %v3997
        %4121 = vst.msk [vmem:[#allocation2 + $0xe8] sm:$0xf] %vm4062, %v3999
        %4122 = vst.msk [vmem:[#allocation2 + $0xec] sm:$0xf] %vm4062, %v4001
        %v4123 = vld [vmem:[%s303] sm:$0xe]
        %v4124 = vld [vmem:[%s303 + $0x4] sm:$0xf]
        %v4125 = vld [vmem:[%s303 + $0x8] sm:$0xf]
        %v4126 = vld [vmem:[%s303 + $0xc] sm:$0xf]
        %v4127 = vld [vmem:[%s303 + $0x10] sm:$0x1]
        %v4133 = vrot.slane %v4123, 5
        %v4134 = vrot.slane %v4133, 4
        %v4135 = vrot.slane %v4124, 5
        %v4136 = vsel %vm1644, %v4134, %v4135
        %v4137 = vrot.slane %v4135, 4
        %v4138 = vrot.slane %v4125, 5
        %v4139 = vsel %vm1644, %v4137, %v4138
        %v4140 = vrot.slane %v4138, 4
        %v4141 = vrot.slane %v4126, 5
        %v4142 = vsel %vm1644, %v4140, %v4141
        %v4143 = vrot.slane %v4141, 4
        %v4144 = vrot.slane %v4127, 5
        %v4145 = vsel %vm1644, %v4143, %v4144
        %4146 = vrot.lane.b32.xlu0 %v4136, 40
        %v4147 = vpop.permute.xlu0 %4146
        %4148 = vrot.lane.b32.xlu0 %v4139, 40
        %v4149 = vpop.permute.xlu0 %4148
        %4150 = vrot.lane.b32.xlu0 %v4142, 40
        %v4151 = vpop.permute.xlu0 %4150
        %4152 = vrot.lane.b32.xlu0 %v4145, 40
        %v4153 = vpop.permute.xlu0 %4152
        %4158 = vst.msk [vmem:[#allocation2 + $0xf0] sm:$0xf] %vm4062, %v4147
        %4159 = vst.msk [vmem:[#allocation2 + $0xf4] sm:$0xf] %vm4062, %v4149
        %4160 = vst.msk [vmem:[#allocation2 + $0xf8] sm:$0xf] %vm4062, %v4151
        %4161 = vst.msk [vmem:[#allocation2 + $0xfc] sm:$0xf] %vm4062, %v4153
        %s4162 = scalar_lea.vmem %s285, 40
        %v4163 = vld [vmem:[%s4162] sm:$0xf]
        %v4164 = vld [vmem:[%s4162 + $0x4] sm:$0xf]
        %v4165 = vld [vmem:[%s4162 + $0x8] sm:$0xf]
        %v4166 = vld [vmem:[%s4162 + $0xc] sm:$0xf]
        %v4167 = vld [vmem:[%s4162 + $0x14] sm:$0xf]
        %v4168 = vld [vmem:[%s4162 + $0x18] sm:$0xf]
        %v4169 = vld [vmem:[%s4162 + $0x1c] sm:$0xf]
        %v4170 = vld [vmem:[%s4162 + $0x20] sm:$0xf]
        %v4171 = vld [vmem:[%s4162 + $0x28] sm:$0xf]
        %v4172 = vld [vmem:[%s4162 + $0x2c] sm:$0xf]
        %v4173 = vld [vmem:[%s4162 + $0x30] sm:$0xf]
        %v4174 = vld [vmem:[%s4162 + $0x34] sm:$0xf]
        %v4175 = vld [vmem:[%s4162 + $0x3c] sm:$0xf]
        %v4176 = vld [vmem:[%s4162 + $0x40] sm:$0xf]
        %v4177 = vld [vmem:[%s4162 + $0x44] sm:$0xf]
        %v4178 = vld [vmem:[%s4162 + $0x48] sm:$0xf]
        %v4179 = vld [vmem:[%s4162 + $0x50] sm:$0xf]
        %v4180 = vld [vmem:[%s4162 + $0x54] sm:$0xf]
        %v4181 = vld [vmem:[%s4162 + $0x58] sm:$0xf]
        %v4182 = vld [vmem:[%s4162 + $0x5c] sm:$0xf]
        %v4183 = vld [vmem:[%s4162 + $0x64] sm:$0xf]
        %v4184 = vld [vmem:[%s4162 + $0x68] sm:$0xf]
        %v4185 = vld [vmem:[%s4162 + $0x6c] sm:$0xf]
        %v4186 = vld [vmem:[%s4162 + $0x70] sm:$0xf]
        %v4187 = vld [vmem:[%s4162 + $0x78] sm:$0xf]
        %v4188 = vld [vmem:[%s4162 + $0x7c] sm:$0xf]
        %v4189 = vld [vmem:[%s4162 + $0x80] sm:$0xf]
        %v4190 = vld [vmem:[%s4162 + $0x84] sm:$0xf]
        %v4191 = vld [vmem:[%s4162 + $0x8c] sm:$0xf]
        %v4192 = vld [vmem:[%s4162 + $0x90] sm:$0xf]
        %v4193 = vld [vmem:[%s4162 + $0x94] sm:$0xf]
        %v4194 = vld [vmem:[%s4162 + $0x98] sm:$0xf]
        %v4195 = vld [vmem:[%s4162 + $0xa0] sm:$0xf]
        %v4196 = vld [vmem:[%s4162 + $0xa4] sm:$0xf]
        %v4197 = vld [vmem:[%s4162 + $0xa8] sm:$0xf]
        %v4198 = vld [vmem:[%s4162 + $0xac] sm:$0xf]
        %v4199 = vld [vmem:[%s4162 + $0xb4] sm:$0xf]
        %v4200 = vld [vmem:[%s4162 + $0xb8] sm:$0xf]
        %v4201 = vld [vmem:[%s4162 + $0xbc] sm:$0xf]
        %v4202 = vld [vmem:[%s4162 + $0xc0] sm:$0xf]
        %v4203 = vld [vmem:[%s4162 + $0xc8] sm:$0xf]
        %v4204 = vld [vmem:[%s4162 + $0xcc] sm:$0xf]
        %v4205 = vld [vmem:[%s4162 + $0xd0] sm:$0xf]
        %v4206 = vld [vmem:[%s4162 + $0xd4] sm:$0xf]
        %v4207 = vld [vmem:[%s4162 + $0xdc] sm:$0xf]
        %v4208 = vld [vmem:[%s4162 + $0xe0] sm:$0xf]
        %v4209 = vld [vmem:[%s4162 + $0xe4] sm:$0xf]
        %v4210 = vld [vmem:[%s4162 + $0xe8] sm:$0xf]
        %v4211 = vld [vmem:[%s4162 + $0xf0] sm:$0xf]
        %v4212 = vld [vmem:[%s4162 + $0xf4] sm:$0xf]
        %v4213 = vld [vmem:[%s4162 + $0xf8] sm:$0xf]
        %v4214 = vld [vmem:[%s4162 + $0xfc] sm:$0xf]
        %v4215 = vld [vmem:[%s4162 + $0x104] sm:$0xf]
        %v4216 = vld [vmem:[%s4162 + $0x108] sm:$0xf]
        %v4217 = vld [vmem:[%s4162 + $0x10c] sm:$0xf]
        %v4218 = vld [vmem:[%s4162 + $0x110] sm:$0xf]
        %4275 = vrot.lane.b32.xlu0 %v4163, 48
        %v4276 = vpop.permute.xlu0 %4275
        %4277 = vrot.lane.b32.xlu0 %v4164, 48
        %v4278 = vpop.permute.xlu0 %4277
        %4279 = vrot.lane.b32.xlu0 %v4165, 48
        %v4280 = vpop.permute.xlu0 %4279
        %4281 = vrot.lane.b32.xlu0 %v4166, 48
        %v4282 = vpop.permute.xlu0 %4281
        %4283 = vrot.lane.b32.xlu0 %v4167, 48
        %v4284 = vpop.permute.xlu0 %4283
        %4285 = vrot.lane.b32.xlu0 %v4168, 48
        %v4286 = vpop.permute.xlu0 %4285
        %4287 = vrot.lane.b32.xlu0 %v4169, 48
        %v4288 = vpop.permute.xlu0 %4287
        %4289 = vrot.lane.b32.xlu0 %v4170, 48
        %v4290 = vpop.permute.xlu0 %4289
        %4291 = vrot.lane.b32.xlu0 %v4171, 48
        %v4292 = vpop.permute.xlu0 %4291
        %4293 = vrot.lane.b32.xlu0 %v4172, 48
        %v4294 = vpop.permute.xlu0 %4293
        %4295 = vrot.lane.b32.xlu0 %v4173, 48
        %v4296 = vpop.permute.xlu0 %4295
        %4297 = vrot.lane.b32.xlu0 %v4174, 48
        %v4298 = vpop.permute.xlu0 %4297
        %4299 = vrot.lane.b32.xlu0 %v4175, 48
        %v4300 = vpop.permute.xlu0 %4299
        %4301 = vrot.lane.b32.xlu0 %v4176, 48
        %v4302 = vpop.permute.xlu0 %4301
        %4303 = vrot.lane.b32.xlu0 %v4177, 48
        %v4304 = vpop.permute.xlu0 %4303
        %4305 = vrot.lane.b32.xlu0 %v4178, 48
        %v4306 = vpop.permute.xlu0 %4305
        %4307 = vrot.lane.b32.xlu0 %v4179, 48
        %v4308 = vpop.permute.xlu0 %4307
        %4309 = vrot.lane.b32.xlu0 %v4180, 48
        %v4310 = vpop.permute.xlu0 %4309
        %4311 = vrot.lane.b32.xlu0 %v4181, 48
        %v4312 = vpop.permute.xlu0 %4311
        %4313 = vrot.lane.b32.xlu0 %v4182, 48
        %v4314 = vpop.permute.xlu0 %4313
        %4315 = vrot.lane.b32.xlu0 %v4183, 48
        %v4316 = vpop.permute.xlu0 %4315
        %4317 = vrot.lane.b32.xlu0 %v4184, 48
        %v4318 = vpop.permute.xlu0 %4317
        %4319 = vrot.lane.b32.xlu0 %v4185, 48
        %v4320 = vpop.permute.xlu0 %4319
        %4321 = vrot.lane.b32.xlu0 %v4186, 48
        %v4322 = vpop.permute.xlu0 %4321
        %4323 = vrot.lane.b32.xlu0 %v4187, 48
        %v4324 = vpop.permute.xlu0 %4323
        %4325 = vrot.lane.b32.xlu0 %v4188, 48
        %v4326 = vpop.permute.xlu0 %4325
        %4327 = vrot.lane.b32.xlu0 %v4189, 48
        %v4328 = vpop.permute.xlu0 %4327
        %4329 = vrot.lane.b32.xlu0 %v4190, 48
        %v4330 = vpop.permute.xlu0 %4329
        %4331 = vrot.lane.b32.xlu0 %v4191, 48
        %v4332 = vpop.permute.xlu0 %4331
        %4333 = vrot.lane.b32.xlu0 %v4192, 48
        %v4334 = vpop.permute.xlu0 %4333
        %4335 = vrot.lane.b32.xlu0 %v4193, 48
        %v4336 = vpop.permute.xlu0 %4335
        %4337 = vrot.lane.b32.xlu0 %v4194, 48
        %v4338 = vpop.permute.xlu0 %4337
        %4339 = vrot.lane.b32.xlu0 %v4195, 48
        %v4340 = vpop.permute.xlu0 %4339
        %4341 = vrot.lane.b32.xlu0 %v4196, 48
        %v4342 = vpop.permute.xlu0 %4341
        %4343 = vrot.lane.b32.xlu0 %v4197, 48
        %v4344 = vpop.permute.xlu0 %4343
        %4345 = vrot.lane.b32.xlu0 %v4198, 48
        %v4346 = vpop.permute.xlu0 %4345
        %4347 = vrot.lane.b32.xlu0 %v4199, 48
        %v4348 = vpop.permute.xlu0 %4347
        %4349 = vrot.lane.b32.xlu0 %v4200, 48
        %v4350 = vpop.permute.xlu0 %4349
        %4351 = vrot.lane.b32.xlu0 %v4201, 48
        %v4352 = vpop.permute.xlu0 %4351
        %4353 = vrot.lane.b32.xlu0 %v4202, 48
        %v4354 = vpop.permute.xlu0 %4353
        %4355 = vrot.lane.b32.xlu0 %v4203, 48
        %v4356 = vpop.permute.xlu0 %4355
        %4357 = vrot.lane.b32.xlu0 %v4204, 48
        %v4358 = vpop.permute.xlu0 %4357
        %4359 = vrot.lane.b32.xlu0 %v4205, 48
        %v4360 = vpop.permute.xlu0 %4359
        %4361 = vrot.lane.b32.xlu0 %v4206, 48
        %v4362 = vpop.permute.xlu0 %4361
        %4363 = vrot.lane.b32.xlu0 %v4207, 48
        %v4364 = vpop.permute.xlu0 %4363
        %4365 = vrot.lane.b32.xlu0 %v4208, 48
        %v4366 = vpop.permute.xlu0 %4365
        %4367 = vrot.lane.b32.xlu0 %v4209, 48
        %v4368 = vpop.permute.xlu0 %4367
        %4369 = vrot.lane.b32.xlu0 %v4210, 48
        %v4370 = vpop.permute.xlu0 %4369
        %4371 = vrot.lane.b32.xlu0 %v4211, 48
        %v4372 = vpop.permute.xlu0 %4371
        %4373 = vrot.lane.b32.xlu0 %v4212, 48
        %v4374 = vpop.permute.xlu0 %4373
        %4375 = vrot.lane.b32.xlu0 %v4213, 48
        %v4376 = vpop.permute.xlu0 %4375
        %4377 = vrot.lane.b32.xlu0 %v4214, 48
        %v4378 = vpop.permute.xlu0 %4377
        %4379 = vrot.lane.b32.xlu0 %v4215, 48
        %v4380 = vpop.permute.xlu0 %4379
        %4381 = vrot.lane.b32.xlu0 %v4216, 48
        %v4382 = vpop.permute.xlu0 %4381
        %4383 = vrot.lane.b32.xlu0 %v4217, 48
        %v4384 = vpop.permute.xlu0 %4383
        %4385 = vrot.lane.b32.xlu0 %v4218, 48
        %v4386 = vpop.permute.xlu0 %4385
        %vm4443 = vcmask 454016
        %4444 = vst.msk [vmem:[#allocation2] sm:$0xf] %vm4443, %v4276
        %4445 = vst.msk [vmem:[#allocation2 + $0x4] sm:$0xf] %vm4443, %v4278
        %4446 = vst.msk [vmem:[#allocation2 + $0x8] sm:$0xf] %vm4443, %v4280
        %4447 = vst.msk [vmem:[#allocation2 + $0xc] sm:$0xf] %vm4443, %v4282
        %4448 = vst.msk [vmem:[#allocation2 + $0x10] sm:$0xf] %vm4443, %v4284
        %4449 = vst.msk [vmem:[#allocation2 + $0x14] sm:$0xf] %vm4443, %v4286
        %4450 = vst.msk [vmem:[#allocation2 + $0x18] sm:$0xf] %vm4443, %v4288
        %4451 = vst.msk [vmem:[#allocation2 + $0x1c] sm:$0xf] %vm4443, %v4290
        %4452 = vst.msk [vmem:[#allocation2 + $0x20] sm:$0xf] %vm4443, %v4292
        %4453 = vst.msk [vmem:[#allocation2 + $0x24] sm:$0xf] %vm4443, %v4294
        %4454 = vst.msk [vmem:[#allocation2 + $0x28] sm:$0xf] %vm4443, %v4296
        %4455 = vst.msk [vmem:[#allocation2 + $0x2c] sm:$0xf] %vm4443, %v4298
        %4456 = vst.msk [vmem:[#allocation2 + $0x30] sm:$0xf] %vm4443, %v4300
        %4457 = vst.msk [vmem:[#allocation2 + $0x34] sm:$0xf] %vm4443, %v4302
        %4458 = vst.msk [vmem:[#allocation2 + $0x38] sm:$0xf] %vm4443, %v4304
        %4459 = vst.msk [vmem:[#allocation2 + $0x3c] sm:$0xf] %vm4443, %v4306
        %4460 = vst.msk [vmem:[#allocation2 + $0x40] sm:$0xf] %vm4443, %v4308
        %4461 = vst.msk [vmem:[#allocation2 + $0x44] sm:$0xf] %vm4443, %v4310
        %4462 = vst.msk [vmem:[#allocation2 + $0x48] sm:$0xf] %vm4443, %v4312
        %4463 = vst.msk [vmem:[#allocation2 + $0x4c] sm:$0xf] %vm4443, %v4314
        %4464 = vst.msk [vmem:[#allocation2 + $0x50] sm:$0xf] %vm4443, %v4316
        %4465 = vst.msk [vmem:[#allocation2 + $0x54] sm:$0xf] %vm4443, %v4318
        %4466 = vst.msk [vmem:[#allocation2 + $0x58] sm:$0xf] %vm4443, %v4320
        %4467 = vst.msk [vmem:[#allocation2 + $0x5c] sm:$0xf] %vm4443, %v4322
        %4468 = vst.msk [vmem:[#allocation2 + $0x60] sm:$0xf] %vm4443, %v4324
        %4469 = vst.msk [vmem:[#allocation2 + $0x64] sm:$0xf] %vm4443, %v4326
        %4470 = vst.msk [vmem:[#allocation2 + $0x68] sm:$0xf] %vm4443, %v4328
        %4471 = vst.msk [vmem:[#allocation2 + $0x6c] sm:$0xf] %vm4443, %v4330
        %4472 = vst.msk [vmem:[#allocation2 + $0x70] sm:$0xf] %vm4443, %v4332
        %4473 = vst.msk [vmem:[#allocation2 + $0x74] sm:$0xf] %vm4443, %v4334
        %4474 = vst.msk [vmem:[#allocation2 + $0x78] sm:$0xf] %vm4443, %v4336
        %4475 = vst.msk [vmem:[#allocation2 + $0x7c] sm:$0xf] %vm4443, %v4338
        %4476 = vst.msk [vmem:[#allocation2 + $0x80] sm:$0xf] %vm4443, %v4340
        %4477 = vst.msk [vmem:[#allocation2 + $0x84] sm:$0xf] %vm4443, %v4342
        %4478 = vst.msk [vmem:[#allocation2 + $0x88] sm:$0xf] %vm4443, %v4344
        %4479 = vst.msk [vmem:[#allocation2 + $0x8c] sm:$0xf] %vm4443, %v4346
        %4480 = vst.msk [vmem:[#allocation2 + $0x90] sm:$0xf] %vm4443, %v4348
        %4481 = vst.msk [vmem:[#allocation2 + $0x94] sm:$0xf] %vm4443, %v4350
        %4482 = vst.msk [vmem:[#allocation2 + $0x98] sm:$0xf] %vm4443, %v4352
        %4483 = vst.msk [vmem:[#allocation2 + $0x9c] sm:$0xf] %vm4443, %v4354
        %4484 = vst.msk [vmem:[#allocation2 + $0xa0] sm:$0xf] %vm4443, %v4356
        %4485 = vst.msk [vmem:[#allocation2 + $0xa4] sm:$0xf] %vm4443, %v4358
        %4486 = vst.msk [vmem:[#allocation2 + $0xa8] sm:$0xf] %vm4443, %v4360
        %4487 = vst.msk [vmem:[#allocation2 + $0xac] sm:$0xf] %vm4443, %v4362
        %4488 = vst.msk [vmem:[#allocation2 + $0xb0] sm:$0xf] %vm4443, %v4364
        %4489 = vst.msk [vmem:[#allocation2 + $0xb4] sm:$0xf] %vm4443, %v4366
        %4490 = vst.msk [vmem:[#allocation2 + $0xb8] sm:$0xf] %vm4443, %v4368
        %4491 = vst.msk [vmem:[#allocation2 + $0xbc] sm:$0xf] %vm4443, %v4370
        %4492 = vst.msk [vmem:[#allocation2 + $0xc0] sm:$0xf] %vm4443, %v4372
        %4493 = vst.msk [vmem:[#allocation2 + $0xc4] sm:$0xf] %vm4443, %v4374
        %4494 = vst.msk [vmem:[#allocation2 + $0xc8] sm:$0xf] %vm4443, %v4376
        %4495 = vst.msk [vmem:[#allocation2 + $0xcc] sm:$0xf] %vm4443, %v4378
        %4496 = vst.msk [vmem:[#allocation2 + $0xd0] sm:$0xf] %vm4443, %v4380
        %4497 = vst.msk [vmem:[#allocation2 + $0xd4] sm:$0xf] %vm4443, %v4382
        %4498 = vst.msk [vmem:[#allocation2 + $0xd8] sm:$0xf] %vm4443, %v4384
        %4499 = vst.msk [vmem:[#allocation2 + $0xdc] sm:$0xf] %vm4443, %v4386
        %v4500 = vld [vmem:[%s303] sm:$0xf]
        %v4501 = vld [vmem:[%s303 + $0x4] sm:$0xf]
        %v4502 = vld [vmem:[%s303 + $0x8] sm:$0xf]
        %v4503 = vld [vmem:[%s303 + $0xc] sm:$0xf]
        %v4504 = vld [vmem:[%s303 + $0x14] sm:$0xf]
        %v4505 = vld [vmem:[%s303 + $0x18] sm:$0xf]
        %v4506 = vld [vmem:[%s303 + $0x1c] sm:$0xf]
        %v4507 = vld [vmem:[%s303 + $0x20] sm:$0xf]
        %4516 = vrot.lane.b32.xlu0 %v4500, 48
        %v4517 = vpop.permute.xlu0 %4516
        %4518 = vrot.lane.b32.xlu0 %v4501, 48
        %v4519 = vpop.permute.xlu0 %4518
        %4520 = vrot.lane.b32.xlu0 %v4502, 48
        %v4521 = vpop.permute.xlu0 %4520
        %4522 = vrot.lane.b32.xlu0 %v4503, 48
        %v4523 = vpop.permute.xlu0 %4522
        %4524 = vrot.lane.b32.xlu0 %v4504, 48
        %v4525 = vpop.permute.xlu0 %4524
        %4526 = vrot.lane.b32.xlu0 %v4505, 48
        %v4527 = vpop.permute.xlu0 %4526
        %4528 = vrot.lane.b32.xlu0 %v4506, 48
        %v4529 = vpop.permute.xlu0 %4528
        %4530 = vrot.lane.b32.xlu0 %v4507, 48
        %v4531 = vpop.permute.xlu0 %4530
        %4540 = vst.msk [vmem:[#allocation2 + $0xe0] sm:$0xf] %vm4443, %v4517
        %4541 = vst.msk [vmem:[#allocation2 + $0xe4] sm:$0xf] %vm4443, %v4519
        %4542 = vst.msk [vmem:[#allocation2 + $0xe8] sm:$0xf] %vm4443, %v4521
        %4543 = vst.msk [vmem:[#allocation2 + $0xec] sm:$0xf] %vm4443, %v4523
        %4544 = vst.msk [vmem:[#allocation2 + $0xf0] sm:$0xf] %vm4443, %v4525
        %4545 = vst.msk [vmem:[#allocation2 + $0xf4] sm:$0xf] %vm4443, %v4527
        %4546 = vst.msk [vmem:[#allocation2 + $0xf8] sm:$0xf] %vm4443, %v4529
        %4547 = vst.msk [vmem:[#allocation2 + $0xfc] sm:$0xf] %vm4443, %v4531
        %v4548 = vld [vmem:[%s4162] sm:$0xf]
        %v4549 = vld [vmem:[%s4162 + $0x4] sm:$0xf]
        %v4550 = vld [vmem:[%s4162 + $0x8] sm:$0xf]
        %v4551 = vld [vmem:[%s4162 + $0xc] sm:$0xf]
        %v4552 = vld [vmem:[%s4162 + $0x10] sm:$0x1]
        %v4553 = vld [vmem:[%s4162 + $0x14] sm:$0xf]
        %v4554 = vld [vmem:[%s4162 + $0x18] sm:$0xf]
        %v4555 = vld [vmem:[%s4162 + $0x1c] sm:$0xf]
        %v4556 = vld [vmem:[%s4162 + $0x20] sm:$0xf]
        %v4557 = vld [vmem:[%s4162 + $0x24] sm:$0x1]
        %v4558 = vld [vmem:[%s4162 + $0x28] sm:$0xf]
        %v4559 = vld [vmem:[%s4162 + $0x2c] sm:$0xf]
        %v4560 = vld [vmem:[%s4162 + $0x30] sm:$0xf]
        %v4561 = vld [vmem:[%s4162 + $0x34] sm:$0xf]
        %v4562 = vld [vmem:[%s4162 + $0x38] sm:$0x1]
        %v4563 = vld [vmem:[%s4162 + $0x3c] sm:$0xf]
        %v4564 = vld [vmem:[%s4162 + $0x40] sm:$0xf]
        %v4565 = vld [vmem:[%s4162 + $0x44] sm:$0xf]
        %v4566 = vld [vmem:[%s4162 + $0x48] sm:$0xf]
        %v4567 = vld [vmem:[%s4162 + $0x4c] sm:$0x1]
        %v4568 = vld [vmem:[%s4162 + $0x50] sm:$0xf]
        %v4569 = vld [vmem:[%s4162 + $0x54] sm:$0xf]
        %v4570 = vld [vmem:[%s4162 + $0x58] sm:$0xf]
        %v4571 = vld [vmem:[%s4162 + $0x5c] sm:$0xf]
        %v4572 = vld [vmem:[%s4162 + $0x60] sm:$0x1]
        %v4573 = vld [vmem:[%s4162 + $0x64] sm:$0xf]
        %v4574 = vld [vmem:[%s4162 + $0x68] sm:$0xf]
        %v4575 = vld [vmem:[%s4162 + $0x6c] sm:$0xf]
        %v4576 = vld [vmem:[%s4162 + $0x70] sm:$0xf]
        %v4577 = vld [vmem:[%s4162 + $0x74] sm:$0x1]
        %v4578 = vld [vmem:[%s4162 + $0x78] sm:$0xf]
        %v4579 = vld [vmem:[%s4162 + $0x7c] sm:$0xf]
        %v4580 = vld [vmem:[%s4162 + $0x80] sm:$0xf]
        %v4581 = vld [vmem:[%s4162 + $0x84] sm:$0xf]
        %v4582 = vld [vmem:[%s4162 + $0x88] sm:$0x1]
        %v4583 = vld [vmem:[%s4162 + $0x8c] sm:$0xf]
        %v4584 = vld [vmem:[%s4162 + $0x90] sm:$0xf]
        %v4585 = vld [vmem:[%s4162 + $0x94] sm:$0xf]
        %v4586 = vld [vmem:[%s4162 + $0x98] sm:$0xf]
        %v4587 = vld [vmem:[%s4162 + $0x9c] sm:$0x1]
        %v4588 = vld [vmem:[%s4162 + $0xa0] sm:$0xf]
        %v4589 = vld [vmem:[%s4162 + $0xa4] sm:$0xf]
        %v4590 = vld [vmem:[%s4162 + $0xa8] sm:$0xf]
        %v4591 = vld [vmem:[%s4162 + $0xac] sm:$0xf]
        %v4592 = vld [vmem:[%s4162 + $0xb0] sm:$0x1]
        %v4593 = vld [vmem:[%s4162 + $0xb4] sm:$0xf]
        %v4594 = vld [vmem:[%s4162 + $0xb8] sm:$0xf]
        %v4595 = vld [vmem:[%s4162 + $0xbc] sm:$0xf]
        %v4596 = vld [vmem:[%s4162 + $0xc0] sm:$0xf]
        %v4597 = vld [vmem:[%s4162 + $0xc4] sm:$0x1]
        %v4598 = vld [vmem:[%s4162 + $0xc8] sm:$0xf]
        %v4599 = vld [vmem:[%s4162 + $0xcc] sm:$0xf]
        %v4600 = vld [vmem:[%s4162 + $0xd0] sm:$0xf]
        %v4601 = vld [vmem:[%s4162 + $0xd4] sm:$0xf]
        %v4602 = vld [vmem:[%s4162 + $0xd8] sm:$0x1]
        %v4603 = vld [vmem:[%s4162 + $0xdc] sm:$0xf]
        %v4604 = vld [vmem:[%s4162 + $0xe0] sm:$0xf]
        %v4605 = vld [vmem:[%s4162 + $0xe4] sm:$0xf]
        %v4606 = vld [vmem:[%s4162 + $0xe8] sm:$0xf]
        %v4607 = vld [vmem:[%s4162 + $0xec] sm:$0x1]
        %v4608 = vld [vmem:[%s4162 + $0xf0] sm:$0xf]
        %v4609 = vld [vmem:[%s4162 + $0xf4] sm:$0xf]
        %v4610 = vld [vmem:[%s4162 + $0xf8] sm:$0xf]
        %v4611 = vld [vmem:[%s4162 + $0xfc] sm:$0xf]
        %v4612 = vld [vmem:[%s4162 + $0x100] sm:$0x1]
        %v4613 = vld [vmem:[%s4162 + $0x104] sm:$0xf]
        %v4614 = vld [vmem:[%s4162 + $0x108] sm:$0xf]
        %v4615 = vld [vmem:[%s4162 + $0x10c] sm:$0xf]
        %v4616 = vld [vmem:[%s4162 + $0x110] sm:$0xf]
        %v4617 = vld [vmem:[%s4162 + $0x114] sm:$0x1]
        %v4619 = vshrl.u32 %v4548, 16
        %v4621 = vrot.slane %v4619, 4
        %v4622 = vshll.u32 %v4548, 16
        %v4624 = vrot.slane %v4622, 5
        %v4625 = vor.u32 %v4621, %v4624
        %v4626 = vrot.slane %v4625, 4
        %v4628 = vshll.u32 %v4549, 16
        %v4630 = vrot.slane %v4628, 5
        %v4631 = vsel %vm520, %v4626, %v4630
        %v4632 = vshrl.u32 %v4549, 16
        %v4634 = vrot.slane %v4632, 4
        %v4635 = vor.u32 %v4634, %v4630
        %v4636 = vrot.slane %v4635, 4
        %v4638 = vshll.u32 %v4550, 16
        %v4640 = vrot.slane %v4638, 5
        %v4641 = vsel %vm520, %v4636, %v4640
        %v4642 = vshrl.u32 %v4550, 16
        %v4644 = vrot.slane %v4642, 4
        %v4645 = vor.u32 %v4644, %v4640
        %v4646 = vrot.slane %v4645, 4
        %v4648 = vshll.u32 %v4551, 16
        %v4650 = vrot.slane %v4648, 5
        %v4651 = vsel %vm520, %v4646, %v4650
        %v4652 = vshrl.u32 %v4551, 16
        %v4654 = vrot.slane %v4652, 4
        %v4655 = vor.u32 %v4654, %v4650
        %v4656 = vrot.slane %v4655, 4
        %v4658 = vshll.u32 %v4552, 16
        %v4660 = vrot.slane %v4658, 5
        %v4661 = vsel %vm520, %v4656, %v4660
        %v4663 = vshrl.u32 %v4553, 16
        %v4665 = vrot.slane %v4663, 4
        %v4666 = vshll.u32 %v4553, 16
        %v4668 = vrot.slane %v4666, 5
        %v4669 = vor.u32 %v4665, %v4668
        %v4670 = vrot.slane %v4669, 4
        %v4672 = vshll.u32 %v4554, 16
        %v4674 = vrot.slane %v4672, 5
        %v4675 = vsel %vm520, %v4670, %v4674
        %v4676 = vshrl.u32 %v4554, 16
        %v4678 = vrot.slane %v4676, 4
        %v4679 = vor.u32 %v4678, %v4674
        %v4680 = vrot.slane %v4679, 4
        %v4682 = vshll.u32 %v4555, 16
        %v4684 = vrot.slane %v4682, 5
        %v4685 = vsel %vm520, %v4680, %v4684
        %v4686 = vshrl.u32 %v4555, 16
        %v4688 = vrot.slane %v4686, 4
        %v4689 = vor.u32 %v4688, %v4684
        %v4690 = vrot.slane %v4689, 4
        %v4692 = vshll.u32 %v4556, 16
        %v4694 = vrot.slane %v4692, 5
        %v4695 = vsel %vm520, %v4690, %v4694
        %v4696 = vshrl.u32 %v4556, 16
        %v4698 = vrot.slane %v4696, 4
        %v4699 = vor.u32 %v4698, %v4694
        %v4700 = vrot.slane %v4699, 4
        %v4702 = vshll.u32 %v4557, 16
        %v4704 = vrot.slane %v4702, 5
        %v4705 = vsel %vm520, %v4700, %v4704
        %v4707 = vshrl.u32 %v4558, 16
        %v4709 = vrot.slane %v4707, 4
        %v4710 = vshll.u32 %v4558, 16
        %v4712 = vrot.slane %v4710, 5
        %v4713 = vor.u32 %v4709, %v4712
        %v4714 = vrot.slane %v4713, 4
        %v4716 = vshll.u32 %v4559, 16
        %v4718 = vrot.slane %v4716, 5
        %v4719 = vsel %vm520, %v4714, %v4718
        %v4720 = vshrl.u32 %v4559, 16
        %v4722 = vrot.slane %v4720, 4
        %v4723 = vor.u32 %v4722, %v4718
        %v4724 = vrot.slane %v4723, 4
        %v4726 = vshll.u32 %v4560, 16
        %v4728 = vrot.slane %v4726, 5
        %v4729 = vsel %vm520, %v4724, %v4728
        %v4730 = vshrl.u32 %v4560, 16
        %v4732 = vrot.slane %v4730, 4
        %v4733 = vor.u32 %v4732, %v4728
        %v4734 = vrot.slane %v4733, 4
        %v4736 = vshll.u32 %v4561, 16
        %v4738 = vrot.slane %v4736, 5
        %v4739 = vsel %vm520, %v4734, %v4738
        %v4740 = vshrl.u32 %v4561, 16
        %v4742 = vrot.slane %v4740, 4
        %v4743 = vor.u32 %v4742, %v4738
        %v4744 = vrot.slane %v4743, 4
        %v4746 = vshll.u32 %v4562, 16
        %v4748 = vrot.slane %v4746, 5
        %v4749 = vsel %vm520, %v4744, %v4748
        %v4751 = vshrl.u32 %v4563, 16
        %v4753 = vrot.slane %v4751, 4
        %v4754 = vshll.u32 %v4563, 16
        %v4756 = vrot.slane %v4754, 5
        %v4757 = vor.u32 %v4753, %v4756
        %v4758 = vrot.slane %v4757, 4
        %v4760 = vshll.u32 %v4564, 16
        %v4762 = vrot.slane %v4760, 5
        %v4763 = vsel %vm520, %v4758, %v4762
        %v4764 = vshrl.u32 %v4564, 16
        %v4766 = vrot.slane %v4764, 4
        %v4767 = vor.u32 %v4766, %v4762
        %v4768 = vrot.slane %v4767, 4
        %v4770 = vshll.u32 %v4565, 16
        %v4772 = vrot.slane %v4770, 5
        %v4773 = vsel %vm520, %v4768, %v4772
        %v4774 = vshrl.u32 %v4565, 16
        %v4776 = vrot.slane %v4774, 4
        %v4777 = vor.u32 %v4776, %v4772
        %v4778 = vrot.slane %v4777, 4
        %v4780 = vshll.u32 %v4566, 16
        %v4782 = vrot.slane %v4780, 5
        %v4783 = vsel %vm520, %v4778, %v4782
        %v4784 = vshrl.u32 %v4566, 16
        %v4786 = vrot.slane %v4784, 4
        %v4787 = vor.u32 %v4786, %v4782
        %v4788 = vrot.slane %v4787, 4
        %v4790 = vshll.u32 %v4567, 16
        %v4792 = vrot.slane %v4790, 5
        %v4793 = vsel %vm520, %v4788, %v4792
        %v4795 = vshrl.u32 %v4568, 16
        %v4797 = vrot.slane %v4795, 4
        %v4798 = vshll.u32 %v4568, 16
        %v4800 = vrot.slane %v4798, 5
        %v4801 = vor.u32 %v4797, %v4800
        %v4802 = vrot.slane %v4801, 4
        %v4804 = vshll.u32 %v4569, 16
        %v4806 = vrot.slane %v4804, 5
        %v4807 = vsel %vm520, %v4802, %v4806
        %v4808 = vshrl.u32 %v4569, 16
        %v4810 = vrot.slane %v4808, 4
        %v4811 = vor.u32 %v4810, %v4806
        %v4812 = vrot.slane %v4811, 4
        %v4814 = vshll.u32 %v4570, 16
        %v4816 = vrot.slane %v4814, 5
        %v4817 = vsel %vm520, %v4812, %v4816
        %v4818 = vshrl.u32 %v4570, 16
        %v4820 = vrot.slane %v4818, 4
        %v4821 = vor.u32 %v4820, %v4816
        %v4822 = vrot.slane %v4821, 4
        %v4824 = vshll.u32 %v4571, 16
        %v4826 = vrot.slane %v4824, 5
        %v4827 = vsel %vm520, %v4822, %v4826
        %v4828 = vshrl.u32 %v4571, 16
        %v4830 = vrot.slane %v4828, 4
        %v4831 = vor.u32 %v4830, %v4826
        %v4832 = vrot.slane %v4831, 4
        %v4834 = vshll.u32 %v4572, 16
        %v4836 = vrot.slane %v4834, 5
        %v4837 = vsel %vm520, %v4832, %v4836
        %v4839 = vshrl.u32 %v4573, 16
        %v4841 = vrot.slane %v4839, 4
        %v4842 = vshll.u32 %v4573, 16
        %v4844 = vrot.slane %v4842, 5
        %v4845 = vor.u32 %v4841, %v4844
        %v4846 = vrot.slane %v4845, 4
        %v4848 = vshll.u32 %v4574, 16
        %v4850 = vrot.slane %v4848, 5
        %v4851 = vsel %vm520, %v4846, %v4850
        %v4852 = vshrl.u32 %v4574, 16
        %v4854 = vrot.slane %v4852, 4
        %v4855 = vor.u32 %v4854, %v4850
        %v4856 = vrot.slane %v4855, 4
        %v4858 = vshll.u32 %v4575, 16
        %v4860 = vrot.slane %v4858, 5
        %v4861 = vsel %vm520, %v4856, %v4860
        %v4862 = vshrl.u32 %v4575, 16
        %v4864 = vrot.slane %v4862, 4
        %v4865 = vor.u32 %v4864, %v4860
        %v4866 = vrot.slane %v4865, 4
        %v4868 = vshll.u32 %v4576, 16
        %v4870 = vrot.slane %v4868, 5
        %v4871 = vsel %vm520, %v4866, %v4870
        %v4872 = vshrl.u32 %v4576, 16
        %v4874 = vrot.slane %v4872, 4
        %v4875 = vor.u32 %v4874, %v4870
        %v4876 = vrot.slane %v4875, 4
        %v4878 = vshll.u32 %v4577, 16
        %v4880 = vrot.slane %v4878, 5
        %v4881 = vsel %vm520, %v4876, %v4880
        %v4883 = vshrl.u32 %v4578, 16
        %v4885 = vrot.slane %v4883, 4
        %v4886 = vshll.u32 %v4578, 16
        %v4888 = vrot.slane %v4886, 5
        %v4889 = vor.u32 %v4885, %v4888
        %v4890 = vrot.slane %v4889, 4
        %v4892 = vshll.u32 %v4579, 16
        %v4894 = vrot.slane %v4892, 5
        %v4895 = vsel %vm520, %v4890, %v4894
        %v4896 = vshrl.u32 %v4579, 16
        %v4898 = vrot.slane %v4896, 4
        %v4899 = vor.u32 %v4898, %v4894
        %v4900 = vrot.slane %v4899, 4
        %v4902 = vshll.u32 %v4580, 16
        %v4904 = vrot.slane %v4902, 5
        %v4905 = vsel %vm520, %v4900, %v4904
        %v4906 = vshrl.u32 %v4580, 16
        %v4908 = vrot.slane %v4906, 4
        %v4909 = vor.u32 %v4908, %v4904
        %v4910 = vrot.slane %v4909, 4
        %v4912 = vshll.u32 %v4581, 16
        %v4914 = vrot.slane %v4912, 5
        %v4915 = vsel %vm520, %v4910, %v4914
        %v4916 = vshrl.u32 %v4581, 16
        %v4918 = vrot.slane %v4916, 4
        %v4919 = vor.u32 %v4918, %v4914
        %v4920 = vrot.slane %v4919, 4
        %v4922 = vshll.u32 %v4582, 16
        %v4924 = vrot.slane %v4922, 5
        %v4925 = vsel %vm520, %v4920, %v4924
        %v4927 = vshrl.u32 %v4583, 16
        %v4929 = vrot.slane %v4927, 4
        %v4930 = vshll.u32 %v4583, 16
        %v4932 = vrot.slane %v4930, 5
        %v4933 = vor.u32 %v4929, %v4932
        %v4934 = vrot.slane %v4933, 4
        %v4936 = vshll.u32 %v4584, 16
        %v4938 = vrot.slane %v4936, 5
        %v4939 = vsel %vm520, %v4934, %v4938
        %v4940 = vshrl.u32 %v4584, 16
        %v4942 = vrot.slane %v4940, 4
        %v4943 = vor.u32 %v4942, %v4938
        %v4944 = vrot.slane %v4943, 4
        %v4946 = vshll.u32 %v4585, 16
        %v4948 = vrot.slane %v4946, 5
        %v4949 = vsel %vm520, %v4944, %v4948
        %v4950 = vshrl.u32 %v4585, 16
        %v4952 = vrot.slane %v4950, 4
        %v4953 = vor.u32 %v4952, %v4948
        %v4954 = vrot.slane %v4953, 4
        %v4956 = vshll.u32 %v4586, 16
        %v4958 = vrot.slane %v4956, 5
        %v4959 = vsel %vm520, %v4954, %v4958
        %v4960 = vshrl.u32 %v4586, 16
        %v4962 = vrot.slane %v4960, 4
        %v4963 = vor.u32 %v4962, %v4958
        %v4964 = vrot.slane %v4963, 4
        %v4966 = vshll.u32 %v4587, 16
        %v4968 = vrot.slane %v4966, 5
        %v4969 = vsel %vm520, %v4964, %v4968
        %v4971 = vshrl.u32 %v4588, 16
        %v4973 = vrot.slane %v4971, 4
        %v4974 = vshll.u32 %v4588, 16
        %v4976 = vrot.slane %v4974, 5
        %v4977 = vor.u32 %v4973, %v4976
        %v4978 = vrot.slane %v4977, 4
        %v4980 = vshll.u32 %v4589, 16
        %v4982 = vrot.slane %v4980, 5
        %v4983 = vsel %vm520, %v4978, %v4982
        %v4984 = vshrl.u32 %v4589, 16
        %v4986 = vrot.slane %v4984, 4
        %v4987 = vor.u32 %v4986, %v4982
        %v4988 = vrot.slane %v4987, 4
        %v4990 = vshll.u32 %v4590, 16
        %v4992 = vrot.slane %v4990, 5
        %v4993 = vsel %vm520, %v4988, %v4992
        %v4994 = vshrl.u32 %v4590, 16
        %v4996 = vrot.slane %v4994, 4
        %v4997 = vor.u32 %v4996, %v4992
        %v4998 = vrot.slane %v4997, 4
        %v5000 = vshll.u32 %v4591, 16
        %v5002 = vrot.slane %v5000, 5
        %v5003 = vsel %vm520, %v4998, %v5002
        %v5004 = vshrl.u32 %v4591, 16
        %v5006 = vrot.slane %v5004, 4
        %v5007 = vor.u32 %v5006, %v5002
        %v5008 = vrot.slane %v5007, 4
        %v5010 = vshll.u32 %v4592, 16
        %v5012 = vrot.slane %v5010, 5
        %v5013 = vsel %vm520, %v5008, %v5012
        %v5015 = vshrl.u32 %v4593, 16
        %v5017 = vrot.slane %v5015, 4
        %v5018 = vshll.u32 %v4593, 16
        %v5020 = vrot.slane %v5018, 5
        %v5021 = vor.u32 %v5017, %v5020
        %v5022 = vrot.slane %v5021, 4
        %v5024 = vshll.u32 %v4594, 16
        %v5026 = vrot.slane %v5024, 5
        %v5027 = vsel %vm520, %v5022, %v5026
        %v5028 = vshrl.u32 %v4594, 16
        %v5030 = vrot.slane %v5028, 4
        %v5031 = vor.u32 %v5030, %v5026
        %v5032 = vrot.slane %v5031, 4
        %v5034 = vshll.u32 %v4595, 16
        %v5036 = vrot.slane %v5034, 5
        %v5037 = vsel %vm520, %v5032, %v5036
        %v5038 = vshrl.u32 %v4595, 16
        %v5040 = vrot.slane %v5038, 4
        %v5041 = vor.u32 %v5040, %v5036
        %v5042 = vrot.slane %v5041, 4
        %v5044 = vshll.u32 %v4596, 16
        %v5046 = vrot.slane %v5044, 5
        %v5047 = vsel %vm520, %v5042, %v5046
        %v5048 = vshrl.u32 %v4596, 16
        %v5050 = vrot.slane %v5048, 4
        %v5051 = vor.u32 %v5050, %v5046
        %v5052 = vrot.slane %v5051, 4
        %v5054 = vshll.u32 %v4597, 16
        %v5056 = vrot.slane %v5054, 5
        %v5057 = vsel %vm520, %v5052, %v5056
        %v5059 = vshrl.u32 %v4598, 16
        %v5061 = vrot.slane %v5059, 4
        %v5062 = vshll.u32 %v4598, 16
        %v5064 = vrot.slane %v5062, 5
        %v5065 = vor.u32 %v5061, %v5064
        %v5066 = vrot.slane %v5065, 4
        %v5068 = vshll.u32 %v4599, 16
        %v5070 = vrot.slane %v5068, 5
        %v5071 = vsel %vm520, %v5066, %v5070
        %v5072 = vshrl.u32 %v4599, 16
        %v5074 = vrot.slane %v5072, 4
        %v5075 = vor.u32 %v5074, %v5070
        %v5076 = vrot.slane %v5075, 4
        %v5078 = vshll.u32 %v4600, 16
        %v5080 = vrot.slane %v5078, 5
        %v5081 = vsel %vm520, %v5076, %v5080
        %v5082 = vshrl.u32 %v4600, 16
        %v5084 = vrot.slane %v5082, 4
        %v5085 = vor.u32 %v5084, %v5080
        %v5086 = vrot.slane %v5085, 4
        %v5088 = vshll.u32 %v4601, 16
        %v5090 = vrot.slane %v5088, 5
        %v5091 = vsel %vm520, %v5086, %v5090
        %v5092 = vshrl.u32 %v4601, 16
        %v5094 = vrot.slane %v5092, 4
        %v5095 = vor.u32 %v5094, %v5090
        %v5096 = vrot.slane %v5095, 4
        %v5098 = vshll.u32 %v4602, 16
        %v5100 = vrot.slane %v5098, 5
        %v5101 = vsel %vm520, %v5096, %v5100
        %v5103 = vshrl.u32 %v4603, 16
        %v5105 = vrot.slane %v5103, 4
        %v5106 = vshll.u32 %v4603, 16
        %v5108 = vrot.slane %v5106, 5
        %v5109 = vor.u32 %v5105, %v5108
        %v5110 = vrot.slane %v5109, 4
        %v5112 = vshll.u32 %v4604, 16
        %v5114 = vrot.slane %v5112, 5
        %v5115 = vsel %vm520, %v5110, %v5114
        %v5116 = vshrl.u32 %v4604, 16
        %v5118 = vrot.slane %v5116, 4
        %v5119 = vor.u32 %v5118, %v5114
        %v5120 = vrot.slane %v5119, 4
        %v5122 = vshll.u32 %v4605, 16
        %v5124 = vrot.slane %v5122, 5
        %v5125 = vsel %vm520, %v5120, %v5124
        %v5126 = vshrl.u32 %v4605, 16
        %v5128 = vrot.slane %v5126, 4
        %v5129 = vor.u32 %v5128, %v5124
        %v5130 = vrot.slane %v5129, 4
        %v5132 = vshll.u32 %v4606, 16
        %v5134 = vrot.slane %v5132, 5
        %v5135 = vsel %vm520, %v5130, %v5134
        %v5136 = vshrl.u32 %v4606, 16
        %v5138 = vrot.slane %v5136, 4
        %v5139 = vor.u32 %v5138, %v5134
        %v5140 = vrot.slane %v5139, 4
        %v5142 = vshll.u32 %v4607, 16
        %v5144 = vrot.slane %v5142, 5
        %v5145 = vsel %vm520, %v5140, %v5144
        %v5147 = vshrl.u32 %v4608, 16
        %v5149 = vrot.slane %v5147, 4
        %v5150 = vshll.u32 %v4608, 16
        %v5152 = vrot.slane %v5150, 5
        %v5153 = vor.u32 %v5149, %v5152
        %v5154 = vrot.slane %v5153, 4
        %v5156 = vshll.u32 %v4609, 16
        %v5158 = vrot.slane %v5156, 5
        %v5159 = vsel %vm520, %v5154, %v5158
        %v5160 = vshrl.u32 %v4609, 16
        %v5162 = vrot.slane %v5160, 4
        %v5163 = vor.u32 %v5162, %v5158
        %v5164 = vrot.slane %v5163, 4
        %v5166 = vshll.u32 %v4610, 16
        %v5168 = vrot.slane %v5166, 5
        %v5169 = vsel %vm520, %v5164, %v5168
        %v5170 = vshrl.u32 %v4610, 16
        %v5172 = vrot.slane %v5170, 4
        %v5173 = vor.u32 %v5172, %v5168
        %v5174 = vrot.slane %v5173, 4
        %v5176 = vshll.u32 %v4611, 16
        %v5178 = vrot.slane %v5176, 5
        %v5179 = vsel %vm520, %v5174, %v5178
        %v5180 = vshrl.u32 %v4611, 16
        %v5182 = vrot.slane %v5180, 4
        %v5183 = vor.u32 %v5182, %v5178
        %v5184 = vrot.slane %v5183, 4
        %v5186 = vshll.u32 %v4612, 16
        %v5188 = vrot.slane %v5186, 5
        %v5189 = vsel %vm520, %v5184, %v5188
        %v5191 = vshrl.u32 %v4613, 16
        %v5193 = vrot.slane %v5191, 4
        %v5194 = vshll.u32 %v4613, 16
        %v5196 = vrot.slane %v5194, 5
        %v5197 = vor.u32 %v5193, %v5196
        %v5198 = vrot.slane %v5197, 4
        %v5200 = vshll.u32 %v4614, 16
        %v5202 = vrot.slane %v5200, 5
        %v5203 = vsel %vm520, %v5198, %v5202
        %v5204 = vshrl.u32 %v4614, 16
        %v5206 = vrot.slane %v5204, 4
        %v5207 = vor.u32 %v5206, %v5202
        %v5208 = vrot.slane %v5207, 4
        %v5210 = vshll.u32 %v4615, 16
        %v5212 = vrot.slane %v5210, 5
        %v5213 = vsel %vm520, %v5208, %v5212
        %v5214 = vshrl.u32 %v4615, 16
        %v5216 = vrot.slane %v5214, 4
        %v5217 = vor.u32 %v5216, %v5212
        %v5218 = vrot.slane %v5217, 4
        %v5220 = vshll.u32 %v4616, 16
        %v5222 = vrot.slane %v5220, 5
        %v5223 = vsel %vm520, %v5218, %v5222
        %v5224 = vshrl.u32 %v4616, 16
        %v5226 = vrot.slane %v5224, 4
        %v5227 = vor.u32 %v5226, %v5222
        %v5228 = vrot.slane %v5227, 4
        %v5230 = vshll.u32 %v4617, 16
        %v5232 = vrot.slane %v5230, 5
        %v5233 = vsel %vm520, %v5228, %v5232
        %5234 = vrot.lane.b32.xlu0 %v4631, 56
        %v5235 = vpop.permute.xlu0 %5234
        %5236 = vrot.lane.b32.xlu0 %v4641, 56
        %v5237 = vpop.permute.xlu0 %5236
        %5238 = vrot.lane.b32.xlu0 %v4651, 56
        %v5239 = vpop.permute.xlu0 %5238
        %5240 = vrot.lane.b32.xlu0 %v4661, 56
        %v5241 = vpop.permute.xlu0 %5240
        %5242 = vrot.lane.b32.xlu0 %v4675, 56
        %v5243 = vpop.permute.xlu0 %5242
        %5244 = vrot.lane.b32.xlu0 %v4685, 56
        %v5245 = vpop.permute.xlu0 %5244
        %5246 = vrot.lane.b32.xlu0 %v4695, 56
        %v5247 = vpop.permute.xlu0 %5246
        %5248 = vrot.lane.b32.xlu0 %v4705, 56
        %v5249 = vpop.permute.xlu0 %5248
        %5250 = vrot.lane.b32.xlu0 %v4719, 56
        %v5251 = vpop.permute.xlu0 %5250
        %5252 = vrot.lane.b32.xlu0 %v4729, 56
        %v5253 = vpop.permute.xlu0 %5252
        %5254 = vrot.lane.b32.xlu0 %v4739, 56
        %v5255 = vpop.permute.xlu0 %5254
        %5256 = vrot.lane.b32.xlu0 %v4749, 56
        %v5257 = vpop.permute.xlu0 %5256
        %5258 = vrot.lane.b32.xlu0 %v4763, 56
        %v5259 = vpop.permute.xlu0 %5258
        %5260 = vrot.lane.b32.xlu0 %v4773, 56
        %v5261 = vpop.permute.xlu0 %5260
        %5262 = vrot.lane.b32.xlu0 %v4783, 56
        %v5263 = vpop.permute.xlu0 %5262
        %5264 = vrot.lane.b32.xlu0 %v4793, 56
        %v5265 = vpop.permute.xlu0 %5264
        %5266 = vrot.lane.b32.xlu0 %v4807, 56
        %v5267 = vpop.permute.xlu0 %5266
        %5268 = vrot.lane.b32.xlu0 %v4817, 56
        %v5269 = vpop.permute.xlu0 %5268
        %5270 = vrot.lane.b32.xlu0 %v4827, 56
        %v5271 = vpop.permute.xlu0 %5270
        %5272 = vrot.lane.b32.xlu0 %v4837, 56
        %v5273 = vpop.permute.xlu0 %5272
        %5274 = vrot.lane.b32.xlu0 %v4851, 56
        %v5275 = vpop.permute.xlu0 %5274
        %5276 = vrot.lane.b32.xlu0 %v4861, 56
        %v5277 = vpop.permute.xlu0 %5276
        %5278 = vrot.lane.b32.xlu0 %v4871, 56
        %v5279 = vpop.permute.xlu0 %5278
        %5280 = vrot.lane.b32.xlu0 %v4881, 56
        %v5281 = vpop.permute.xlu0 %5280
        %5282 = vrot.lane.b32.xlu0 %v4895, 56
        %v5283 = vpop.permute.xlu0 %5282
        %5284 = vrot.lane.b32.xlu0 %v4905, 56
        %v5285 = vpop.permute.xlu0 %5284
        %5286 = vrot.lane.b32.xlu0 %v4915, 56
        %v5287 = vpop.permute.xlu0 %5286
        %5288 = vrot.lane.b32.xlu0 %v4925, 56
        %v5289 = vpop.permute.xlu0 %5288
        %5290 = vrot.lane.b32.xlu0 %v4939, 56
        %v5291 = vpop.permute.xlu0 %5290
        %5292 = vrot.lane.b32.xlu0 %v4949, 56
        %v5293 = vpop.permute.xlu0 %5292
        %5294 = vrot.lane.b32.xlu0 %v4959, 56
        %v5295 = vpop.permute.xlu0 %5294
        %5296 = vrot.lane.b32.xlu0 %v4969, 56
        %v5297 = vpop.permute.xlu0 %5296
        %5298 = vrot.lane.b32.xlu0 %v4983, 56
        %v5299 = vpop.permute.xlu0 %5298
        %5300 = vrot.lane.b32.xlu0 %v4993, 56
        %v5301 = vpop.permute.xlu0 %5300
        %5302 = vrot.lane.b32.xlu0 %v5003, 56
        %v5303 = vpop.permute.xlu0 %5302
        %5304 = vrot.lane.b32.xlu0 %v5013, 56
        %v5305 = vpop.permute.xlu0 %5304
        %5306 = vrot.lane.b32.xlu0 %v5027, 56
        %v5307 = vpop.permute.xlu0 %5306
        %5308 = vrot.lane.b32.xlu0 %v5037, 56
        %v5309 = vpop.permute.xlu0 %5308
        %5310 = vrot.lane.b32.xlu0 %v5047, 56
        %v5311 = vpop.permute.xlu0 %5310
        %5312 = vrot.lane.b32.xlu0 %v5057, 56
        %v5313 = vpop.permute.xlu0 %5312
        %5314 = vrot.lane.b32.xlu0 %v5071, 56
        %v5315 = vpop.permute.xlu0 %5314
        %5316 = vrot.lane.b32.xlu0 %v5081, 56
        %v5317 = vpop.permute.xlu0 %5316
        %5318 = vrot.lane.b32.xlu0 %v5091, 56
        %v5319 = vpop.permute.xlu0 %5318
        %5320 = vrot.lane.b32.xlu0 %v5101, 56
        %v5321 = vpop.permute.xlu0 %5320
        %5322 = vrot.lane.b32.xlu0 %v5115, 56
        %v5323 = vpop.permute.xlu0 %5322
        %5324 = vrot.lane.b32.xlu0 %v5125, 56
        %v5325 = vpop.permute.xlu0 %5324
        %5326 = vrot.lane.b32.xlu0 %v5135, 56
        %v5327 = vpop.permute.xlu0 %5326
        %5328 = vrot.lane.b32.xlu0 %v5145, 56
        %v5329 = vpop.permute.xlu0 %5328
        %5330 = vrot.lane.b32.xlu0 %v5159, 56
        %v5331 = vpop.permute.xlu0 %5330
        %5332 = vrot.lane.b32.xlu0 %v5169, 56
        %v5333 = vpop.permute.xlu0 %5332
        %5334 = vrot.lane.b32.xlu0 %v5179, 56
        %v5335 = vpop.permute.xlu0 %5334
        %5336 = vrot.lane.b32.xlu0 %v5189, 56
        %v5337 = vpop.permute.xlu0 %5336
        %5338 = vrot.lane.b32.xlu0 %v5203, 56
        %v5339 = vpop.permute.xlu0 %5338
        %5340 = vrot.lane.b32.xlu0 %v5213, 56
        %v5341 = vpop.permute.xlu0 %5340
        %5342 = vrot.lane.b32.xlu0 %v5223, 56
        %v5343 = vpop.permute.xlu0 %5342
        %5344 = vrot.lane.b32.xlu0 %v5233, 56
        %v5345 = vpop.permute.xlu0 %5344
        %vm5402 = vcmask 519616
        %5403 = vst.msk [vmem:[#allocation2] sm:$0xf] %vm5402, %v5235
        %5404 = vst.msk [vmem:[#allocation2 + $0x4] sm:$0xf] %vm5402, %v5237
        %5405 = vst.msk [vmem:[#allocation2 + $0x8] sm:$0xf] %vm5402, %v5239
        %5406 = vst.msk [vmem:[#allocation2 + $0xc] sm:$0xf] %vm5402, %v5241
        %5407 = vst.msk [vmem:[#allocation2 + $0x10] sm:$0xf] %vm5402, %v5243
        %5408 = vst.msk [vmem:[#allocation2 + $0x14] sm:$0xf] %vm5402, %v5245
        %5409 = vst.msk [vmem:[#allocation2 + $0x18] sm:$0xf] %vm5402, %v5247
        %5410 = vst.msk [vmem:[#allocation2 + $0x1c] sm:$0xf] %vm5402, %v5249
        %5411 = vst.msk [vmem:[#allocation2 + $0x20] sm:$0xf] %vm5402, %v5251
        %5412 = vst.msk [vmem:[#allocation2 + $0x24] sm:$0xf] %vm5402, %v5253
        %5413 = vst.msk [vmem:[#allocation2 + $0x28] sm:$0xf] %vm5402, %v5255
        %5414 = vst.msk [vmem:[#allocation2 + $0x2c] sm:$0xf] %vm5402, %v5257
        %5415 = vst.msk [vmem:[#allocation2 + $0x30] sm:$0xf] %vm5402, %v5259
        %5416 = vst.msk [vmem:[#allocation2 + $0x34] sm:$0xf] %vm5402, %v5261
        %5417 = vst.msk [vmem:[#allocation2 + $0x38] sm:$0xf] %vm5402, %v5263
        %5418 = vst.msk [vmem:[#allocation2 + $0x3c] sm:$0xf] %vm5402, %v5265
        %5419 = vst.msk [vmem:[#allocation2 + $0x40] sm:$0xf] %vm5402, %v5267
        %5420 = vst.msk [vmem:[#allocation2 + $0x44] sm:$0xf] %vm5402, %v5269
        %5421 = vst.msk [vmem:[#allocation2 + $0x48] sm:$0xf] %vm5402, %v5271
        %5422 = vst.msk [vmem:[#allocation2 + $0x4c] sm:$0xf] %vm5402, %v5273
        %5423 = vst.msk [vmem:[#allocation2 + $0x50] sm:$0xf] %vm5402, %v5275
        %5424 = vst.msk [vmem:[#allocation2 + $0x54] sm:$0xf] %vm5402, %v5277
        %5425 = vst.msk [vmem:[#allocation2 + $0x58] sm:$0xf] %vm5402, %v5279
        %5426 = vst.msk [vmem:[#allocation2 + $0x5c] sm:$0xf] %vm5402, %v5281
        %5427 = vst.msk [vmem:[#allocation2 + $0x60] sm:$0xf] %vm5402, %v5283
        %5428 = vst.msk [vmem:[#allocation2 + $0x64] sm:$0xf] %vm5402, %v5285
        %5429 = vst.msk [vmem:[#allocation2 + $0x68] sm:$0xf] %vm5402, %v5287
        %5430 = vst.msk [vmem:[#allocation2 + $0x6c] sm:$0xf] %vm5402, %v5289
        %5431 = vst.msk [vmem:[#allocation2 + $0x70] sm:$0xf] %vm5402, %v5291
        %5432 = vst.msk [vmem:[#allocation2 + $0x74] sm:$0xf] %vm5402, %v5293
        %5433 = vst.msk [vmem:[#allocation2 + $0x78] sm:$0xf] %vm5402, %v5295
        %5434 = vst.msk [vmem:[#allocation2 + $0x7c] sm:$0xf] %vm5402, %v5297
        %5435 = vst.msk [vmem:[#allocation2 + $0x80] sm:$0xf] %vm5402, %v5299
        %5436 = vst.msk [vmem:[#allocation2 + $0x84] sm:$0xf] %vm5402, %v5301
        %5437 = vst.msk [vmem:[#allocation2 + $0x88] sm:$0xf] %vm5402, %v5303
        %5438 = vst.msk [vmem:[#allocation2 + $0x8c] sm:$0xf] %vm5402, %v5305
        %5439 = vst.msk [vmem:[#allocation2 + $0x90] sm:$0xf] %vm5402, %v5307
        %5440 = vst.msk [vmem:[#allocation2 + $0x94] sm:$0xf] %vm5402, %v5309
        %5441 = vst.msk [vmem:[#allocation2 + $0x98] sm:$0xf] %vm5402, %v5311
        %5442 = vst.msk [vmem:[#allocation2 + $0x9c] sm:$0xf] %vm5402, %v5313
        %5443 = vst.msk [vmem:[#allocation2 + $0xa0] sm:$0xf] %vm5402, %v5315
        %5444 = vst.msk [vmem:[#allocation2 + $0xa4] sm:$0xf] %vm5402, %v5317
        %5445 = vst.msk [vmem:[#allocation2 + $0xa8] sm:$0xf] %vm5402, %v5319
        %5446 = vst.msk [vmem:[#allocation2 + $0xac] sm:$0xf] %vm5402, %v5321
        %5447 = vst.msk [vmem:[#allocation2 + $0xb0] sm:$0xf] %vm5402, %v5323
        %5448 = vst.msk [vmem:[#allocation2 + $0xb4] sm:$0xf] %vm5402, %v5325
        %5449 = vst.msk [vmem:[#allocation2 + $0xb8] sm:$0xf] %vm5402, %v5327
        %5450 = vst.msk [vmem:[#allocation2 + $0xbc] sm:$0xf] %vm5402, %v5329
        %5451 = vst.msk [vmem:[#allocation2 + $0xc0] sm:$0xf] %vm5402, %v5331
        %5452 = vst.msk [vmem:[#allocation2 + $0xc4] sm:$0xf] %vm5402, %v5333
        %5453 = vst.msk [vmem:[#allocation2 + $0xc8] sm:$0xf] %vm5402, %v5335
        %5454 = vst.msk [vmem:[#allocation2 + $0xcc] sm:$0xf] %vm5402, %v5337
        %5455 = vst.msk [vmem:[#allocation2 + $0xd0] sm:$0xf] %vm5402, %v5339
        %5456 = vst.msk [vmem:[#allocation2 + $0xd4] sm:$0xf] %vm5402, %v5341
        %5457 = vst.msk [vmem:[#allocation2 + $0xd8] sm:$0xf] %vm5402, %v5343
        %5458 = vst.msk [vmem:[#allocation2 + $0xdc] sm:$0xf] %vm5402, %v5345
        %v5459 = vld [vmem:[%s303] sm:$0xf]
        %v5460 = vld [vmem:[%s303 + $0x4] sm:$0xf]
        %v5461 = vld [vmem:[%s303 + $0x8] sm:$0xf]
        %v5462 = vld [vmem:[%s303 + $0xc] sm:$0xf]
        %v5463 = vld [vmem:[%s303 + $0x10] sm:$0x1]
        %v5464 = vld [vmem:[%s303 + $0x14] sm:$0xf]
        %v5465 = vld [vmem:[%s303 + $0x18] sm:$0xf]
        %v5466 = vld [vmem:[%s303 + $0x1c] sm:$0xf]
        %v5467 = vld [vmem:[%s303 + $0x20] sm:$0xf]
        %v5468 = vld [vmem:[%s303 + $0x24] sm:$0x1]
        %v5470 = vshrl.u32 %v5459, 16
        %v5472 = vrot.slane %v5470, 4
        %v5473 = vshll.u32 %v5459, 16
        %v5475 = vrot.slane %v5473, 5
        %v5476 = vor.u32 %v5472, %v5475
        %v5477 = vrot.slane %v5476, 4
        %v5479 = vshll.u32 %v5460, 16
        %v5481 = vrot.slane %v5479, 5
        %v5482 = vsel %vm520, %v5477, %v5481
        %v5483 = vshrl.u32 %v5460, 16
        %v5485 = vrot.slane %v5483, 4
        %v5486 = vor.u32 %v5485, %v5481
        %v5487 = vrot.slane %v5486, 4
        %v5489 = vshll.u32 %v5461, 16
        %v5491 = vrot.slane %v5489, 5
        %v5492 = vsel %vm520, %v5487, %v5491
        %v5493 = vshrl.u32 %v5461, 16
        %v5495 = vrot.slane %v5493, 4
        %v5496 = vor.u32 %v5495, %v5491
        %v5497 = vrot.slane %v5496, 4
        %v5499 = vshll.u32 %v5462, 16
        %v5501 = vrot.slane %v5499, 5
        %v5502 = vsel %vm520, %v5497, %v5501
        %v5503 = vshrl.u32 %v5462, 16
        %v5505 = vrot.slane %v5503, 4
        %v5506 = vor.u32 %v5505, %v5501
        %v5507 = vrot.slane %v5506, 4
        %v5509 = vshll.u32 %v5463, 16
        %v5511 = vrot.slane %v5509, 5
        %v5512 = vsel %vm520, %v5507, %v5511
        %v5514 = vshrl.u32 %v5464, 16
        %v5516 = vrot.slane %v5514, 4
        %v5517 = vshll.u32 %v5464, 16
        %v5519 = vrot.slane %v5517, 5
        %v5520 = vor.u32 %v5516, %v5519
        %v5521 = vrot.slane %v5520, 4
        %v5523 = vshll.u32 %v5465, 16
        %v5525 = vrot.slane %v5523, 5
        %v5526 = vsel %vm520, %v5521, %v5525
        %v5527 = vshrl.u32 %v5465, 16
        %v5529 = vrot.slane %v5527, 4
        %v5530 = vor.u32 %v5529, %v5525
        %v5531 = vrot.slane %v5530, 4
        %v5533 = vshll.u32 %v5466, 16
        %v5535 = vrot.slane %v5533, 5
        %v5536 = vsel %vm520, %v5531, %v5535
        %v5537 = vshrl.u32 %v5466, 16
        %v5539 = vrot.slane %v5537, 4
        %v5540 = vor.u32 %v5539, %v5535
        %v5541 = vrot.slane %v5540, 4
        %v5543 = vshll.u32 %v5467, 16
        %v5545 = vrot.slane %v5543, 5
        %v5546 = vsel %vm520, %v5541, %v5545
        %v5547 = vshrl.u32 %v5467, 16
        %v5549 = vrot.slane %v5547, 4
        %v5550 = vor.u32 %v5549, %v5545
        %v5551 = vrot.slane %v5550, 4
        %v5553 = vshll.u32 %v5468, 16
        %v5555 = vrot.slane %v5553, 5
        %v5556 = vsel %vm520, %v5551, %v5555
        %5557 = vrot.lane.b32.xlu0 %v5482, 56
        %v5558 = vpop.permute.xlu0 %5557
        %5559 = vrot.lane.b32.xlu0 %v5492, 56
        %v5560 = vpop.permute.xlu0 %5559
        %5561 = vrot.lane.b32.xlu0 %v5502, 56
        %v5562 = vpop.permute.xlu0 %5561
        %5563 = vrot.lane.b32.xlu0 %v5512, 56
        %v5564 = vpop.permute.xlu0 %5563
        %5565 = vrot.lane.b32.xlu0 %v5526, 56
        %v5566 = vpop.permute.xlu0 %5565
        %5567 = vrot.lane.b32.xlu0 %v5536, 56
        %v5568 = vpop.permute.xlu0 %5567
        %5569 = vrot.lane.b32.xlu0 %v5546, 56
        %v5570 = vpop.permute.xlu0 %5569
        %5571 = vrot.lane.b32.xlu0 %v5556, 56
        %v5572 = vpop.permute.xlu0 %5571
        %5581 = vst.msk [vmem:[#allocation2 + $0xe0] sm:$0xf] %vm5402, %v5558
        %5582 = vst.msk [vmem:[#allocation2 + $0xe4] sm:$0xf] %vm5402, %v5560
        %5583 = vst.msk [vmem:[#allocation2 + $0xe8] sm:$0xf] %vm5402, %v5562
        %5584 = vst.msk [vmem:[#allocation2 + $0xec] sm:$0xf] %vm5402, %v5564
        %5585 = vst.msk [vmem:[#allocation2 + $0xf0] sm:$0xf] %vm5402, %v5566
        %5586 = vst.msk [vmem:[#allocation2 + $0xf4] sm:$0xf] %vm5402, %v5568
        %5587 = vst.msk [vmem:[#allocation2 + $0xf8] sm:$0xf] %vm5402, %v5570
        %5588 = vst.msk [vmem:[#allocation2 + $0xfc] sm:$0xf] %vm5402, %v5572
        %v5589 = vld [vmem:[%s4162] sm:$0xe]
        %v5590 = vld [vmem:[%s4162 + $0x4] sm:$0xf]
        %v5591 = vld [vmem:[%s4162 + $0x8] sm:$0xf]
        %v5592 = vld [vmem:[%s4162 + $0xc] sm:$0xf]
        %v5593 = vld [vmem:[%s4162 + $0x10] sm:$0x1]
        %v5594 = vld [vmem:[%s4162 + $0x14] sm:$0xe]
        %v5595 = vld [vmem:[%s4162 + $0x18] sm:$0xf]
        %v5596 = vld [vmem:[%s4162 + $0x1c] sm:$0xf]
        %v5597 = vld [vmem:[%s4162 + $0x20] sm:$0xf]
        %v5598 = vld [vmem:[%s4162 + $0x24] sm:$0x1]
        %v5599 = vld [vmem:[%s4162 + $0x28] sm:$0xe]
        %v5600 = vld [vmem:[%s4162 + $0x2c] sm:$0xf]
        %v5601 = vld [vmem:[%s4162 + $0x30] sm:$0xf]
        %v5602 = vld [vmem:[%s4162 + $0x34] sm:$0xf]
        %v5603 = vld [vmem:[%s4162 + $0x38] sm:$0x1]
        %v5604 = vld [vmem:[%s4162 + $0x3c] sm:$0xe]
        %v5605 = vld [vmem:[%s4162 + $0x40] sm:$0xf]
        %v5606 = vld [vmem:[%s4162 + $0x44] sm:$0xf]
        %v5607 = vld [vmem:[%s4162 + $0x48] sm:$0xf]
        %v5608 = vld [vmem:[%s4162 + $0x4c] sm:$0x1]
        %v5609 = vld [vmem:[%s4162 + $0x50] sm:$0xe]
        %v5610 = vld [vmem:[%s4162 + $0x54] sm:$0xf]
        %v5611 = vld [vmem:[%s4162 + $0x58] sm:$0xf]
        %v5612 = vld [vmem:[%s4162 + $0x5c] sm:$0xf]
        %v5613 = vld [vmem:[%s4162 + $0x60] sm:$0x1]
        %v5614 = vld [vmem:[%s4162 + $0x64] sm:$0xe]
        %v5615 = vld [vmem:[%s4162 + $0x68] sm:$0xf]
        %v5616 = vld [vmem:[%s4162 + $0x6c] sm:$0xf]
        %v5617 = vld [vmem:[%s4162 + $0x70] sm:$0xf]
        %v5618 = vld [vmem:[%s4162 + $0x74] sm:$0x1]
        %v5619 = vld [vmem:[%s4162 + $0x78] sm:$0xe]
        %v5620 = vld [vmem:[%s4162 + $0x7c] sm:$0xf]
        %v5621 = vld [vmem:[%s4162 + $0x80] sm:$0xf]
        %v5622 = vld [vmem:[%s4162 + $0x84] sm:$0xf]
        %v5623 = vld [vmem:[%s4162 + $0x88] sm:$0x1]
        %v5624 = vld [vmem:[%s4162 + $0x8c] sm:$0xe]
        %v5625 = vld [vmem:[%s4162 + $0x90] sm:$0xf]
        %v5626 = vld [vmem:[%s4162 + $0x94] sm:$0xf]
        %v5627 = vld [vmem:[%s4162 + $0x98] sm:$0xf]
        %v5628 = vld [vmem:[%s4162 + $0x9c] sm:$0x1]
        %v5629 = vld [vmem:[%s4162 + $0xa0] sm:$0xe]
        %v5630 = vld [vmem:[%s4162 + $0xa4] sm:$0xf]
        %v5631 = vld [vmem:[%s4162 + $0xa8] sm:$0xf]
        %v5632 = vld [vmem:[%s4162 + $0xac] sm:$0xf]
        %v5633 = vld [vmem:[%s4162 + $0xb0] sm:$0x1]
        %v5634 = vld [vmem:[%s4162 + $0xb4] sm:$0xe]
        %v5635 = vld [vmem:[%s4162 + $0xb8] sm:$0xf]
        %v5636 = vld [vmem:[%s4162 + $0xbc] sm:$0xf]
        %v5637 = vld [vmem:[%s4162 + $0xc0] sm:$0xf]
        %v5638 = vld [vmem:[%s4162 + $0xc4] sm:$0x1]
        %v5639 = vld [vmem:[%s4162 + $0xc8] sm:$0xe]
        %v5640 = vld [vmem:[%s4162 + $0xcc] sm:$0xf]
        %v5641 = vld [vmem:[%s4162 + $0xd0] sm:$0xf]
        %v5642 = vld [vmem:[%s4162 + $0xd4] sm:$0xf]
        %v5643 = vld [vmem:[%s4162 + $0xd8] sm:$0x1]
        %v5644 = vld [vmem:[%s4162 + $0xdc] sm:$0xe]
        %v5645 = vld [vmem:[%s4162 + $0xe0] sm:$0xf]
        %v5646 = vld [vmem:[%s4162 + $0xe4] sm:$0xf]
        %v5647 = vld [vmem:[%s4162 + $0xe8] sm:$0xf]
        %v5648 = vld [vmem:[%s4162 + $0xec] sm:$0x1]
        %v5649 = vld [vmem:[%s4162 + $0xf0] sm:$0xe]
        %v5650 = vld [vmem:[%s4162 + $0xf4] sm:$0xf]
        %v5651 = vld [vmem:[%s4162 + $0xf8] sm:$0xf]
        %v5652 = vld [vmem:[%s4162 + $0xfc] sm:$0xf]
        %v5653 = vld [vmem:[%s4162 + $0x100] sm:$0x1]
        %v5654 = vld [vmem:[%s4162 + $0x104] sm:$0xe]
        %v5655 = vld [vmem:[%s4162 + $0x108] sm:$0xf]
        %v5656 = vld [vmem:[%s4162 + $0x10c] sm:$0xf]
        %v5657 = vld [vmem:[%s4162 + $0x110] sm:$0xf]
        %v5658 = vld [vmem:[%s4162 + $0x114] sm:$0x1]
        %v5729 = vrot.slane %v5589, 5
        %v5730 = vrot.slane %v5729, 4
        %v5731 = vrot.slane %v5590, 5
        %v5732 = vsel %vm1644, %v5730, %v5731
        %v5733 = vrot.slane %v5731, 4
        %v5734 = vrot.slane %v5591, 5
        %v5735 = vsel %vm1644, %v5733, %v5734
        %v5736 = vrot.slane %v5734, 4
        %v5737 = vrot.slane %v5592, 5
        %v5738 = vsel %vm1644, %v5736, %v5737
        %v5739 = vrot.slane %v5737, 4
        %v5740 = vrot.slane %v5593, 5
        %v5741 = vsel %vm1644, %v5739, %v5740
        %v5742 = vrot.slane %v5594, 5
        %v5743 = vrot.slane %v5742, 4
        %v5744 = vrot.slane %v5595, 5
        %v5745 = vsel %vm1644, %v5743, %v5744
        %v5746 = vrot.slane %v5744, 4
        %v5747 = vrot.slane %v5596, 5
        %v5748 = vsel %vm1644, %v5746, %v5747
        %v5749 = vrot.slane %v5747, 4
        %v5750 = vrot.slane %v5597, 5
        %v5751 = vsel %vm1644, %v5749, %v5750
        %v5752 = vrot.slane %v5750, 4
        %v5753 = vrot.slane %v5598, 5
        %v5754 = vsel %vm1644, %v5752, %v5753
        %v5755 = vrot.slane %v5599, 5
        %v5756 = vrot.slane %v5755, 4
        %v5757 = vrot.slane %v5600, 5
        %v5758 = vsel %vm1644, %v5756, %v5757
        %v5759 = vrot.slane %v5757, 4
        %v5760 = vrot.slane %v5601, 5
        %v5761 = vsel %vm1644, %v5759, %v5760
        %v5762 = vrot.slane %v5760, 4
        %v5763 = vrot.slane %v5602, 5
        %v5764 = vsel %vm1644, %v5762, %v5763
        %v5765 = vrot.slane %v5763, 4
        %v5766 = vrot.slane %v5603, 5
        %v5767 = vsel %vm1644, %v5765, %v5766
        %v5768 = vrot.slane %v5604, 5
        %v5769 = vrot.slane %v5768, 4
        %v5770 = vrot.slane %v5605, 5
        %v5771 = vsel %vm1644, %v5769, %v5770
        %v5772 = vrot.slane %v5770, 4
        %v5773 = vrot.slane %v5606, 5
        %v5774 = vsel %vm1644, %v5772, %v5773
        %v5775 = vrot.slane %v5773, 4
        %v5776 = vrot.slane %v5607, 5
        %v5777 = vsel %vm1644, %v5775, %v5776
        %v5778 = vrot.slane %v5776, 4
        %v5779 = vrot.slane %v5608, 5
        %v5780 = vsel %vm1644, %v5778, %v5779
        %v5781 = vrot.slane %v5609, 5
        %v5782 = vrot.slane %v5781, 4
        %v5783 = vrot.slane %v5610, 5
        %v5784 = vsel %vm1644, %v5782, %v5783
        %v5785 = vrot.slane %v5783, 4
        %v5786 = vrot.slane %v5611, 5
        %v5787 = vsel %vm1644, %v5785, %v5786
        %v5788 = vrot.slane %v5786, 4
        %v5789 = vrot.slane %v5612, 5
        %v5790 = vsel %vm1644, %v5788, %v5789
        %v5791 = vrot.slane %v5789, 4
        %v5792 = vrot.slane %v5613, 5
        %v5793 = vsel %vm1644, %v5791, %v5792
        %v5794 = vrot.slane %v5614, 5
        %v5795 = vrot.slane %v5794, 4
        %v5796 = vrot.slane %v5615, 5
        %v5797 = vsel %vm1644, %v5795, %v5796
        %v5798 = vrot.slane %v5796, 4
        %v5799 = vrot.slane %v5616, 5
        %v5800 = vsel %vm1644, %v5798, %v5799
        %v5801 = vrot.slane %v5799, 4
        %v5802 = vrot.slane %v5617, 5
        %v5803 = vsel %vm1644, %v5801, %v5802
        %v5804 = vrot.slane %v5802, 4
        %v5805 = vrot.slane %v5618, 5
        %v5806 = vsel %vm1644, %v5804, %v5805
        %v5807 = vrot.slane %v5619, 5
        %v5808 = vrot.slane %v5807, 4
        %v5809 = vrot.slane %v5620, 5
        %v5810 = vsel %vm1644, %v5808, %v5809
        %v5811 = vrot.slane %v5809, 4
        %v5812 = vrot.slane %v5621, 5
        %v5813 = vsel %vm1644, %v5811, %v5812
        %v5814 = vrot.slane %v5812, 4
        %v5815 = vrot.slane %v5622, 5
        %v5816 = vsel %vm1644, %v5814, %v5815
        %v5817 = vrot.slane %v5815, 4
        %v5818 = vrot.slane %v5623, 5
        %v5819 = vsel %vm1644, %v5817, %v5818
        %v5820 = vrot.slane %v5624, 5
        %v5821 = vrot.slane %v5820, 4
        %v5822 = vrot.slane %v5625, 5
        %v5823 = vsel %vm1644, %v5821, %v5822
        %v5824 = vrot.slane %v5822, 4
        %v5825 = vrot.slane %v5626, 5
        %v5826 = vsel %vm1644, %v5824, %v5825
        %v5827 = vrot.slane %v5825, 4
        %v5828 = vrot.slane %v5627, 5
        %v5829 = vsel %vm1644, %v5827, %v5828
        %v5830 = vrot.slane %v5828, 4
        %v5831 = vrot.slane %v5628, 5
        %v5832 = vsel %vm1644, %v5830, %v5831
        %v5833 = vrot.slane %v5629, 5
        %v5834 = vrot.slane %v5833, 4
        %v5835 = vrot.slane %v5630, 5
        %v5836 = vsel %vm1644, %v5834, %v5835
        %v5837 = vrot.slane %v5835, 4
        %v5838 = vrot.slane %v5631, 5
        %v5839 = vsel %vm1644, %v5837, %v5838
        %v5840 = vrot.slane %v5838, 4
        %v5841 = vrot.slane %v5632, 5
        %v5842 = vsel %vm1644, %v5840, %v5841
        %v5843 = vrot.slane %v5841, 4
        %v5844 = vrot.slane %v5633, 5
        %v5845 = vsel %vm1644, %v5843, %v5844
        %v5846 = vrot.slane %v5634, 5
        %v5847 = vrot.slane %v5846, 4
        %v5848 = vrot.slane %v5635, 5
        %v5849 = vsel %vm1644, %v5847, %v5848
        %v5850 = vrot.slane %v5848, 4
        %v5851 = vrot.slane %v5636, 5
        %v5852 = vsel %vm1644, %v5850, %v5851
        %v5853 = vrot.slane %v5851, 4
        %v5854 = vrot.slane %v5637, 5
        %v5855 = vsel %vm1644, %v5853, %v5854
        %v5856 = vrot.slane %v5854, 4
        %v5857 = vrot.slane %v5638, 5
        %v5858 = vsel %vm1644, %v5856, %v5857
        %v5859 = vrot.slane %v5639, 5
        %v5860 = vrot.slane %v5859, 4
        %v5861 = vrot.slane %v5640, 5
        %v5862 = vsel %vm1644, %v5860, %v5861
        %v5863 = vrot.slane %v5861, 4
        %v5864 = vrot.slane %v5641, 5
        %v5865 = vsel %vm1644, %v5863, %v5864
        %v5866 = vrot.slane %v5864, 4
        %v5867 = vrot.slane %v5642, 5
        %v5868 = vsel %vm1644, %v5866, %v5867
        %v5869 = vrot.slane %v5867, 4
        %v5870 = vrot.slane %v5643, 5
        %v5871 = vsel %vm1644, %v5869, %v5870
        %v5872 = vrot.slane %v5644, 5
        %v5873 = vrot.slane %v5872, 4
        %v5874 = vrot.slane %v5645, 5
        %v5875 = vsel %vm1644, %v5873, %v5874
        %v5876 = vrot.slane %v5874, 4
        %v5877 = vrot.slane %v5646, 5
        %v5878 = vsel %vm1644, %v5876, %v5877
        %v5879 = vrot.slane %v5877, 4
        %v5880 = vrot.slane %v5647, 5
        %v5881 = vsel %vm1644, %v5879, %v5880
        %v5882 = vrot.slane %v5880, 4
        %v5883 = vrot.slane %v5648, 5
        %v5884 = vsel %vm1644, %v5882, %v5883
        %v5885 = vrot.slane %v5649, 5
        %v5886 = vrot.slane %v5885, 4
        %v5887 = vrot.slane %v5650, 5
        %v5888 = vsel %vm1644, %v5886, %v5887
        %v5889 = vrot.slane %v5887, 4
        %v5890 = vrot.slane %v5651, 5
        %v5891 = vsel %vm1644, %v5889, %v5890
        %v5892 = vrot.slane %v5890, 4
        %v5893 = vrot.slane %v5652, 5
        %v5894 = vsel %vm1644, %v5892, %v5893
        %v5895 = vrot.slane %v5893, 4
        %v5896 = vrot.slane %v5653, 5
        %v5897 = vsel %vm1644, %v5895, %v5896
        %v5898 = vrot.slane %v5654, 5
        %v5899 = vrot.slane %v5898, 4
        %v5900 = vrot.slane %v5655, 5
        %v5901 = vsel %vm1644, %v5899, %v5900
        %v5902 = vrot.slane %v5900, 4
        %v5903 = vrot.slane %v5656, 5
        %v5904 = vsel %vm1644, %v5902, %v5903
        %v5905 = vrot.slane %v5903, 4
        %v5906 = vrot.slane %v5657, 5
        %v5907 = vsel %vm1644, %v5905, %v5906
        %v5908 = vrot.slane %v5906, 4
        %v5909 = vrot.slane %v5658, 5
        %v5910 = vsel %vm1644, %v5908, %v5909
        %5911 = vrot.lane.b32.xlu0 %v5732, 64
        %v5912 = vpop.permute.xlu0 %5911
        %5913 = vrot.lane.b32.xlu0 %v5735, 64
        %v5914 = vpop.permute.xlu0 %5913
        %5915 = vrot.lane.b32.xlu0 %v5738, 64
        %v5916 = vpop.permute.xlu0 %5915
        %5917 = vrot.lane.b32.xlu0 %v5741, 64
        %v5918 = vpop.permute.xlu0 %5917
        %5919 = vrot.lane.b32.xlu0 %v5745, 64
        %v5920 = vpop.permute.xlu0 %5919
        %5921 = vrot.lane.b32.xlu0 %v5748, 64
        %v5922 = vpop.permute.xlu0 %5921
        %5923 = vrot.lane.b32.xlu0 %v5751, 64
        %v5924 = vpop.permute.xlu0 %5923
        %5925 = vrot.lane.b32.xlu0 %v5754, 64
        %v5926 = vpop.permute.xlu0 %5925
        %5927 = vrot.lane.b32.xlu0 %v5758, 64
        %v5928 = vpop.permute.xlu0 %5927
        %5929 = vrot.lane.b32.xlu0 %v5761, 64
        %v5930 = vpop.permute.xlu0 %5929
        %5931 = vrot.lane.b32.xlu0 %v5764, 64
        %v5932 = vpop.permute.xlu0 %5931
        %5933 = vrot.lane.b32.xlu0 %v5767, 64
        %v5934 = vpop.permute.xlu0 %5933
        %5935 = vrot.lane.b32.xlu0 %v5771, 64
        %v5936 = vpop.permute.xlu0 %5935
        %5937 = vrot.lane.b32.xlu0 %v5774, 64
        %v5938 = vpop.permute.xlu0 %5937
        %5939 = vrot.lane.b32.xlu0 %v5777, 64
        %v5940 = vpop.permute.xlu0 %5939
        %5941 = vrot.lane.b32.xlu0 %v5780, 64
        %v5942 = vpop.permute.xlu0 %5941
        %5943 = vrot.lane.b32.xlu0 %v5784, 64
        %v5944 = vpop.permute.xlu0 %5943
        %5945 = vrot.lane.b32.xlu0 %v5787, 64
        %v5946 = vpop.permute.xlu0 %5945
        %5947 = vrot.lane.b32.xlu0 %v5790, 64
        %v5948 = vpop.permute.xlu0 %5947
        %5949 = vrot.lane.b32.xlu0 %v5793, 64
        %v5950 = vpop.permute.xlu0 %5949
        %5951 = vrot.lane.b32.xlu0 %v5797, 64
        %v5952 = vpop.permute.xlu0 %5951
        %5953 = vrot.lane.b32.xlu0 %v5800, 64
        %v5954 = vpop.permute.xlu0 %5953
        %5955 = vrot.lane.b32.xlu0 %v5803, 64
        %v5956 = vpop.permute.xlu0 %5955
        %5957 = vrot.lane.b32.xlu0 %v5806, 64
        %v5958 = vpop.permute.xlu0 %5957
        %5959 = vrot.lane.b32.xlu0 %v5810, 64
        %v5960 = vpop.permute.xlu0 %5959
        %5961 = vrot.lane.b32.xlu0 %v5813, 64
        %v5962 = vpop.permute.xlu0 %5961
        %5963 = vrot.lane.b32.xlu0 %v5816, 64
        %v5964 = vpop.permute.xlu0 %5963
        %5965 = vrot.lane.b32.xlu0 %v5819, 64
        %v5966 = vpop.permute.xlu0 %5965
        %5967 = vrot.lane.b32.xlu0 %v5823, 64
        %v5968 = vpop.permute.xlu0 %5967
        %5969 = vrot.lane.b32.xlu0 %v5826, 64
        %v5970 = vpop.permute.xlu0 %5969
        %5971 = vrot.lane.b32.xlu0 %v5829, 64
        %v5972 = vpop.permute.xlu0 %5971
        %5973 = vrot.lane.b32.xlu0 %v5832, 64
        %v5974 = vpop.permute.xlu0 %5973
        %5975 = vrot.lane.b32.xlu0 %v5836, 64
        %v5976 = vpop.permute.xlu0 %5975
        %5977 = vrot.lane.b32.xlu0 %v5839, 64
        %v5978 = vpop.permute.xlu0 %5977
        %5979 = vrot.lane.b32.xlu0 %v5842, 64
        %v5980 = vpop.permute.xlu0 %5979
        %5981 = vrot.lane.b32.xlu0 %v5845, 64
        %v5982 = vpop.permute.xlu0 %5981
        %5983 = vrot.lane.b32.xlu0 %v5849, 64
        %v5984 = vpop.permute.xlu0 %5983
        %5985 = vrot.lane.b32.xlu0 %v5852, 64
        %v5986 = vpop.permute.xlu0 %5985
        %5987 = vrot.lane.b32.xlu0 %v5855, 64
        %v5988 = vpop.permute.xlu0 %5987
        %5989 = vrot.lane.b32.xlu0 %v5858, 64
        %v5990 = vpop.permute.xlu0 %5989
        %5991 = vrot.lane.b32.xlu0 %v5862, 64
        %v5992 = vpop.permute.xlu0 %5991
        %5993 = vrot.lane.b32.xlu0 %v5865, 64
        %v5994 = vpop.permute.xlu0 %5993
        %5995 = vrot.lane.b32.xlu0 %v5868, 64
        %v5996 = vpop.permute.xlu0 %5995
        %5997 = vrot.lane.b32.xlu0 %v5871, 64
        %v5998 = vpop.permute.xlu0 %5997
        %5999 = vrot.lane.b32.xlu0 %v5875, 64
        %v6000 = vpop.permute.xlu0 %5999
        %6001 = vrot.lane.b32.xlu0 %v5878, 64
        %v6002 = vpop.permute.xlu0 %6001
        %6003 = vrot.lane.b32.xlu0 %v5881, 64
        %v6004 = vpop.permute.xlu0 %6003
        %6005 = vrot.lane.b32.xlu0 %v5884, 64
        %v6006 = vpop.permute.xlu0 %6005
        %6007 = vrot.lane.b32.xlu0 %v5888, 64
        %v6008 = vpop.permute.xlu0 %6007
        %6009 = vrot.lane.b32.xlu0 %v5891, 64
        %v6010 = vpop.permute.xlu0 %6009
        %6011 = vrot.lane.b32.xlu0 %v5894, 64
        %v6012 = vpop.permute.xlu0 %6011
        %6013 = vrot.lane.b32.xlu0 %v5897, 64
        %v6014 = vpop.permute.xlu0 %6013
        %6015 = vrot.lane.b32.xlu0 %v5901, 64
        %v6016 = vpop.permute.xlu0 %6015
        %6017 = vrot.lane.b32.xlu0 %v5904, 64
        %v6018 = vpop.permute.xlu0 %6017
        %6019 = vrot.lane.b32.xlu0 %v5907, 64
        %v6020 = vpop.permute.xlu0 %6019
        %6021 = vrot.lane.b32.xlu0 %v5910, 64
        %v6022 = vpop.permute.xlu0 %6021
        %vm6079 = vcmask 585216
        %6080 = vst.msk [vmem:[#allocation2] sm:$0xf] %vm6079, %v5912
        %6081 = vst.msk [vmem:[#allocation2 + $0x4] sm:$0xf] %vm6079, %v5914
        %6082 = vst.msk [vmem:[#allocation2 + $0x8] sm:$0xf] %vm6079, %v5916
        %6083 = vst.msk [vmem:[#allocation2 + $0xc] sm:$0xf] %vm6079, %v5918
        %6084 = vst.msk [vmem:[#allocation2 + $0x10] sm:$0xf] %vm6079, %v5920
        %6085 = vst.msk [vmem:[#allocation2 + $0x14] sm:$0xf] %vm6079, %v5922
        %6086 = vst.msk [vmem:[#allocation2 + $0x18] sm:$0xf] %vm6079, %v5924
        %6087 = vst.msk [vmem:[#allocation2 + $0x1c] sm:$0xf] %vm6079, %v5926
        %6088 = vst.msk [vmem:[#allocation2 + $0x20] sm:$0xf] %vm6079, %v5928
        %6089 = vst.msk [vmem:[#allocation2 + $0x24] sm:$0xf] %vm6079, %v5930
        %6090 = vst.msk [vmem:[#allocation2 + $0x28] sm:$0xf] %vm6079, %v5932
        %6091 = vst.msk [vmem:[#allocation2 + $0x2c] sm:$0xf] %vm6079, %v5934
        %6092 = vst.msk [vmem:[#allocation2 + $0x30] sm:$0xf] %vm6079, %v5936
        %6093 = vst.msk [vmem:[#allocation2 + $0x34] sm:$0xf] %vm6079, %v5938
        %6094 = vst.msk [vmem:[#allocation2 + $0x38] sm:$0xf] %vm6079, %v5940
        %6095 = vst.msk [vmem:[#allocation2 + $0x3c] sm:$0xf] %vm6079, %v5942
        %6096 = vst.msk [vmem:[#allocation2 + $0x40] sm:$0xf] %vm6079, %v5944
        %6097 = vst.msk [vmem:[#allocation2 + $0x44] sm:$0xf] %vm6079, %v5946
        %6098 = vst.msk [vmem:[#allocation2 + $0x48] sm:$0xf] %vm6079, %v5948
        %6099 = vst.msk [vmem:[#allocation2 + $0x4c] sm:$0xf] %vm6079, %v5950
        %6100 = vst.msk [vmem:[#allocation2 + $0x50] sm:$0xf] %vm6079, %v5952
        %6101 = vst.msk [vmem:[#allocation2 + $0x54] sm:$0xf] %vm6079, %v5954
        %6102 = vst.msk [vmem:[#allocation2 + $0x58] sm:$0xf] %vm6079, %v5956
        %6103 = vst.msk [vmem:[#allocation2 + $0x5c] sm:$0xf] %vm6079, %v5958
        %6104 = vst.msk [vmem:[#allocation2 + $0x60] sm:$0xf] %vm6079, %v5960
        %6105 = vst.msk [vmem:[#allocation2 + $0x64] sm:$0xf] %vm6079, %v5962
        %6106 = vst.msk [vmem:[#allocation2 + $0x68] sm:$0xf] %vm6079, %v5964
        %6107 = vst.msk [vmem:[#allocation2 + $0x6c] sm:$0xf] %vm6079, %v5966
        %6108 = vst.msk [vmem:[#allocation2 + $0x70] sm:$0xf] %vm6079, %v5968
        %6109 = vst.msk [vmem:[#allocation2 + $0x74] sm:$0xf] %vm6079, %v5970
        %6110 = vst.msk [vmem:[#allocation2 + $0x78] sm:$0xf] %vm6079, %v5972
        %6111 = vst.msk [vmem:[#allocation2 + $0x7c] sm:$0xf] %vm6079, %v5974
        %6112 = vst.msk [vmem:[#allocation2 + $0x80] sm:$0xf] %vm6079, %v5976
        %6113 = vst.msk [vmem:[#allocation2 + $0x84] sm:$0xf] %vm6079, %v5978
        %6114 = vst.msk [vmem:[#allocation2 + $0x88] sm:$0xf] %vm6079, %v5980
        %6115 = vst.msk [vmem:[#allocation2 + $0x8c] sm:$0xf] %vm6079, %v5982
        %6116 = vst.msk [vmem:[#allocation2 + $0x90] sm:$0xf] %vm6079, %v5984
        %6117 = vst.msk [vmem:[#allocation2 + $0x94] sm:$0xf] %vm6079, %v5986
        %6118 = vst.msk [vmem:[#allocation2 + $0x98] sm:$0xf] %vm6079, %v5988
        %6119 = vst.msk [vmem:[#allocation2 + $0x9c] sm:$0xf] %vm6079, %v5990
        %6120 = vst.msk [vmem:[#allocation2 + $0xa0] sm:$0xf] %vm6079, %v5992
        %6121 = vst.msk [vmem:[#allocation2 + $0xa4] sm:$0xf] %vm6079, %v5994
        %6122 = vst.msk [vmem:[#allocation2 + $0xa8] sm:$0xf] %vm6079, %v5996
        %6123 = vst.msk [vmem:[#allocation2 + $0xac] sm:$0xf] %vm6079, %v5998
        %6124 = vst.msk [vmem:[#allocation2 + $0xb0] sm:$0xf] %vm6079, %v6000
        %6125 = vst.msk [vmem:[#allocation2 + $0xb4] sm:$0xf] %vm6079, %v6002
        %6126 = vst.msk [vmem:[#allocation2 + $0xb8] sm:$0xf] %vm6079, %v6004
        %6127 = vst.msk [vmem:[#allocation2 + $0xbc] sm:$0xf] %vm6079, %v6006
        %6128 = vst.msk [vmem:[#allocation2 + $0xc0] sm:$0xf] %vm6079, %v6008
        %6129 = vst.msk [vmem:[#allocation2 + $0xc4] sm:$0xf] %vm6079, %v6010
        %6130 = vst.msk [vmem:[#allocation2 + $0xc8] sm:$0xf] %vm6079, %v6012
        %6131 = vst.msk [vmem:[#allocation2 + $0xcc] sm:$0xf] %vm6079, %v6014
        %6132 = vst.msk [vmem:[#allocation2 + $0xd0] sm:$0xf] %vm6079, %v6016
        %6133 = vst.msk [vmem:[#allocation2 + $0xd4] sm:$0xf] %vm6079, %v6018
        %6134 = vst.msk [vmem:[#allocation2 + $0xd8] sm:$0xf] %vm6079, %v6020
        %6135 = vst.msk [vmem:[#allocation2 + $0xdc] sm:$0xf] %vm6079, %v6022
        %v6136 = vld [vmem:[%s303] sm:$0xe]
        %v6137 = vld [vmem:[%s303 + $0x4] sm:$0xf]
        %v6138 = vld [vmem:[%s303 + $0x8] sm:$0xf]
        %v6139 = vld [vmem:[%s303 + $0xc] sm:$0xf]
        %v6140 = vld [vmem:[%s303 + $0x10] sm:$0x1]
        %v6141 = vld [vmem:[%s303 + $0x14] sm:$0xe]
        %v6142 = vld [vmem:[%s303 + $0x18] sm:$0xf]
        %v6143 = vld [vmem:[%s303 + $0x1c] sm:$0xf]
        %v6144 = vld [vmem:[%s303 + $0x20] sm:$0xf]
        %v6145 = vld [vmem:[%s303 + $0x24] sm:$0x1]
        %v6156 = vrot.slane %v6136, 5
        %v6157 = vrot.slane %v6156, 4
        %v6158 = vrot.slane %v6137, 5
        %v6159 = vsel %vm1644, %v6157, %v6158
        %v6160 = vrot.slane %v6158, 4
        %v6161 = vrot.slane %v6138, 5
        %v6162 = vsel %vm1644, %v6160, %v6161
        %v6163 = vrot.slane %v6161, 4
        %v6164 = vrot.slane %v6139, 5
        %v6165 = vsel %vm1644, %v6163, %v6164
        %v6166 = vrot.slane %v6164, 4
        %v6167 = vrot.slane %v6140, 5
        %v6168 = vsel %vm1644, %v6166, %v6167
        %v6169 = vrot.slane %v6141, 5
        %v6170 = vrot.slane %v6169, 4
        %v6171 = vrot.slane %v6142, 5
        %v6172 = vsel %vm1644, %v6170, %v6171
        %v6173 = vrot.slane %v6171, 4
        %v6174 = vrot.slane %v6143, 5
        %v6175 = vsel %vm1644, %v6173, %v6174
        %v6176 = vrot.slane %v6174, 4
        %v6177 = vrot.slane %v6144, 5
        %v6178 = vsel %vm1644, %v6176, %v6177
        %v6179 = vrot.slane %v6177, 4
        %v6180 = vrot.slane %v6145, 5
        %v6181 = vsel %vm1644, %v6179, %v6180
        %6182 = vrot.lane.b32.xlu0 %v6159, 64
        %v6183 = vpop.permute.xlu0 %6182
        %6184 = vrot.lane.b32.xlu0 %v6162, 64
        %v6185 = vpop.permute.xlu0 %6184
        %6186 = vrot.lane.b32.xlu0 %v6165, 64
        %v6187 = vpop.permute.xlu0 %6186
        %6188 = vrot.lane.b32.xlu0 %v6168, 64
        %v6189 = vpop.permute.xlu0 %6188
        %6190 = vrot.lane.b32.xlu0 %v6172, 64
        %v6191 = vpop.permute.xlu0 %6190
        %6192 = vrot.lane.b32.xlu0 %v6175, 64
        %v6193 = vpop.permute.xlu0 %6192
        %6194 = vrot.lane.b32.xlu0 %v6178, 64
        %v6195 = vpop.permute.xlu0 %6194
        %6196 = vrot.lane.b32.xlu0 %v6181, 64
        %v6197 = vpop.permute.xlu0 %6196
        %6206 = vst.msk [vmem:[#allocation2 + $0xe0] sm:$0xf] %vm6079, %v6183
        %6207 = vst.msk [vmem:[#allocation2 + $0xe4] sm:$0xf] %vm6079, %v6185
        %6208 = vst.msk [vmem:[#allocation2 + $0xe8] sm:$0xf] %vm6079, %v6187
        %6209 = vst.msk [vmem:[#allocation2 + $0xec] sm:$0xf] %vm6079, %v6189
        %6210 = vst.msk [vmem:[#allocation2 + $0xf0] sm:$0xf] %vm6079, %v6191
        %6211 = vst.msk [vmem:[#allocation2 + $0xf4] sm:$0xf] %vm6079, %v6193
        %6212 = vst.msk [vmem:[#allocation2 + $0xf8] sm:$0xf] %vm6079, %v6195
        %6213 = vst.msk [vmem:[#allocation2 + $0xfc] sm:$0xf] %vm6079, %v6197
        %v6214 = vld [vmem:[#allocation2] sm:$0xf]
        %v6215 = vld [vmem:[#allocation2 + $0x4] sm:$0xf]
        %v6216 = vld [vmem:[#allocation2 + $0x8] sm:$0xf]
        %v6217 = vld [vmem:[#allocation2 + $0xc] sm:$0xf]
        %v6218 = vld [vmem:[#allocation2 + $0x10] sm:$0xf]
        %v6219 = vld [vmem:[#allocation2 + $0x14] sm:$0xf]
        %v6220 = vld [vmem:[#allocation2 + $0x18] sm:$0xf]
        %v6221 = vld [vmem:[#allocation2 + $0x1c] sm:$0xf]
        %v6222 = vld [vmem:[#allocation2 + $0x20] sm:$0xf]
        %v6223 = vld [vmem:[#allocation2 + $0x24] sm:$0xf]
        %v6224 = vld [vmem:[#allocation2 + $0x28] sm:$0xf]
        %v6225 = vld [vmem:[#allocation2 + $0x2c] sm:$0xf]
        %v6226 = vld [vmem:[#allocation2 + $0x30] sm:$0xf]
        %v6227 = vld [vmem:[#allocation2 + $0x34] sm:$0xf]
        %v6228 = vld [vmem:[#allocation2 + $0x38] sm:$0xf]
        %v6229 = vld [vmem:[#allocation2 + $0x3c] sm:$0xf]
        %v6230 = vld [vmem:[#allocation2 + $0x40] sm:$0xf]
        %v6231 = vld [vmem:[#allocation2 + $0x44] sm:$0xf]
        %v6232 = vld [vmem:[#allocation2 + $0x48] sm:$0xf]
        %v6233 = vld [vmem:[#allocation2 + $0x4c] sm:$0xf]
        %v6234 = vld [vmem:[#allocation2 + $0x50] sm:$0xf]
        %v6235 = vld [vmem:[#allocation2 + $0x54] sm:$0xf]
        %v6236 = vld [vmem:[#allocation2 + $0x58] sm:$0xf]
        %v6237 = vld [vmem:[#allocation2 + $0x5c] sm:$0xf]
        %v6238 = vld [vmem:[#allocation2 + $0x60] sm:$0xf]
        %v6239 = vld [vmem:[#allocation2 + $0x64] sm:$0xf]
        %v6240 = vld [vmem:[#allocation2 + $0x68] sm:$0xf]
        %v6241 = vld [vmem:[#allocation2 + $0x6c] sm:$0xf]
        %v6242 = vld [vmem:[#allocation2 + $0x70] sm:$0xf]
        %v6243 = vld [vmem:[#allocation2 + $0x74] sm:$0xf]
        %v6244 = vld [vmem:[#allocation2 + $0x78] sm:$0xf]
        %v6245 = vld [vmem:[#allocation2 + $0x7c] sm:$0xf]
        %v6246 = vld [vmem:[#allocation2 + $0x80] sm:$0xf]
        %v6247 = vld [vmem:[#allocation2 + $0x84] sm:$0xf]
        %v6248 = vld [vmem:[#allocation2 + $0x88] sm:$0xf]
        %v6249 = vld [vmem:[#allocation2 + $0x8c] sm:$0xf]
        %v6250 = vld [vmem:[#allocation2 + $0x90] sm:$0xf]
        %v6251 = vld [vmem:[#allocation2 + $0x94] sm:$0xf]
        %v6252 = vld [vmem:[#allocation2 + $0x98] sm:$0xf]
        %v6253 = vld [vmem:[#allocation2 + $0x9c] sm:$0xf]
        %v6254 = vld [vmem:[#allocation2 + $0xa0] sm:$0xf]
        %v6255 = vld [vmem:[#allocation2 + $0xa4] sm:$0xf]
        %v6256 = vld [vmem:[#allocation2 + $0xa8] sm:$0xf]
        %v6257 = vld [vmem:[#allocation2 + $0xac] sm:$0xf]
        %v6258 = vld [vmem:[#allocation2 + $0xb0] sm:$0xf]
        %v6259 = vld [vmem:[#allocation2 + $0xb4] sm:$0xf]
        %v6260 = vld [vmem:[#allocation2 + $0xb8] sm:$0xf]
        %v6261 = vld [vmem:[#allocation2 + $0xbc] sm:$0xf]
        %v6262 = vld [vmem:[#allocation2 + $0xc0] sm:$0xf]
        %v6263 = vld [vmem:[#allocation2 + $0xc4] sm:$0xf]
        %v6264 = vld [vmem:[#allocation2 + $0xc8] sm:$0xf]
        %v6265 = vld [vmem:[#allocation2 + $0xcc] sm:$0xf]
        %v6266 = vld [vmem:[#allocation2 + $0xd0] sm:$0xf]
        %v6267 = vld [vmem:[#allocation2 + $0xd4] sm:$0xf]
        %v6268 = vld [vmem:[#allocation2 + $0xd8] sm:$0xf]
        %v6269 = vld [vmem:[#allocation2 + $0xdc] sm:$0xf]
        %v6270 = vld [vmem:[#allocation2 + $0xe0] sm:$0xf]
        %v6271 = vld [vmem:[#allocation2 + $0xe4] sm:$0xf]
        %v6272 = vld [vmem:[#allocation2 + $0xe8] sm:$0xf]
        %v6273 = vld [vmem:[#allocation2 + $0xec] sm:$0xf]
        %v6274 = vld [vmem:[#allocation2 + $0xf0] sm:$0xf]
        %v6275 = vld [vmem:[#allocation2 + $0xf4] sm:$0xf]
        %v6276 = vld [vmem:[#allocation2 + $0xf8] sm:$0xf]
        %v6277 = vld [vmem:[#allocation2 + $0xfc] sm:$0xf]
        %v6278 = vld [vmem:[%s2] sm:$0xf]
        %v6279 = vld [vmem:[%s2 + $0x4] sm:$0xf]
        %v6280 = vld [vmem:[%s2 + $0x8] sm:$0xf]
        %v6281 = vld [vmem:[%s2 + $0xc] sm:$0xf]
        %v6282 = vld [vmem:[%s2 + $0x10] sm:$0xf]
        %v6283 = vld [vmem:[%s2 + $0x14] sm:$0xf]
        %v6284 = vld [vmem:[%s2 + $0x18] sm:$0xf]
        %v6285 = vld [vmem:[%s2 + $0x1c] sm:$0xf]
        %v6286 = vld [vmem:[%s2 + $0x20] sm:$0xf]
        %v6287 = vld [vmem:[%s3] sm:$0x1]
        %v6289 = vperm.slane %v6287, 0
        %v6355 = vunpack.c.l.b16 %v6214
        %v6356 = vunpack.c.l.b16 %v6215
        %v6357 = vunpack.c.l.b16 %v6216
        %v6358 = vunpack.c.l.b16 %v6217
        %v6359 = vunpack.c.l.b16 %v6218
        %v6360 = vunpack.c.l.b16 %v6219
        %v6361 = vunpack.c.l.b16 %v6220
        %v6362 = vunpack.c.l.b16 %v6221
        %v6363 = vunpack.c.l.b16 %v6222
        %v6364 = vunpack.c.l.b16 %v6223
        %v6365 = vunpack.c.l.b16 %v6224
        %v6366 = vunpack.c.l.b16 %v6225
        %v6367 = vunpack.c.l.b16 %v6226
        %v6368 = vunpack.c.l.b16 %v6227
        %v6369 = vunpack.c.l.b16 %v6228
        %v6370 = vunpack.c.l.b16 %v6229
        %v6371 = vunpack.c.l.b16 %v6230
        %v6372 = vunpack.c.l.b16 %v6231
        %v6373 = vunpack.c.l.b16 %v6232
        %v6374 = vunpack.c.l.b16 %v6233
        %v6375 = vunpack.c.l.b16 %v6234
        %v6376 = vunpack.c.l.b16 %v6235
        %v6377 = vunpack.c.l.b16 %v6236
        %v6378 = vunpack.c.l.b16 %v6237
        %v6379 = vunpack.c.l.b16 %v6238
        %v6380 = vunpack.c.l.b16 %v6239
        %v6381 = vunpack.c.l.b16 %v6240
        %v6382 = vunpack.c.l.b16 %v6241
        %v6383 = vunpack.c.l.b16 %v6242
        %v6384 = vunpack.c.l.b16 %v6243
        %v6385 = vunpack.c.l.b16 %v6244
        %v6386 = vunpack.c.l.b16 %v6245
        %v6387 = vunpack.c.l.b16 %v6246
        %v6388 = vunpack.c.l.b16 %v6247
        %v6389 = vunpack.c.l.b16 %v6248
        %v6390 = vunpack.c.l.b16 %v6249
        %v6391 = vunpack.c.l.b16 %v6250
        %v6392 = vunpack.c.l.b16 %v6251
        %v6393 = vunpack.c.l.b16 %v6252
        %v6394 = vunpack.c.l.b16 %v6253
        %v6395 = vunpack.c.l.b16 %v6254
        %v6396 = vunpack.c.l.b16 %v6255
        %v6397 = vunpack.c.l.b16 %v6256
        %v6398 = vunpack.c.l.b16 %v6257
        %v6399 = vunpack.c.l.b16 %v6258
        %v6400 = vunpack.c.l.b16 %v6259
        %v6401 = vunpack.c.l.b16 %v6260
        %v6402 = vunpack.c.l.b16 %v6261
        %v6403 = vunpack.c.l.b16 %v6262
        %v6404 = vunpack.c.l.b16 %v6263
        %v6405 = vunpack.c.l.b16 %v6264
        %v6406 = vunpack.c.l.b16 %v6265
        %v6407 = vunpack.c.l.b16 %v6266
        %v6408 = vunpack.c.l.b16 %v6267
        %v6409 = vunpack.c.l.b16 %v6268
        %v6410 = vunpack.c.l.b16 %v6269
        %v6411 = vunpack.c.l.b16 %v6270
        %v6412 = vunpack.c.l.b16 %v6271
        %v6413 = vunpack.c.l.b16 %v6272
        %v6414 = vunpack.c.l.b16 %v6273
        %v6415 = vunpack.c.l.b16 %v6274
        %v6416 = vunpack.c.l.b16 %v6275
        %v6417 = vunpack.c.l.b16 %v6276
        %v6418 = vunpack.c.l.b16 %v6277
        %v6419 = vpack.c.b16 %v6356, %v6355
        %v6420 = vpack.c.b16 %v6358, %v6357
        %v6421 = vpack.c.b16 %v6360, %v6359
        %v6422 = vpack.c.b16 %v6362, %v6361
        %v6423 = vpack.c.b16 %v6364, %v6363
        %v6424 = vpack.c.b16 %v6366, %v6365
        %v6425 = vpack.c.b16 %v6368, %v6367
        %v6426 = vpack.c.b16 %v6370, %v6369
        %v6427 = vpack.c.b16 %v6372, %v6371
        %v6428 = vpack.c.b16 %v6374, %v6373
        %v6429 = vpack.c.b16 %v6376, %v6375
        %v6430 = vpack.c.b16 %v6378, %v6377
        %v6431 = vpack.c.b16 %v6380, %v6379
        %v6432 = vpack.c.b16 %v6382, %v6381
        %v6433 = vpack.c.b16 %v6384, %v6383
        %v6434 = vpack.c.b16 %v6386, %v6385
        %v6435 = vpack.c.b16 %v6388, %v6387
        %v6436 = vpack.c.b16 %v6390, %v6389
        %v6437 = vpack.c.b16 %v6392, %v6391
        %v6438 = vpack.c.b16 %v6394, %v6393
        %v6439 = vpack.c.b16 %v6396, %v6395
        %v6440 = vpack.c.b16 %v6398, %v6397
        %v6441 = vpack.c.b16 %v6400, %v6399
        %v6442 = vpack.c.b16 %v6402, %v6401
        %v6443 = vpack.c.b16 %v6404, %v6403
        %v6444 = vpack.c.b16 %v6406, %v6405
        %v6445 = vpack.c.b16 %v6408, %v6407
        %v6446 = vpack.c.b16 %v6410, %v6409
        %v6447 = vpack.c.b16 %v6412, %v6411
        %v6448 = vpack.c.b16 %v6414, %v6413
        %v6449 = vpack.c.b16 %v6416, %v6415
        %v6450 = vpack.c.b16 %v6418, %v6417
        %v6460 = vunpack.c.l.b16 %v6278
        %v6461 = vunpack.c.l.b16 %v6279
        %v6462 = vunpack.c.l.b16 %v6280
        %v6463 = vunpack.c.l.b16 %v6281
        %v6464 = vunpack.c.l.b16 %v6282
        %v6465 = vunpack.c.l.b16 %v6283
        %v6466 = vunpack.c.l.b16 %v6284
        %v6467 = vunpack.c.l.b16 %v6285
        %v6468 = vunpack.c.l.b16 %v6286
        %v6469 = vpack.c.b16 %v6461, %v6460
        %v6470 = vpack.c.b16 %v6463, %v6462
        %v6471 = vpack.c.b16 %v6465, %v6464
        %v6472 = vpack.c.b16 %v6467, %v6466
        %v6473 = vpack.c.b16 %v6468, %v6468
        %vm6478 = vcmask 588800
        %v6480 = vsel %vm6478, %v6419, 0
        %v6483 = vsel %vm6478, %v6420, 0
        %v6486 = vsel %vm6478, %v6421, 0
        %v6489 = vsel %vm6478, %v6422, 0
        %v6492 = vsel %vm6478, %v6423, 0
        %v6495 = vsel %vm6478, %v6424, 0
        %v6498 = vsel %vm6478, %v6425, 0
        %v6501 = vsel %vm6478, %v6426, 0
        %v6504 = vsel %vm6478, %v6427, 0
        %v6507 = vsel %vm6478, %v6428, 0
        %v6510 = vsel %vm6478, %v6429, 0
        %v6513 = vsel %vm6478, %v6430, 0
        %v6516 = vsel %vm6478, %v6431, 0
        %v6519 = vsel %vm6478, %v6432, 0
        %v6522 = vsel %vm6478, %v6433, 0
        %v6525 = vsel %vm6478, %v6434, 0
        %v6528 = vsel %vm6478, %v6435, 0
        %v6531 = vsel %vm6478, %v6436, 0
        %v6534 = vsel %vm6478, %v6437, 0
        %v6537 = vsel %vm6478, %v6438, 0
        %v6540 = vsel %vm6478, %v6439, 0
        %v6543 = vsel %vm6478, %v6440, 0
        %v6546 = vsel %vm6478, %v6441, 0
        %v6549 = vsel %vm6478, %v6442, 0
        %v6552 = vsel %vm6478, %v6443, 0
        %v6555 = vsel %vm6478, %v6444, 0
        %v6558 = vsel %vm6478, %v6445, 0
        %v6561 = vsel %vm6478, %v6446, 0
        %v6564 = vsel %vm6478, %v6447, 0
        %v6567 = vsel %vm6478, %v6448, 0
        %v6570 = vsel %vm6478, %v6449, 0
        %v6573 = vsel %vm6478, %v6450, 0
        %vm6575 = vcmask 1043456
        %v6577 = vsel %vm6575, %v6473, 0
        %6579 = vmatpush.bf16.msra.mxu0 0
        %6580 = vmatpush.bf16.msra.mxu0 0
        %6581 = vmatpush.bf16.msra.mxu0 0
        %6582 = vmatpush.bf16.msra.mxu0 %v6577
        %6583 = vmatpush.bf16.msra.mxu0 %v6472
        %6584 = vmatpush.bf16.msra.mxu0 %v6471
        %6585 = vmatpush.bf16.msra.mxu0 %v6470
        %6586 = vmatpush.bf16.msra.mxu0 %v6469
        %6587 = vmatmul.bf16.gmra.mxu0 %v6480
        %v6588 = vpop.f32.mrf.mxu0
        %v6589 = vadd.f32 %v6289, %v6588
        %v6590 = vpop.f32.mrf.mxu0
        %v6591 = vadd.f32 %v6289, %v6590
        %6592 = vmatmul.bf16.gmra.mxu0 %v6483
        %v6593 = vpop.f32.mrf.mxu0
        %v6594 = vadd.f32 %v6289, %v6593
        %v6595 = vpop.f32.mrf.mxu0
        %v6596 = vadd.f32 %v6289, %v6595
        %6597 = vmatmul.bf16.gmra.mxu0 %v6486
        %v6598 = vpop.f32.mrf.mxu0
        %v6599 = vadd.f32 %v6289, %v6598
        %v6600 = vpop.f32.mrf.mxu0
        %v6601 = vadd.f32 %v6289, %v6600
        %6602 = vmatmul.bf16.gmra.mxu0 %v6489
        %v6603 = vpop.f32.mrf.mxu0
        %v6604 = vadd.f32 %v6289, %v6603
        %v6605 = vpop.f32.mrf.mxu0
        %v6606 = vadd.f32 %v6289, %v6605
        %6607 = vmatmul.bf16.gmra.mxu0 %v6492
        %v6608 = vpop.f32.mrf.mxu0
        %v6609 = vadd.f32 %v6289, %v6608
        %v6610 = vpop.f32.mrf.mxu0
        %v6611 = vadd.f32 %v6289, %v6610
        %6612 = vmatmul.bf16.gmra.mxu0 %v6495
        %v6613 = vpop.f32.mrf.mxu0
        %v6614 = vadd.f32 %v6289, %v6613
        %v6615 = vpop.f32.mrf.mxu0
        %v6616 = vadd.f32 %v6289, %v6615
        %6617 = vmatmul.bf16.gmra.mxu0 %v6498
        %v6618 = vpop.f32.mrf.mxu0
        %v6619 = vadd.f32 %v6289, %v6618
        %v6620 = vpop.f32.mrf.mxu0
        %v6621 = vadd.f32 %v6289, %v6620
        %6622 = vmatmul.bf16.gmra.mxu0 %v6501
        %v6623 = vpop.f32.mrf.mxu0
        %v6624 = vadd.f32 %v6289, %v6623
        %v6625 = vpop.f32.mrf.mxu0
        %v6626 = vadd.f32 %v6289, %v6625
        %6627 = vmatmul.bf16.gmra.mxu0 %v6504
        %v6628 = vpop.f32.mrf.mxu0
        %v6629 = vadd.f32 %v6289, %v6628
        %v6630 = vpop.f32.mrf.mxu0
        %v6631 = vadd.f32 %v6289, %v6630
        %6632 = vmatmul.bf16.gmra.mxu0 %v6507
        %v6633 = vpop.f32.mrf.mxu0
        %v6634 = vadd.f32 %v6289, %v6633
        %v6635 = vpop.f32.mrf.mxu0
        %v6636 = vadd.f32 %v6289, %v6635
        %6637 = vmatmul.bf16.gmra.mxu0 %v6510
        %v6638 = vpop.f32.mrf.mxu0
        %v6639 = vadd.f32 %v6289, %v6638
        %v6640 = vpop.f32.mrf.mxu0
        %v6641 = vadd.f32 %v6289, %v6640
        %6642 = vmatmul.bf16.gmra.mxu0 %v6513
        %v6643 = vpop.f32.mrf.mxu0
        %v6644 = vadd.f32 %v6289, %v6643
        %v6645 = vpop.f32.mrf.mxu0
        %v6646 = vadd.f32 %v6289, %v6645
        %6647 = vmatmul.bf16.gmra.mxu0 %v6516
        %v6648 = vpop.f32.mrf.mxu0
        %v6649 = vadd.f32 %v6289, %v6648
        %v6650 = vpop.f32.mrf.mxu0
        %v6651 = vadd.f32 %v6289, %v6650
        %6652 = vmatmul.bf16.gmra.mxu0 %v6519
        %v6653 = vpop.f32.mrf.mxu0
        %v6654 = vadd.f32 %v6289, %v6653
        %v6655 = vpop.f32.mrf.mxu0
        %v6656 = vadd.f32 %v6289, %v6655
        %6657 = vmatmul.bf16.gmra.mxu0 %v6522
        %v6658 = vpop.f32.mrf.mxu0
        %v6659 = vadd.f32 %v6289, %v6658
        %v6660 = vpop.f32.mrf.mxu0
        %v6661 = vadd.f32 %v6289, %v6660
        %6662 = vmatmul.bf16.gmra.mxu0 %v6525
        %v6663 = vpop.f32.mrf.mxu0
        %v6664 = vadd.f32 %v6289, %v6663
        %v6665 = vpop.f32.mrf.mxu0
        %v6666 = vadd.f32 %v6289, %v6665
        %6667 = vmatmul.bf16.gmra.mxu0 %v6528
        %v6668 = vpop.f32.mrf.mxu0
        %v6669 = vadd.f32 %v6289, %v6668
        %v6670 = vpop.f32.mrf.mxu0
        %v6671 = vadd.f32 %v6289, %v6670
        %6672 = vmatmul.bf16.gmra.mxu0 %v6531
        %v6673 = vpop.f32.mrf.mxu0
        %v6674 = vadd.f32 %v6289, %v6673
        %v6675 = vpop.f32.mrf.mxu0
        %v6676 = vadd.f32 %v6289, %v6675
        %6677 = vmatmul.bf16.gmra.mxu0 %v6534
        %v6678 = vpop.f32.mrf.mxu0
        %v6679 = vadd.f32 %v6289, %v6678
        %v6680 = vpop.f32.mrf.mxu0
        %v6681 = vadd.f32 %v6289, %v6680
        %6682 = vmatmul.bf16.gmra.mxu0 %v6537
        %v6683 = vpop.f32.mrf.mxu0
        %v6684 = vadd.f32 %v6289, %v6683
        %v6685 = vpop.f32.mrf.mxu0
        %v6686 = vadd.f32 %v6289, %v6685
        %6687 = vmatmul.bf16.gmra.mxu0 %v6540
        %v6688 = vpop.f32.mrf.mxu0
        %v6689 = vadd.f32 %v6289, %v6688
        %v6690 = vpop.f32.mrf.mxu0
        %v6691 = vadd.f32 %v6289, %v6690
        %6692 = vmatmul.bf16.gmra.mxu0 %v6543
        %v6693 = vpop.f32.mrf.mxu0
        %v6694 = vadd.f32 %v6289, %v6693
        %v6695 = vpop.f32.mrf.mxu0
        %v6696 = vadd.f32 %v6289, %v6695
        %6697 = vmatmul.bf16.gmra.mxu0 %v6546
        %v6698 = vpop.f32.mrf.mxu0
        %v6699 = vadd.f32 %v6289, %v6698
        %v6700 = vpop.f32.mrf.mxu0
        %v6701 = vadd.f32 %v6289, %v6700
        %6702 = vmatmul.bf16.gmra.mxu0 %v6549
        %v6703 = vpop.f32.mrf.mxu0
        %v6704 = vadd.f32 %v6289, %v6703
        %v6705 = vpop.f32.mrf.mxu0
        %v6706 = vadd.f32 %v6289, %v6705
        %6707 = vmatmul.bf16.gmra.mxu0 %v6552
        %v6708 = vpop.f32.mrf.mxu0
        %v6709 = vadd.f32 %v6289, %v6708
        %v6710 = vpop.f32.mrf.mxu0
        %v6711 = vadd.f32 %v6289, %v6710
        %6712 = vmatmul.bf16.gmra.mxu0 %v6555
        %v6713 = vpop.f32.mrf.mxu0
        %v6714 = vadd.f32 %v6289, %v6713
        %v6715 = vpop.f32.mrf.mxu0
        %v6716 = vadd.f32 %v6289, %v6715
        %6717 = vmatmul.bf16.gmra.mxu0 %v6558
        %v6718 = vpop.f32.mrf.mxu0
        %v6719 = vadd.f32 %v6289, %v6718
        %v6720 = vpop.f32.mrf.mxu0
        %v6721 = vadd.f32 %v6289, %v6720
        %6722 = vmatmul.bf16.gmra.mxu0 %v6561
        %v6723 = vpop.f32.mrf.mxu0
        %v6724 = vadd.f32 %v6289, %v6723
        %v6725 = vpop.f32.mrf.mxu0
        %v6726 = vadd.f32 %v6289, %v6725
        %6727 = vmatmul.bf16.gmra.mxu0 %v6564
        %v6728 = vpop.f32.mrf.mxu0
        %v6729 = vadd.f32 %v6289, %v6728
        %v6730 = vpop.f32.mrf.mxu0
        %v6731 = vadd.f32 %v6289, %v6730
        %6732 = vmatmul.bf16.gmra.mxu0 %v6567
        %v6733 = vpop.f32.mrf.mxu0
        %v6734 = vadd.f32 %v6289, %v6733
        %v6735 = vpop.f32.mrf.mxu0
        %v6736 = vadd.f32 %v6289, %v6735
        %6737 = vmatmul.bf16.gmra.mxu0 %v6570
        %v6738 = vpop.f32.mrf.mxu0
        %v6739 = vadd.f32 %v6289, %v6738
        %v6740 = vpop.f32.mrf.mxu0
        %v6741 = vadd.f32 %v6289, %v6740
        %6742 = vmatmul.bf16.gmra.mxu0 %v6573
        %v6743 = vpop.f32.mrf.mxu0
        %v6744 = vadd.f32 %v6289, %v6743
        %v6745 = vpop.f32.mrf.mxu0
        %v6746 = vadd.f32 %v6289, %v6745
        %6747 = vdwg.mxu0
        %v6748 = vmax.f32 %v6589, 0.0
        %v6749 = vmax.f32 %v6591, 0.0
        %v6750 = vmax.f32 %v6594, 0.0
        %v6751 = vmax.f32 %v6596, 0.0
        %v6752 = vmax.f32 %v6599, 0.0
        %v6753 = vmax.f32 %v6601, 0.0
        %v6754 = vmax.f32 %v6604, 0.0
        %v6755 = vmax.f32 %v6606, 0.0
        %v6756 = vmax.f32 %v6609, 0.0
        %v6757 = vmax.f32 %v6611, 0.0
        %v6758 = vmax.f32 %v6614, 0.0
        %v6759 = vmax.f32 %v6616, 0.0
        %v6760 = vmax.f32 %v6619, 0.0
        %v6761 = vmax.f32 %v6621, 0.0
        %v6762 = vmax.f32 %v6624, 0.0
        %v6763 = vmax.f32 %v6626, 0.0
        %v6764 = vmax.f32 %v6629, 0.0
        %v6765 = vmax.f32 %v6631, 0.0
        %v6766 = vmax.f32 %v6634, 0.0
        %v6767 = vmax.f32 %v6636, 0.0
        %v6768 = vmax.f32 %v6639, 0.0
        %v6769 = vmax.f32 %v6641, 0.0
        %v6770 = vmax.f32 %v6644, 0.0
        %v6771 = vmax.f32 %v6646, 0.0
        %v6772 = vmax.f32 %v6649, 0.0
        %v6773 = vmax.f32 %v6651, 0.0
        %v6774 = vmax.f32 %v6654, 0.0
        %v6775 = vmax.f32 %v6656, 0.0
        %v6776 = vmax.f32 %v6659, 0.0
        %v6777 = vmax.f32 %v6661, 0.0
        %v6778 = vmax.f32 %v6664, 0.0
        %v6779 = vmax.f32 %v6666, 0.0
        %v6780 = vmax.f32 %v6669, 0.0
        %v6781 = vmax.f32 %v6671, 0.0
        %v6782 = vmax.f32 %v6674, 0.0
        %v6783 = vmax.f32 %v6676, 0.0
        %v6784 = vmax.f32 %v6679, 0.0
        %v6785 = vmax.f32 %v6681, 0.0
        %v6786 = vmax.f32 %v6684, 0.0
        %v6787 = vmax.f32 %v6686, 0.0
        %v6788 = vmax.f32 %v6689, 0.0
        %v6789 = vmax.f32 %v6691, 0.0
        %v6790 = vmax.f32 %v6694, 0.0
        %v6791 = vmax.f32 %v6696, 0.0
        %v6792 = vmax.f32 %v6699, 0.0
        %v6793 = vmax.f32 %v6701, 0.0
        %v6794 = vmax.f32 %v6704, 0.0
        %v6795 = vmax.f32 %v6706, 0.0
        %v6796 = vmax.f32 %v6709, 0.0
        %v6797 = vmax.f32 %v6711, 0.0
        %v6798 = vmax.f32 %v6714, 0.0
        %v6799 = vmax.f32 %v6716, 0.0
        %v6800 = vmax.f32 %v6719, 0.0
        %v6801 = vmax.f32 %v6721, 0.0
        %v6802 = vmax.f32 %v6724, 0.0
        %v6803 = vmax.f32 %v6726, 0.0
        %v6804 = vmax.f32 %v6729, 0.0
        %v6805 = vmax.f32 %v6731, 0.0
        %v6806 = vmax.f32 %v6734, 0.0
        %v6807 = vmax.f32 %v6736, 0.0
        %v6808 = vmax.f32 %v6739, 0.0
        %v6809 = vmax.f32 %v6741, 0.0
        %v6810 = vmax.f32 %v6744, 0.0
        %v6811 = vmax.f32 %v6746, 0.0
        %v6812 = vpack.c.bf16 %v6748, %v6748
        %v6813 = vpack.c.bf16 %v6749, %v6749
        %v6814 = vpack.c.bf16 %v6750, %v6750
        %v6815 = vpack.c.bf16 %v6751, %v6751
        %v6816 = vpack.c.bf16 %v6752, %v6752
        %v6817 = vpack.c.bf16 %v6753, %v6753
        %v6818 = vpack.c.bf16 %v6754, %v6754
        %v6819 = vpack.c.bf16 %v6755, %v6755
        %v6820 = vpack.c.bf16 %v6756, %v6756
        %v6821 = vpack.c.bf16 %v6757, %v6757
        %v6822 = vpack.c.bf16 %v6758, %v6758
        %v6823 = vpack.c.bf16 %v6759, %v6759
        %v6824 = vpack.c.bf16 %v6760, %v6760
        %v6825 = vpack.c.bf16 %v6761, %v6761
        %v6826 = vpack.c.bf16 %v6762, %v6762
        %v6827 = vpack.c.bf16 %v6763, %v6763
        %v6828 = vpack.c.bf16 %v6764, %v6764
        %v6829 = vpack.c.bf16 %v6765, %v6765
        %v6830 = vpack.c.bf16 %v6766, %v6766
        %v6831 = vpack.c.bf16 %v6767, %v6767
        %v6832 = vpack.c.bf16 %v6768, %v6768
        %v6833 = vpack.c.bf16 %v6769, %v6769
        %v6834 = vpack.c.bf16 %v6770, %v6770
        %v6835 = vpack.c.bf16 %v6771, %v6771
        %v6836 = vpack.c.bf16 %v6772, %v6772
        %v6837 = vpack.c.bf16 %v6773, %v6773
        %v6838 = vpack.c.bf16 %v6774, %v6774
        %v6839 = vpack.c.bf16 %v6775, %v6775
        %v6840 = vpack.c.bf16 %v6776, %v6776
        %v6841 = vpack.c.bf16 %v6777, %v6777
        %v6842 = vpack.c.bf16 %v6778, %v6778
        %v6843 = vpack.c.bf16 %v6779, %v6779
        %v6844 = vpack.c.bf16 %v6780, %v6780
        %v6845 = vpack.c.bf16 %v6781, %v6781
        %v6846 = vpack.c.bf16 %v6782, %v6782
        %v6847 = vpack.c.bf16 %v6783, %v6783
        %v6848 = vpack.c.bf16 %v6784, %v6784
        %v6849 = vpack.c.bf16 %v6785, %v6785
        %v6850 = vpack.c.bf16 %v6786, %v6786
        %v6851 = vpack.c.bf16 %v6787, %v6787
        %v6852 = vpack.c.bf16 %v6788, %v6788
        %v6853 = vpack.c.bf16 %v6789, %v6789
        %v6854 = vpack.c.bf16 %v6790, %v6790
        %v6855 = vpack.c.bf16 %v6791, %v6791
        %v6856 = vpack.c.bf16 %v6792, %v6792
        %v6857 = vpack.c.bf16 %v6793, %v6793
        %v6858 = vpack.c.bf16 %v6794, %v6794
        %v6859 = vpack.c.bf16 %v6795, %v6795
        %v6860 = vpack.c.bf16 %v6796, %v6796
        %v6861 = vpack.c.bf16 %v6797, %v6797
        %v6862 = vpack.c.bf16 %v6798, %v6798
        %v6863 = vpack.c.bf16 %v6799, %v6799
        %v6864 = vpack.c.bf16 %v6800, %v6800
        %v6865 = vpack.c.bf16 %v6801, %v6801
        %v6866 = vpack.c.bf16 %v6802, %v6802
        %v6867 = vpack.c.bf16 %v6803, %v6803
        %v6868 = vpack.c.bf16 %v6804, %v6804
        %v6869 = vpack.c.bf16 %v6805, %v6805
        %v6870 = vpack.c.bf16 %v6806, %v6806
        %v6871 = vpack.c.bf16 %v6807, %v6807
        %v6872 = vpack.c.bf16 %v6808, %v6808
        %v6873 = vpack.c.bf16 %v6809, %v6809
        %v6874 = vpack.c.bf16 %v6810, %v6810
        %v6875 = vpack.c.bf16 %v6811, %v6811
        %6876 = vst [vmem:[%s270] sm:$0xf] %v6812
        %6877 = vst [vmem:[%s270 + $0x4] sm:$0xf] %v6813
        %6878 = vst [vmem:[%s270 + $0x8] sm:$0xf] %v6814
        %6879 = vst [vmem:[%s270 + $0xc] sm:$0xf] %v6815
        %6880 = vst [vmem:[%s270 + $0x10] sm:$0xf] %v6816
        %6881 = vst [vmem:[%s270 + $0x14] sm:$0xf] %v6817
        %6882 = vst [vmem:[%s270 + $0x18] sm:$0xf] %v6818
        %6883 = vst [vmem:[%s270 + $0x1c] sm:$0xf] %v6819
        %6884 = vst [vmem:[%s270 + $0x20] sm:$0xf] %v6820
        %6885 = vst [vmem:[%s270 + $0x24] sm:$0xf] %v6821
        %6886 = vst [vmem:[%s270 + $0x28] sm:$0xf] %v6822
        %6887 = vst [vmem:[%s270 + $0x2c] sm:$0xf] %v6823
        %6888 = vst [vmem:[%s270 + $0x30] sm:$0xf] %v6824
        %6889 = vst [vmem:[%s270 + $0x34] sm:$0xf] %v6825
        %6890 = vst [vmem:[%s270 + $0x38] sm:$0xf] %v6826
        %6891 = vst [vmem:[%s270 + $0x3c] sm:$0xf] %v6827
        %6892 = vst [vmem:[%s270 + $0x40] sm:$0xf] %v6828
        %6893 = vst [vmem:[%s270 + $0x44] sm:$0xf] %v6829
        %6894 = vst [vmem:[%s270 + $0x48] sm:$0xf] %v6830
        %6895 = vst [vmem:[%s270 + $0x4c] sm:$0xf] %v6831
        %6896 = vst [vmem:[%s270 + $0x50] sm:$0xf] %v6832
        %6897 = vst [vmem:[%s270 + $0x54] sm:$0xf] %v6833
        %6898 = vst [vmem:[%s270 + $0x58] sm:$0xf] %v6834
        %6899 = vst [vmem:[%s270 + $0x5c] sm:$0xf] %v6835
        %6900 = vst [vmem:[%s270 + $0x60] sm:$0xf] %v6836
        %6901 = vst [vmem:[%s270 + $0x64] sm:$0xf] %v6837
        %6902 = vst [vmem:[%s270 + $0x68] sm:$0xf] %v6838
        %6903 = vst [vmem:[%s270 + $0x6c] sm:$0xf] %v6839
        %6904 = vst [vmem:[%s270 + $0x70] sm:$0xf] %v6840
        %6905 = vst [vmem:[%s270 + $0x74] sm:$0xf] %v6841
        %6906 = vst [vmem:[%s270 + $0x78] sm:$0xf] %v6842
        %6907 = vst [vmem:[%s270 + $0x7c] sm:$0xf] %v6843
        %6908 = vst [vmem:[%s270 + $0x80] sm:$0xf] %v6844
        %6909 = vst [vmem:[%s270 + $0x84] sm:$0xf] %v6845
        %6910 = vst [vmem:[%s270 + $0x88] sm:$0xf] %v6846
        %6911 = vst [vmem:[%s270 + $0x8c] sm:$0xf] %v6847
        %6912 = vst [vmem:[%s270 + $0x90] sm:$0xf] %v6848
        %6913 = vst [vmem:[%s270 + $0x94] sm:$0xf] %v6849
        %6914 = vst [vmem:[%s270 + $0x98] sm:$0xf] %v6850
        %6915 = vst [vmem:[%s270 + $0x9c] sm:$0xf] %v6851
        %6916 = vst [vmem:[%s270 + $0xa0] sm:$0xf] %v6852
        %6917 = vst [vmem:[%s270 + $0xa4] sm:$0xf] %v6853
        %6918 = vst [vmem:[%s270 + $0xa8] sm:$0xf] %v6854
        %6919 = vst [vmem:[%s270 + $0xac] sm:$0xf] %v6855
        %6920 = vst [vmem:[%s270 + $0xb0] sm:$0xf] %v6856
        %6921 = vst [vmem:[%s270 + $0xb4] sm:$0xf] %v6857
        %6922 = vst [vmem:[%s270 + $0xb8] sm:$0xf] %v6858
        %6923 = vst [vmem:[%s270 + $0xbc] sm:$0xf] %v6859
        %6924 = vst [vmem:[%s270 + $0xc0] sm:$0xf] %v6860
        %6925 = vst [vmem:[%s270 + $0xc4] sm:$0xf] %v6861
        %6926 = vst [vmem:[%s270 + $0xc8] sm:$0xf] %v6862
        %6927 = vst [vmem:[%s270 + $0xcc] sm:$0xf] %v6863
        %6928 = vst [vmem:[%s270 + $0xd0] sm:$0xf] %v6864
        %6929 = vst [vmem:[%s270 + $0xd4] sm:$0xf] %v6865
        %6930 = vst [vmem:[%s270 + $0xd8] sm:$0xf] %v6866
        %6931 = vst [vmem:[%s270 + $0xdc] sm:$0xf] %v6867
        %6932 = vst [vmem:[%s270 + $0xe0] sm:$0xf] %v6868
        %6933 = vst [vmem:[%s270 + $0xe4] sm:$0xf] %v6869
        %6934 = vst [vmem:[%s270 + $0xe8] sm:$0xf] %v6870
        %6935 = vst [vmem:[%s270 + $0xec] sm:$0xf] %v6871
        %6936 = vst [vmem:[%s270 + $0xf0] sm:$0xf] %v6872
        %6937 = vst [vmem:[%s270 + $0xf4] sm:$0xf] %v6873
        %6938 = vst [vmem:[%s270 + $0xf8] sm:$0xf] %v6874
        %6939 = vst [vmem:[%s270 + $0xfc] sm:$0xf] %v6875
        %s6940 = sand.u32 %s142, 1
        %s6941 = scalar_lea.sflag [#allocation4], %s6940
        %s6942 = sand.u32 %s142, 1
        %s6943 = smul.addr %s6942, 256
        %s6944 = scalar_lea.vmem [#allocation3], %s6943
        // Predicated region
        $region37: #{tpu_custom_call.1} parent=35 // pred_check
          %p6945 = pneg %p152
        $region38: #{tpu_custom_call.1} parent=35 // pred_check_branch
          %6947 = sbr.rel (%p6945) target = $region40
        $region39: #{tpu_custom_call.1} parent=35 // pred_region
          %s6948 = smul.u32 16, %s23
          %6950 = vsyncadd %s6941, 0
          %s6951 = smul.addr %s6948, 4
          %s6952 = smul.addr %s22, 128
          %s6953 = sadd.s32 %s6951, %s6952
          %s6954 = smul.addr %s6953, 4
          %s6955 = scalar_lea.hbm %s4, %s6954
          %s6956 = sshll.u32 %s6944, 4
          %s6957 = int_to_ptr.vmem [resolvable:$true] %s6956
          %s6958 = sshll.u32 %s6955, 4
          %s6959 = int_to_ptr.hbm [resolvable:$true] %s6958
          %6964 = dma.vmem_to_hbm [thread:$0]  %s6957, 4096, %s6959, %s6941, 64, 64, 4
        $region40: #{tpu_custom_call.1} parent=35 // pred_fallthru
          _
      $region36: #{tpu_custom_call.1} parent=5 // pred_fallthru
        _
      %p6965 = scmp.le.s32.totalorder 2, %s13
      // Predicated region
      $region41: #{tpu_custom_call.1} parent=5 // pred_check
        %p6966 = pneg %p6965
      $region42: #{tpu_custom_call.1} parent=5 // pred_check_branch
        %6968 = sbr.rel (%p6966) target = $region44
      $region43: #{tpu_custom_call.1} parent=5 // pred_region
        %s6969 = ssub.s32 %s13, 2
        // Predicated region
        $region45: #{tpu_custom_call.1} parent=43 // pred_check
          %p6970 = pneg %p158
        $region46: #{tpu_custom_call.1} parent=43 // pred_check_branch
          %6972 = sbr.rel (%p6970) target = $region48
        $region47: #{tpu_custom_call.1} parent=43 // pred_region
          %s6973 = sand.u32 %s143, 1
          %s6974 = scalar_lea.sflag [#allocation4], %s6973
          %s6975 = sand.u32 %s143, 1
          %s6976 = smul.addr %s6975, 256
          %s6977 = scalar_lea.vmem [#allocation3], %s6976
          %6979 = dma.done %s6974, 4096
        $region48: #{tpu_custom_call.1} parent=43 // pred_fallthru
          _
      $region44: #{tpu_custom_call.1} parent=5 // pred_fallthru
        _
    $region6: #{tpu_custom_call.1} parent=1 // loop_footer
      %s17 = sadd.s32 1, %s13
    $region7: #{tpu_custom_call.1} parent=1 // loop_footer_branch
      %12 = sbr.rel target = $region3
    $region8: #{tpu_custom_call.1} parent=1 // loop_exit
      _
    %6980 = vsyncpa [#allocation4], 1
    %s6981 = scalar_lea.sflag [#allocation4], 1
    %6982 = vsyncpa %s6981, 1

</llo_original>
